<compile_context>
chip_gen: v7x
topology: tpu7x:2x2x1
jax: 0.10.0
libtpu: 0.0.40
codegen_flags: <defaults>
</compile_context>

<pallas_src>
import jax
import jax.numpy as jnp
from jax.experimental import pallas as pl
from jax.experimental.pallas import tpu as pltpu

D_IN = 2 * 768   # 1536
D_OUT = 768
LN_EPS = 1e-5
TB_MAX = 512     # batch-tile rows (multiple of 8; 512*768*4B*2buf*3arrays ~ 9 MiB)


def _round_up(x, m):
    return ((x + m - 1) // m) * m


def ie_spv_kernel(s_ref, c_ref, ws_ref, wc_ref, b_ref, gamma_ref, beta_ref,
                  o_ref):
    wdt = ws_ref.dtype
    # Linear over the concatenated input, expressed as two MXU matmuls against
    # the two resident [768, 768] weight halves (no concat materialized):
    #   h = sentence @ W[:768] + contextual @ W[768:] + b
    h = jnp.dot(s_ref[...].astype(wdt), ws_ref[...],
                preferred_element_type=jnp.float32)
    h = h + jnp.dot(c_ref[...].astype(wdt), wc_ref[...],
                    preferred_element_type=jnp.float32)
    h = h + b_ref[...]                                   # f32 bias, pre-LN

    # LayerNorm over the lane axis (eps = 1e-5), two-pass stats in f32
    # (matches PyTorch's E[(h - mean)^2] form; robust to large |mean|).
    mean = jnp.mean(h, axis=-1, keepdims=True)
    centered = h - mean
    var = jnp.mean(centered * centered, axis=-1, keepdims=True)
    xhat = centered * jax.lax.rsqrt(var + LN_EPS)

    # Fused affine + residual epilogue: xhat * gamma + (contextual + beta).
    resid = c_ref[...].astype(jnp.float32) + beta_ref[...]
    o_ref[...] = (xhat * gamma_ref[...] + resid).astype(o_ref.dtype)


def ie_spv_forward(target, sentence, contextual, w, b, gamma, beta,
                   *, use_bf16_weights=False):
    """IE_SPV forward. `target` is unused by the module (signature parity).

    w is the Linear weight pre-transposed to [1536, 768].
    use_bf16_weights=True is an explicit perf opt-in: the weight is cast to
    bf16 (halves the dominant weight DMA, native bf16 MXU rate); accumulation
    and LayerNorm stay in f32, so error stays small but numerics deviate from
    the f32 PyTorch module.
    """
    del target
    # TODO(synk): dropout is inference-mode identity here (a training-mode
    # mask would need pltpu.prng_* inside the kernel).
    B = sentence.shape[0]
    out_dtype = sentence.dtype

    # Batch tiling: big tiles for HBM-roofline efficiency, but at least two
    # grid steps when B is non-trivial so v7x's two TensorCores both work.
    if B <= 16:
        tb = B
    else:
        tb = min(TB_MAX, _round_up(pl.cdiv(B, 2), 8))
    grid = (pl.cdiv(B, tb),)

    # Split the weight into its sentence / contextual halves (contiguous row
    # slices) so each half is its own resident, single-buffered VMEM block.
    w_dtype = jnp.bfloat16 if use_bf16_weights else w.dtype
    ws = w[:D_OUT, :].astype(w_dtype)
    wc = w[D_OUT:, :].astype(w_dtype)

    b2 = b.reshape(1, D_OUT).astype(jnp.float32)
    gamma2 = gamma.reshape(1, D_OUT).astype(jnp.float32)
    beta2 = beta.reshape(1, D_OUT).astype(jnp.float32)

    act_bytes = jnp.dtype(sentence.dtype).itemsize
    out_bytes = jnp.dtype(out_dtype).itemsize
    w_bytes = jnp.dtype(w_dtype).itemsize

    # VMEM footprint: streamed tiles are double-buffered by the pipeline,
    # grid-invariant blocks are single-buffered (pl.Buffered(1)).
    streamed = (2 * act_bytes + out_bytes) * tb * D_OUT * 2
    resident = 2 * D_OUT * D_OUT * w_bytes + 3 * D_OUT * 4
    vmem_limit = int((streamed + resident) * 1.25) + (2 << 20)
    vmem_limit = min(max(vmem_limit, 8 << 20), 32 << 20)

    bytes_accessed = (
        D_IN * D_OUT * w_bytes                        # weight (resident)
        + 2 * B * D_OUT * act_bytes                   # sentence + contextual
        + B * D_OUT * out_bytes                       # output
        + 3 * D_OUT * 4                               # bias / gamma / beta
    )
    cost = pl.CostEstimate(
        flops=2 * B * D_IN * D_OUT,
        transcendentals=B,                            # rsqrt per row
        bytes_accessed=int(bytes_accessed),
    )

    single = pl.Buffered(1)   # grid-invariant blocks: no double-buffering
    out = pl.pallas_call(
        ie_spv_kernel,
        out_shape=jax.ShapeDtypeStruct((B, D_OUT), out_dtype),
        grid=grid,
        in_specs=[
            pl.BlockSpec((tb, D_OUT), lambda i: (i, 0)),       # sentence tile
            pl.BlockSpec((tb, D_OUT), lambda i: (i, 0)),       # contextual tile
            pl.BlockSpec((D_OUT, D_OUT), lambda i: (0, 0),
                         pipeline_mode=single),                # W (sentence half)
            pl.BlockSpec((D_OUT, D_OUT), lambda i: (0, 0),
                         pipeline_mode=single),                # W (contextual half)
            pl.BlockSpec((1, D_OUT), lambda i: (0, 0),
                         pipeline_mode=single),                # bias
            pl.BlockSpec((1, D_OUT), lambda i: (0, 0),
                         pipeline_mode=single),                # ln gamma
            pl.BlockSpec((1, D_OUT), lambda i: (0, 0),
                         pipeline_mode=single),                # ln beta
        ],
        out_specs=pl.BlockSpec((tb, D_OUT), lambda i: (i, 0)),
        compiler_params=pltpu.CompilerParams(
            dimension_semantics=("parallel",),        # batch tiles independent
            vmem_limit_bytes=vmem_limit,
        ),
        cost_estimate=cost,
    )(sentence, contextual, ws, wc, b2, gamma2, beta2)
    return out


def _reference(sentence, contextual, w, b, gamma, beta):
    combined = jnp.concatenate([sentence, contextual], axis=1)
    h = combined @ w + b
    mean = jnp.mean(h, axis=-1, keepdims=True)
    var = jnp.mean((h - mean) ** 2, axis=-1, keepdims=True)
    xhat = (h - mean) / jnp.sqrt(var + LN_EPS)
    return xhat * gamma + beta + contextual


if __name__ == "__main__":
    key = jax.random.PRNGKey(0)
    k1, k2, k3, k4, k5 = jax.random.split(key, 5)

    B = 8  # small batch
    # Inputs (target is unused by forward, included for signature parity).
    target = jax.random.normal(k1, (B, D_OUT), dtype=jnp.float32)
    sentence = jax.random.normal(k2, (B, D_OUT), dtype=jnp.float32)
    contextual = jax.random.normal(k3, (B, D_OUT), dtype=jnp.float32)

    # Deterministic parameters (nn.Linear(1536, 768), nn.LayerNorm(768)).
    # Linear weight stored pre-transposed as [1536, 768] for the kernel's x @ W.
    bound = 1.0 / jnp.sqrt(jnp.float32(D_IN))
    w = jax.random.uniform(k4, (D_IN, D_OUT), dtype=jnp.float32,
                           minval=-bound, maxval=bound)
    b = jax.random.uniform(k5, (D_OUT,), dtype=jnp.float32,
                           minval=-bound, maxval=bound)
    gamma = jnp.ones((D_OUT,), dtype=jnp.float32)
    beta = jnp.zeros((D_OUT,), dtype=jnp.float32)

    ref = _reference(sentence, contextual, w, b, gamma, beta)

    # 1) f32 weights: exact module semantics, tight tolerance.
    out = ie_spv_forward(target, sentence, contextual, w, b, gamma, beta)
    out = jax.block_until_ready(out)
    assert out.shape == (B, D_OUT)
    assert jnp.allclose(out, ref, atol=1e-4, rtol=1e-4), "f32 mismatch vs reference"

    # 2) bf16 weight path (explicit opt-in perf mode: halves dominant weight
    #    DMA, bf16 MXU); accumulation and LayerNorm stay in f32.
    out_bf16 = ie_spv_forward(target, sentence, contextual, w, b, gamma, beta,
                              use_bf16_weights=True)
    out_bf16 = jax.block_until_ready(out_bf16)
    assert out_bf16.shape == (B, D_OUT)
    assert jnp.allclose(out_bf16, ref, atol=5e-2, rtol=5e-2), "bf16 mismatch vs reference"

    print("KERNEL_OK")
</pallas_src>

<mosaic_0001>
module attributes {stable_mosaic.version = 11 : i64} {
  func.func @ie_spv_kernel(%arg0: i32, %arg1: memref<8x768xf32, #tpu.memory_space<vmem>>, %arg2: memref<8x768xf32, #tpu.memory_space<vmem>>, %arg3: memref<768x768xf32, #tpu.memory_space<vmem>>, %arg4: memref<768x768xf32, #tpu.memory_space<vmem>>, %arg5: memref<1x768xf32, #tpu.memory_space<vmem>>, %arg6: memref<1x768xf32, #tpu.memory_space<vmem>>, %arg7: memref<1x768xf32, #tpu.memory_space<vmem>>, %arg8: memref<8x768xf32, #tpu.memory_space<vmem>>) attributes {dimension_semantics = [#tpu.dimension_semantics<parallel>], iteration_bounds = array<i64: 1>, scalar_prefetch = 0 : i64, scratch_operands = 0 : i64, tpu.core_type = #tpu.core_type<tc>, window_params = [{transform_indices = @transform_0, window_bounds = array<i64: 8, 768>}, {transform_indices = @transform_1, window_bounds = array<i64: 8, 768>}, {pipeline_mode = #tpu.pipeline_mode<synchronous>, transform_indices = @transform_2, window_bounds = array<i64: 768, 768>}, {pipeline_mode = #tpu.pipeline_mode<synchronous>, transform_indices = @transform_3, window_bounds = array<i64: 768, 768>}, {pipeline_mode = #tpu.pipeline_mode<synchronous>, transform_indices = @transform_4, window_bounds = array<i64: 1, 768>}, {pipeline_mode = #tpu.pipeline_mode<synchronous>, transform_indices = @transform_5, window_bounds = array<i64: 1, 768>}, {pipeline_mode = #tpu.pipeline_mode<synchronous>, transform_indices = @transform_6, window_bounds = array<i64: 1, 768>}, {transform_indices = @transform_7, window_bounds = array<i64: 8, 768>}]} {
    %c0 = arith.constant 0 : index
    %c0_0 = arith.constant 0 : index
    %0 = vector.load %arg1[%c0, %c0_0] : memref<8x768xf32, #tpu.memory_space<vmem>>, vector<8x768xf32>
    %c0_1 = arith.constant 0 : index
    %c0_2 = arith.constant 0 : index
    %1 = vector.load %arg3[%c0_1, %c0_2] : memref<768x768xf32, #tpu.memory_space<vmem>>, vector<768x768xf32>
    %cst = arith.constant dense<0.000000e+00> : vector<8x768xf32>
    %2 = tpu.matmul %0, %1, %cst {dimension_numbers = #tpu.dot_dimension_numbers<[1], [0], [0], [1], [0, 0, 1, 1], [], []>} : vector<8x768xf32>, vector<768x768xf32>, vector<8x768xf32> -> vector<8x768xf32>
    %c0_3 = arith.constant 0 : index
    %c0_4 = arith.constant 0 : index
    %3 = vector.load %arg2[%c0_3, %c0_4] : memref<8x768xf32, #tpu.memory_space<vmem>>, vector<8x768xf32>
    %c0_5 = arith.constant 0 : index
    %c0_6 = arith.constant 0 : index
    %4 = vector.load %arg4[%c0_5, %c0_6] : memref<768x768xf32, #tpu.memory_space<vmem>>, vector<768x768xf32>
    %cst_7 = arith.constant dense<0.000000e+00> : vector<8x768xf32>
    %5 = tpu.matmul %3, %4, %cst_7 {dimension_numbers = #tpu.dot_dimension_numbers<[1], [0], [0], [1], [0, 0, 1, 1], [], []>} : vector<8x768xf32>, vector<768x768xf32>, vector<8x768xf32> -> vector<8x768xf32>
    %6 = arith.addf %2, %5 : vector<8x768xf32>
    %c0_8 = arith.constant 0 : index
    %c0_9 = arith.constant 0 : index
    %7 = vector.load %arg5[%c0_8, %c0_9] : memref<1x768xf32, #tpu.memory_space<vmem>>, vector<1x768xf32>
    %8 = vector.broadcast %7 : vector<1x768xf32> to vector<8x768xf32>
    %9 = arith.addf %6, %8 : vector<8x768xf32>
    %cst_10 = arith.constant dense<0.000000e+00> : vector<8xf32>
    %10 = vector.multi_reduction <add>, %9, %cst_10 [1] : vector<8x768xf32> to vector<8xf32>
    %11 = vector.shape_cast %10 : vector<8xf32> to vector<8x1xf32>
    %cst_11 = arith.constant 7.680000e+02 : f32
    %12 = vector.broadcast %cst_11 : f32 to vector<8x1xf32>
    %13 = arith.divf %11, %12 : vector<8x1xf32>
    %14 = vector.broadcast %13 : vector<8x1xf32> to vector<8x768xf32>
    %15 = arith.subf %9, %14 : vector<8x768xf32>
    %16 = arith.mulf %15, %15 : vector<8x768xf32>
    %cst_12 = arith.constant dense<0.000000e+00> : vector<8xf32>
    %17 = vector.multi_reduction <add>, %16, %cst_12 [1] : vector<8x768xf32> to vector<8xf32>
    %18 = vector.shape_cast %17 : vector<8xf32> to vector<8x1xf32>
    %cst_13 = arith.constant 7.680000e+02 : f32
    %19 = vector.broadcast %cst_13 : f32 to vector<8x1xf32>
    %20 = arith.divf %18, %19 : vector<8x1xf32>
    %cst_14 = arith.constant 9.99999974E-6 : f32
    %21 = vector.broadcast %cst_14 : f32 to vector<8x1xf32>
    %22 = arith.addf %20, %21 : vector<8x1xf32>
    %23 = math.rsqrt %22 : vector<8x1xf32>
    %24 = vector.broadcast %23 : vector<8x1xf32> to vector<8x768xf32>
    %25 = arith.mulf %15, %24 : vector<8x768xf32>
    %c0_15 = arith.constant 0 : index
    %c0_16 = arith.constant 0 : index
    %26 = vector.load %arg2[%c0_15, %c0_16] : memref<8x768xf32, #tpu.memory_space<vmem>>, vector<8x768xf32>
    %c0_17 = arith.constant 0 : index
    %c0_18 = arith.constant 0 : index
    %27 = vector.load %arg7[%c0_17, %c0_18] : memref<1x768xf32, #tpu.memory_space<vmem>>, vector<1x768xf32>
    %28 = vector.broadcast %27 : vector<1x768xf32> to vector<8x768xf32>
    %29 = arith.addf %26, %28 : vector<8x768xf32>
    %c0_19 = arith.constant 0 : index
    %c0_20 = arith.constant 0 : index
    %30 = vector.load %arg6[%c0_19, %c0_20] : memref<1x768xf32, #tpu.memory_space<vmem>>, vector<1x768xf32>
    %31 = vector.broadcast %30 : vector<1x768xf32> to vector<8x768xf32>
    %32 = arith.mulf %25, %31 : vector<8x768xf32>
    %33 = arith.addf %32, %29 : vector<8x768xf32>
    %c0_21 = arith.constant 0 : index
    %c0_22 = arith.constant 0 : index
    %34 = vector.load %arg8[%c0_21, %c0_22] : memref<8x768xf32, #tpu.memory_space<vmem>>, vector<8x768xf32>
    tpu.vector_store %arg8[%c0_21, %c0_22], %33 {strides = array<i32>} : memref<8x768xf32, #tpu.memory_space<vmem>>, vector<8x768xf32>,
    return
  }
  func.func @transform_0(%arg0: i32) -> (i32, i32) {
    %c0_i32 = arith.constant 0 : i32
    %c0_i32_0 = arith.constant 0 : i32
    return %arg0, %c0_i32 : i32, i32
  }
  func.func @transform_1(%arg0: i32) -> (i32, i32) {
    %c0_i32 = arith.constant 0 : i32
    %c0_i32_0 = arith.constant 0 : i32
    return %arg0, %c0_i32 : i32, i32
  }
  func.func @transform_2(%arg0: i32) -> (i32, i32) {
    %c0_i32 = arith.constant 0 : i32
    %c0_i32_0 = arith.constant 0 : i32
    %c0_i32_1 = arith.constant 0 : i32
    return %c0_i32, %c0_i32_0 : i32, i32
  }
  func.func @transform_3(%arg0: i32) -> (i32, i32) {
    %c0_i32 = arith.constant 0 : i32
    %c0_i32_0 = arith.constant 0 : i32
    %c0_i32_1 = arith.constant 0 : i32
    return %c0_i32, %c0_i32_0 : i32, i32
  }
  func.func @transform_4(%arg0: i32) -> (i32, i32) {
    %c0_i32 = arith.constant 0 : i32
    %c0_i32_0 = arith.constant 0 : i32
    %c0_i32_1 = arith.constant 0 : i32
    return %c0_i32, %c0_i32_0 : i32, i32
  }
  func.func @transform_5(%arg0: i32) -> (i32, i32) {
    %c0_i32 = arith.constant 0 : i32
    %c0_i32_0 = arith.constant 0 : i32
    %c0_i32_1 = arith.constant 0 : i32
    return %c0_i32, %c0_i32_0 : i32, i32
  }
  func.func @transform_6(%arg0: i32) -> (i32, i32) {
    %c0_i32 = arith.constant 0 : i32
    %c0_i32_0 = arith.constant 0 : i32
    %c0_i32_1 = arith.constant 0 : i32
    return %c0_i32, %c0_i32_0 : i32, i32
  }
  func.func @transform_7(%arg0: i32) -> (i32, i32) {
    %c0_i32 = arith.constant 0 : i32
    %c0_i32_0 = arith.constant 0 : i32
    return %arg0, %c0_i32 : i32, i32
  }
}

</mosaic_0001>

<llo_original>
// kernel: tpu_custom_call.1
$region0: #{tpu_custom_call.1}
  #allocation0 [shape = 'u32[]', space=smem, size = 0x4, offset = 0x4, fixed_abs, tag = 'smem constant byte address 0x4 - core index']
  #allocation1 [shape = 'u32[144,128]{1,0:T(1,128)}', space=vmem, size = 0x12000, scoped, tag = 'internal scratch']
  %s0 = inlined_call_operand.hbm [shape: f32[8,768], index: 0, kind: input, shape index: {}]
  %s1 = inlined_call_operand.hbm [shape: f32[8,768], index: 1, kind: input, shape index: {}]
  %s2 = inlined_call_operand.hbm [shape: f32[768,768], index: 2, kind: input, shape index: {}]
  %s3 = inlined_call_operand.hbm [shape: f32[768,768], index: 3, kind: input, shape index: {}]
  %s4 = inlined_call_operand.hbm [shape: f32[1,768], index: 4, kind: input, shape index: {}]
  %s5 = inlined_call_operand.hbm [shape: f32[1,768], index: 5, kind: input, shape index: {}]
  %s6 = inlined_call_operand.hbm [shape: f32[1,768], index: 6, kind: input, shape index: {}]
  %s7 = inlined_call_operand.hbm [shape: f32[8,768], index: 7, kind: output, shape index: {}]
  %s8 = sld [smem:[#allocation0]]
  $region66: #{tpu_custom_call.1} parent=0
    _
  %s10 = ssub.s32 1, %s8
  %s11 = scalar_select 0, %s10, %s8
  $region1: #{tpu_custom_call.1} parent=0
    #allocation2 [shape = 'u8[24576]{0}', space=vmem, size = 0x6000, scoped, tag = 'input window, operand 0, single buffered']
    #allocation3 [shape = 's32[1]{0}', space=sflag, size = 0x4, scoped, tag = 'scoped memory for tpu_custom_call.1']
    #allocation4 [shape = 's32[1]{0}', space=sflag, size = 0x4, scoped, tag = 'scoped memory for tpu_custom_call.1']
    #allocation5 [shape = 'u8[24576]{0}', space=vmem, size = 0x6000, scoped, tag = 'input window, operand 1, single buffered']
    #allocation6 [shape = 's32[1]{0}', space=sflag, size = 0x4, scoped, tag = 'scoped memory for tpu_custom_call.1']
    #allocation7 [shape = 'u8[2359296]{0}', space=vmem, size = 0x240000, scoped, tag = 'input window, operand 2, single buffered']
    #allocation8 [shape = 'u8[2359296]{0}', space=vmem, size = 0x240000, scoped, tag = 'input window, operand 3, single buffered']
    #allocation9 [shape = 's32[1]{0}', space=sflag, size = 0x4, scoped, tag = 'scoped memory for tpu_custom_call.1']
    #allocation10 [shape = 'u8[3072]{0}', space=vmem, size = 0xc00, scoped, tag = 'input window, operand 4, single buffered']
    #allocation11 [shape = 'u8[3072]{0}', space=vmem, size = 0xc00, scoped, tag = 'input window, operand 5, single buffered']
    #allocation12 [shape = 's32[1]{0}', space=sflag, size = 0x4, scoped, tag = 'scoped memory for tpu_custom_call.1']
    #allocation13 [shape = 'u8[3072]{0}', space=vmem, size = 0xc00, scoped, tag = 'input window, operand 6, single buffered']
    #allocation14 [shape = 'u8[24576]{0}', space=vmem, size = 0x6000, scoped, tag = 'output window, operand 0, single buffered']
    %12 = vsyncpa [#allocation3], 0
    %13 = vsyncpa [#allocation6], 0
    %14 = vsyncpa [#allocation9], 0
    %15 = vsyncpa [#allocation12], 0
    %16 = vsyncpa [#allocation4], 0
    // Predicated region
    $region2: #{tpu_custom_call.1} parent=1 // pred_check
      _
    $region3: #{tpu_custom_call.1} parent=1 // pred_check_branch
      %18 = sbr.rel (0) target = $region5
    $region4: #{tpu_custom_call.1} parent=1 // pred_region
      %s20 = ssub.s32 768, 768
      %21 = vsyncadd [#allocation3], %s20
      %s23 = sshll.u32 [#allocation2], 4
      %s24 = int_to_ptr.vmem [resolvable:$true] %s23
      %26 = dma.hbm_to_vmem [thread:$0]  %s0, 768, %s24, [#allocation3]
    $region5: #{tpu_custom_call.1} parent=1 // pred_fallthru
      _
    // Predicated region
    $region6: #{tpu_custom_call.1} parent=1 // pred_check
      _
    $region7: #{tpu_custom_call.1} parent=1 // pred_check_branch
      %28 = sbr.rel (0) target = $region9
    $region8: #{tpu_custom_call.1} parent=1 // pred_region
      %s30 = ssub.s32 768, 768
      %31 = vsyncadd [#allocation6], %s30
      %s33 = sshll.u32 [#allocation5], 4
      %s34 = int_to_ptr.vmem [resolvable:$true] %s33
      %36 = dma.hbm_to_vmem [thread:$0]  %s1, 768, %s34, [#allocation6]
    $region9: #{tpu_custom_call.1} parent=1 // pred_fallthru
      _
    // Predicated region
    $region10: #{tpu_custom_call.1} parent=1 // pred_check
      _
    $region11: #{tpu_custom_call.1} parent=1 // pred_check_branch
      %38 = sbr.rel (0) target = $region13
    $region12: #{tpu_custom_call.1} parent=1 // pred_region
      %s40 = ssub.s32 73728, 73728
      %41 = vsyncadd [#allocation6], %s40
      %s42 = sshll.u32 [#allocation7], 4
      %s43 = int_to_ptr.vmem [resolvable:$true] %s42
      %48 = dma.hbm_to_vmem [thread:$0]  %s2, 73728, %s43, [#allocation6], 768, 768, 48
    $region13: #{tpu_custom_call.1} parent=1 // pred_fallthru
      _
    // Predicated region
    $region14: #{tpu_custom_call.1} parent=1 // pred_check
      _
    $region15: #{tpu_custom_call.1} parent=1 // pred_check_branch
      %50 = sbr.rel (0) target = $region17
    $region16: #{tpu_custom_call.1} parent=1 // pred_region
      %s52 = ssub.s32 73728, 73728
      %53 = vsyncadd [#allocation9], %s52
      %s54 = sshll.u32 [#allocation8], 4
      %s55 = int_to_ptr.vmem [resolvable:$true] %s54
      %60 = dma.hbm_to_vmem [thread:$0]  %s3, 73728, %s55, [#allocation9], 768, 768, 48
    $region17: #{tpu_custom_call.1} parent=1 // pred_fallthru
      _
    // Predicated region
    $region18: #{tpu_custom_call.1} parent=1 // pred_check
      _
    $region19: #{tpu_custom_call.1} parent=1 // pred_check_branch
      %62 = sbr.rel (0) target = $region21
    $region20: #{tpu_custom_call.1} parent=1 // pred_region
      %s64 = ssub.s32 96, 96
      %65 = vsyncadd [#allocation9], %s64
      %s67 = sshll.u32 [#allocation10], 4
      %s68 = int_to_ptr.vmem [resolvable:$true] %s67
      %70 = dma.hbm_to_vmem [thread:$0]  %s4, 96, %s68, [#allocation9]
    $region21: #{tpu_custom_call.1} parent=1 // pred_fallthru
      _
    // Predicated region
    $region22: #{tpu_custom_call.1} parent=1 // pred_check
      _
    $region23: #{tpu_custom_call.1} parent=1 // pred_check_branch
      %72 = sbr.rel (0) target = $region25
    $region24: #{tpu_custom_call.1} parent=1 // pred_region
      %s74 = ssub.s32 96, 96
      %75 = vsyncadd [#allocation12], %s74
      %s77 = sshll.u32 [#allocation11], 4
      %s78 = int_to_ptr.vmem [resolvable:$true] %s77
      %80 = dma.hbm_to_vmem [thread:$0]  %s5, 96, %s78, [#allocation12]
    $region25: #{tpu_custom_call.1} parent=1 // pred_fallthru
      _
    // Predicated region
    $region26: #{tpu_custom_call.1} parent=1 // pred_check
      _
    $region27: #{tpu_custom_call.1} parent=1 // pred_check_branch
      %82 = sbr.rel (0) target = $region29
    $region28: #{tpu_custom_call.1} parent=1 // pred_region
      %s84 = ssub.s32 96, 96
      %85 = vsyncadd [#allocation12], %s84
      %s87 = sshll.u32 [#allocation13], 4
      %s88 = int_to_ptr.vmem [resolvable:$true] %s87
      %90 = dma.hbm_to_vmem [thread:$0]  %s6, 96, %s88, [#allocation12]
    $region29: #{tpu_custom_call.1} parent=1 // pred_fallthru
      _
    // Predicated region
    $region30: #{tpu_custom_call.1} parent=1 // pred_check
      _
    $region31: #{tpu_custom_call.1} parent=1 // pred_check_branch
      %92 = sbr.rel (0) target = $region33
    $region32: #{tpu_custom_call.1} parent=1 // pred_region
      %93 = dma.done [#allocation3], 768
    $region33: #{tpu_custom_call.1} parent=1 // pred_fallthru
      _
    // Predicated region
    $region34: #{tpu_custom_call.1} parent=1 // pred_check
      _
    $region35: #{tpu_custom_call.1} parent=1 // pred_check_branch
      %95 = sbr.rel (0) target = $region37
    $region36: #{tpu_custom_call.1} parent=1 // pred_region
      %96 = dma.done [#allocation6], 768
    $region37: #{tpu_custom_call.1} parent=1 // pred_fallthru
      _
    // Predicated region
    $region38: #{tpu_custom_call.1} parent=1 // pred_check
      _
    $region39: #{tpu_custom_call.1} parent=1 // pred_check_branch
      %98 = sbr.rel (0) target = $region41
    $region40: #{tpu_custom_call.1} parent=1 // pred_region
      %99 = dma.done [#allocation6], 73728
    $region41: #{tpu_custom_call.1} parent=1 // pred_fallthru
      _
    // Predicated region
    $region42: #{tpu_custom_call.1} parent=1 // pred_check
      _
    $region43: #{tpu_custom_call.1} parent=1 // pred_check_branch
      %101 = sbr.rel (0) target = $region45
    $region44: #{tpu_custom_call.1} parent=1 // pred_region
      %102 = dma.done [#allocation9], 73728
    $region45: #{tpu_custom_call.1} parent=1 // pred_fallthru
      _
    // Predicated region
    $region46: #{tpu_custom_call.1} parent=1 // pred_check
      _
    $region47: #{tpu_custom_call.1} parent=1 // pred_check_branch
      %104 = sbr.rel (0) target = $region49
    $region48: #{tpu_custom_call.1} parent=1 // pred_region
      %105 = dma.done [#allocation9], 96
    $region49: #{tpu_custom_call.1} parent=1 // pred_fallthru
      _
    // Predicated region
    $region50: #{tpu_custom_call.1} parent=1 // pred_check
      _
    $region51: #{tpu_custom_call.1} parent=1 // pred_check_branch
      %107 = sbr.rel (0) target = $region53
    $region52: #{tpu_custom_call.1} parent=1 // pred_region
      %108 = dma.done [#allocation12], 96
    $region53: #{tpu_custom_call.1} parent=1 // pred_fallthru
      _
    // Predicated region
    $region54: #{tpu_custom_call.1} parent=1 // pred_check
      _
    $region55: #{tpu_custom_call.1} parent=1 // pred_check_branch
      %110 = sbr.rel (0) target = $region57
    $region56: #{tpu_custom_call.1} parent=1 // pred_region
      %111 = dma.done [#allocation12], 96
    $region57: #{tpu_custom_call.1} parent=1 // pred_fallthru
      _
    %v112 = vld [vmem:[#allocation2] sm:$0xff]
    %v113 = vld [vmem:[#allocation2 + $0x8] sm:$0xff]
    %v114 = vld [vmem:[#allocation2 + $0x10] sm:$0xff]
    %v115 = vld [vmem:[#allocation2 + $0x18] sm:$0xff]
    %v116 = vld [vmem:[#allocation2 + $0x20] sm:$0xff]
    %v117 = vld [vmem:[#allocation2 + $0x28] sm:$0xff]
    %v118 = vld [vmem:[#allocation7] sm:$0xff]
    %v119 = vld [vmem:[#allocation7 + $0x8] sm:$0xff]
    %v120 = vld [vmem:[#allocation7 + $0x10] sm:$0xff]
    %v121 = vld [vmem:[#allocation7 + $0x18] sm:$0xff]
    %v122 = vld [vmem:[#allocation7 + $0x20] sm:$0xff]
    %v123 = vld [vmem:[#allocation7 + $0x28] sm:$0xff]
    %v124 = vld [vmem:[#allocation7 + $0x30] sm:$0xff]
    %v125 = vld [vmem:[#allocation7 + $0x38] sm:$0xff]
    %v126 = vld [vmem:[#allocation7 + $0x40] sm:$0xff]
    %v127 = vld [vmem:[#allocation7 + $0x48] sm:$0xff]
    %v128 = vld [vmem:[#allocation7 + $0x50] sm:$0xff]
    %v129 = vld [vmem:[#allocation7 + $0x58] sm:$0xff]
    %v130 = vld [vmem:[#allocation7 + $0x60] sm:$0xff]
    %v131 = vld [vmem:[#allocation7 + $0x68] sm:$0xff]
    %v132 = vld [vmem:[#allocation7 + $0x70] sm:$0xff]
    %v133 = vld [vmem:[#allocation7 + $0x78] sm:$0xff]
    %v134 = vld [vmem:[#allocation7 + $0x80] sm:$0xff]
    %v135 = vld [vmem:[#allocation7 + $0x88] sm:$0xff]
    %v136 = vld [vmem:[#allocation7 + $0x90] sm:$0xff]
    %v137 = vld [vmem:[#allocation7 + $0x98] sm:$0xff]
    %v138 = vld [vmem:[#allocation7 + $0xa0] sm:$0xff]
    %v139 = vld [vmem:[#allocation7 + $0xa8] sm:$0xff]
    %v140 = vld [vmem:[#allocation7 + $0xb0] sm:$0xff]
    %v141 = vld [vmem:[#allocation7 + $0xb8] sm:$0xff]
    %v142 = vld [vmem:[#allocation7 + $0xc0] sm:$0xff]
    %v143 = vld [vmem:[#allocation7 + $0xc8] sm:$0xff]
    %v144 = vld [vmem:[#allocation7 + $0xd0] sm:$0xff]
    %v145 = vld [vmem:[#allocation7 + $0xd8] sm:$0xff]
    %v146 = vld [vmem:[#allocation7 + $0xe0] sm:$0xff]
    %v147 = vld [vmem:[#allocation7 + $0xe8] sm:$0xff]
    %v148 = vld [vmem:[#allocation7 + $0xf0] sm:$0xff]
    %v149 = vld [vmem:[#allocation7 + $0xf8] sm:$0xff]
    %v150 = vld [vmem:[#allocation7 + $0x100] sm:$0xff]
    %v151 = vld [vmem:[#allocation7 + $0x108] sm:$0xff]
    %v152 = vld [vmem:[#allocation7 + $0x110] sm:$0xff]
    %v153 = vld [vmem:[#allocation7 + $0x118] sm:$0xff]
    %v154 = vld [vmem:[#allocation7 + $0x120] sm:$0xff]
    %v155 = vld [vmem:[#allocation7 + $0x128] sm:$0xff]
    %v156 = vld [vmem:[#allocation7 + $0x130] sm:$0xff]
    %v157 = vld [vmem:[#allocation7 + $0x138] sm:$0xff]
    %v158 = vld [vmem:[#allocation7 + $0x140] sm:$0xff]
    %v159 = vld [vmem:[#allocation7 + $0x148] sm:$0xff]
    %v160 = vld [vmem:[#allocation7 + $0x150] sm:$0xff]
    %v161 = vld [vmem:[#allocation7 + $0x158] sm:$0xff]
    %v162 = vld [vmem:[#allocation7 + $0x160] sm:$0xff]
    %v163 = vld [vmem:[#allocation7 + $0x168] sm:$0xff]
    %v164 = vld [vmem:[#allocation7 + $0x170] sm:$0xff]
    %v165 = vld [vmem:[#allocation7 + $0x178] sm:$0xff]
    %v166 = vld [vmem:[#allocation7 + $0x180] sm:$0xff]
    %v167 = vld [vmem:[#allocation7 + $0x188] sm:$0xff]
    %v168 = vld [vmem:[#allocation7 + $0x190] sm:$0xff]
    %v169 = vld [vmem:[#allocation7 + $0x198] sm:$0xff]
    %v170 = vld [vmem:[#allocation7 + $0x1a0] sm:$0xff]
    %v171 = vld [vmem:[#allocation7 + $0x1a8] sm:$0xff]
    %v172 = vld [vmem:[#allocation7 + $0x1b0] sm:$0xff]
    %v173 = vld [vmem:[#allocation7 + $0x1b8] sm:$0xff]
    %v174 = vld [vmem:[#allocation7 + $0x1c0] sm:$0xff]
    %v175 = vld [vmem:[#allocation7 + $0x1c8] sm:$0xff]
    %v176 = vld [vmem:[#allocation7 + $0x1d0] sm:$0xff]
    %v177 = vld [vmem:[#allocation7 + $0x1d8] sm:$0xff]
    %v178 = vld [vmem:[#allocation7 + $0x1e0] sm:$0xff]
    %v179 = vld [vmem:[#allocation7 + $0x1e8] sm:$0xff]
    %v180 = vld [vmem:[#allocation7 + $0x1f0] sm:$0xff]
    %v181 = vld [vmem:[#allocation7 + $0x1f8] sm:$0xff]
    %v182 = vld [vmem:[#allocation7 + $0x200] sm:$0xff]
    %v183 = vld [vmem:[#allocation7 + $0x208] sm:$0xff]
    %v184 = vld [vmem:[#allocation7 + $0x210] sm:$0xff]
    %v185 = vld [vmem:[#allocation7 + $0x218] sm:$0xff]
    %v186 = vld [vmem:[#allocation7 + $0x220] sm:$0xff]
    %v187 = vld [vmem:[#allocation7 + $0x228] sm:$0xff]
    %v188 = vld [vmem:[#allocation7 + $0x230] sm:$0xff]
    %v189 = vld [vmem:[#allocation7 + $0x238] sm:$0xff]
    %v190 = vld [vmem:[#allocation7 + $0x240] sm:$0xff]
    %v191 = vld [vmem:[#allocation7 + $0x248] sm:$0xff]
    %v192 = vld [vmem:[#allocation7 + $0x250] sm:$0xff]
    %v193 = vld [vmem:[#allocation7 + $0x258] sm:$0xff]
    %v194 = vld [vmem:[#allocation7 + $0x260] sm:$0xff]
    %v195 = vld [vmem:[#allocation7 + $0x268] sm:$0xff]
    %v196 = vld [vmem:[#allocation7 + $0x270] sm:$0xff]
    %v197 = vld [vmem:[#allocation7 + $0x278] sm:$0xff]
    %v198 = vld [vmem:[#allocation7 + $0x280] sm:$0xff]
    %v199 = vld [vmem:[#allocation7 + $0x288] sm:$0xff]
    %v200 = vld [vmem:[#allocation7 + $0x290] sm:$0xff]
    %v201 = vld [vmem:[#allocation7 + $0x298] sm:$0xff]
    %v202 = vld [vmem:[#allocation7 + $0x2a0] sm:$0xff]
    %v203 = vld [vmem:[#allocation7 + $0x2a8] sm:$0xff]
    %v204 = vld [vmem:[#allocation7 + $0x2b0] sm:$0xff]
    %v205 = vld [vmem:[#allocation7 + $0x2b8] sm:$0xff]
    %v206 = vld [vmem:[#allocation7 + $0x2c0] sm:$0xff]
    %v207 = vld [vmem:[#allocation7 + $0x2c8] sm:$0xff]
    %v208 = vld [vmem:[#allocation7 + $0x2d0] sm:$0xff]
    %v209 = vld [vmem:[#allocation7 + $0x2d8] sm:$0xff]
    %v210 = vld [vmem:[#allocation7 + $0x2e0] sm:$0xff]
    %v211 = vld [vmem:[#allocation7 + $0x2e8] sm:$0xff]
    %v212 = vld [vmem:[#allocation7 + $0x2f0] sm:$0xff]
    %v213 = vld [vmem:[#allocation7 + $0x2f8] sm:$0xff]
    %v214 = vld [vmem:[#allocation7 + $0x300] sm:$0xff]
    %v215 = vld [vmem:[#allocation7 + $0x308] sm:$0xff]
    %v216 = vld [vmem:[#allocation7 + $0x310] sm:$0xff]
    %v217 = vld [vmem:[#allocation7 + $0x318] sm:$0xff]
    %v218 = vld [vmem:[#allocation7 + $0x320] sm:$0xff]
    %v219 = vld [vmem:[#allocation7 + $0x328] sm:$0xff]
    %v220 = vld [vmem:[#allocation7 + $0x330] sm:$0xff]
    %v221 = vld [vmem:[#allocation7 + $0x338] sm:$0xff]
    %v222 = vld [vmem:[#allocation7 + $0x340] sm:$0xff]
    %v223 = vld [vmem:[#allocation7 + $0x348] sm:$0xff]
    %v224 = vld [vmem:[#allocation7 + $0x350] sm:$0xff]
    %v225 = vld [vmem:[#allocation7 + $0x358] sm:$0xff]
    %v226 = vld [vmem:[#allocation7 + $0x360] sm:$0xff]
    %v227 = vld [vmem:[#allocation7 + $0x368] sm:$0xff]
    %v228 = vld [vmem:[#allocation7 + $0x370] sm:$0xff]
    %v229 = vld [vmem:[#allocation7 + $0x378] sm:$0xff]
    %v230 = vld [vmem:[#allocation7 + $0x380] sm:$0xff]
    %v231 = vld [vmem:[#allocation7 + $0x388] sm:$0xff]
    %v232 = vld [vmem:[#allocation7 + $0x390] sm:$0xff]
    %v233 = vld [vmem:[#allocation7 + $0x398] sm:$0xff]
    %v234 = vld [vmem:[#allocation7 + $0x3a0] sm:$0xff]
    %v235 = vld [vmem:[#allocation7 + $0x3a8] sm:$0xff]
    %v236 = vld [vmem:[#allocation7 + $0x3b0] sm:$0xff]
    %v237 = vld [vmem:[#allocation7 + $0x3b8] sm:$0xff]
    %v238 = vld [vmem:[#allocation7 + $0x3c0] sm:$0xff]
    %v239 = vld [vmem:[#allocation7 + $0x3c8] sm:$0xff]
    %v240 = vld [vmem:[#allocation7 + $0x3d0] sm:$0xff]
    %v241 = vld [vmem:[#allocation7 + $0x3d8] sm:$0xff]
    %v242 = vld [vmem:[#allocation7 + $0x3e0] sm:$0xff]
    %v243 = vld [vmem:[#allocation7 + $0x3e8] sm:$0xff]
    %v244 = vld [vmem:[#allocation7 + $0x3f0] sm:$0xff]
    %v245 = vld [vmem:[#allocation7 + $0x3f8] sm:$0xff]
    %v246 = vld [vmem:[#allocation7 + $0x400] sm:$0xff]
    %v247 = vld [vmem:[#allocation7 + $0x408] sm:$0xff]
    %v248 = vld [vmem:[#allocation7 + $0x410] sm:$0xff]
    %v249 = vld [vmem:[#allocation7 + $0x418] sm:$0xff]
    %v250 = vld [vmem:[#allocation7 + $0x420] sm:$0xff]
    %v251 = vld [vmem:[#allocation7 + $0x428] sm:$0xff]
    %v252 = vld [vmem:[#allocation7 + $0x430] sm:$0xff]
    %v253 = vld [vmem:[#allocation7 + $0x438] sm:$0xff]
    %v254 = vld [vmem:[#allocation7 + $0x440] sm:$0xff]
    %v255 = vld [vmem:[#allocation7 + $0x448] sm:$0xff]
    %v256 = vld [vmem:[#allocation7 + $0x450] sm:$0xff]
    %v257 = vld [vmem:[#allocation7 + $0x458] sm:$0xff]
    %v258 = vld [vmem:[#allocation7 + $0x460] sm:$0xff]
    %v259 = vld [vmem:[#allocation7 + $0x468] sm:$0xff]
    %v260 = vld [vmem:[#allocation7 + $0x470] sm:$0xff]
    %v261 = vld [vmem:[#allocation7 + $0x478] sm:$0xff]
    %v262 = vld [vmem:[#allocation7 + $0x480] sm:$0xff]
    %v263 = vld [vmem:[#allocation7 + $0x488] sm:$0xff]
    %v264 = vld [vmem:[#allocation7 + $0x490] sm:$0xff]
    %v265 = vld [vmem:[#allocation7 + $0x498] sm:$0xff]
    %v266 = vld [vmem:[#allocation7 + $0x4a0] sm:$0xff]
    %v267 = vld [vmem:[#allocation7 + $0x4a8] sm:$0xff]
    %v268 = vld [vmem:[#allocation7 + $0x4b0] sm:$0xff]
    %v269 = vld [vmem:[#allocation7 + $0x4b8] sm:$0xff]
    %v270 = vld [vmem:[#allocation7 + $0x4c0] sm:$0xff]
    %v271 = vld [vmem:[#allocation7 + $0x4c8] sm:$0xff]
    %v272 = vld [vmem:[#allocation7 + $0x4d0] sm:$0xff]
    %v273 = vld [vmem:[#allocation7 + $0x4d8] sm:$0xff]
    %v274 = vld [vmem:[#allocation7 + $0x4e0] sm:$0xff]
    %v275 = vld [vmem:[#allocation7 + $0x4e8] sm:$0xff]
    %v276 = vld [vmem:[#allocation7 + $0x4f0] sm:$0xff]
    %v277 = vld [vmem:[#allocation7 + $0x4f8] sm:$0xff]
    %v278 = vld [vmem:[#allocation7 + $0x500] sm:$0xff]
    %v279 = vld [vmem:[#allocation7 + $0x508] sm:$0xff]
    %v280 = vld [vmem:[#allocation7 + $0x510] sm:$0xff]
    %v281 = vld [vmem:[#allocation7 + $0x518] sm:$0xff]
    %v282 = vld [vmem:[#allocation7 + $0x520] sm:$0xff]
    %v283 = vld [vmem:[#allocation7 + $0x528] sm:$0xff]
    %v284 = vld [vmem:[#allocation7 + $0x530] sm:$0xff]
    %v285 = vld [vmem:[#allocation7 + $0x538] sm:$0xff]
    %v286 = vld [vmem:[#allocation7 + $0x540] sm:$0xff]
    %v287 = vld [vmem:[#allocation7 + $0x548] sm:$0xff]
    %v288 = vld [vmem:[#allocation7 + $0x550] sm:$0xff]
    %v289 = vld [vmem:[#allocation7 + $0x558] sm:$0xff]
    %v290 = vld [vmem:[#allocation7 + $0x560] sm:$0xff]
    %v291 = vld [vmem:[#allocation7 + $0x568] sm:$0xff]
    %v292 = vld [vmem:[#allocation7 + $0x570] sm:$0xff]
    %v293 = vld [vmem:[#allocation7 + $0x578] sm:$0xff]
    %v294 = vld [vmem:[#allocation7 + $0x580] sm:$0xff]
    %v295 = vld [vmem:[#allocation7 + $0x588] sm:$0xff]
    %v296 = vld [vmem:[#allocation7 + $0x590] sm:$0xff]
    %v297 = vld [vmem:[#allocation7 + $0x598] sm:$0xff]
    %v298 = vld [vmem:[#allocation7 + $0x5a0] sm:$0xff]
    %v299 = vld [vmem:[#allocation7 + $0x5a8] sm:$0xff]
    %v300 = vld [vmem:[#allocation7 + $0x5b0] sm:$0xff]
    %v301 = vld [vmem:[#allocation7 + $0x5b8] sm:$0xff]
    %v302 = vld [vmem:[#allocation7 + $0x5c0] sm:$0xff]
    %v303 = vld [vmem:[#allocation7 + $0x5c8] sm:$0xff]
    %v304 = vld [vmem:[#allocation7 + $0x5d0] sm:$0xff]
    %v305 = vld [vmem:[#allocation7 + $0x5d8] sm:$0xff]
    %v306 = vld [vmem:[#allocation7 + $0x5e0] sm:$0xff]
    %v307 = vld [vmem:[#allocation7 + $0x5e8] sm:$0xff]
    %v308 = vld [vmem:[#allocation7 + $0x5f0] sm:$0xff]
    %v309 = vld [vmem:[#allocation7 + $0x5f8] sm:$0xff]
    %v310 = vld [vmem:[#allocation7 + $0x600] sm:$0xff]
    %v311 = vld [vmem:[#allocation7 + $0x608] sm:$0xff]
    %v312 = vld [vmem:[#allocation7 + $0x610] sm:$0xff]
    %v313 = vld [vmem:[#allocation7 + $0x618] sm:$0xff]
    %v314 = vld [vmem:[#allocation7 + $0x620] sm:$0xff]
    %v315 = vld [vmem:[#allocation7 + $0x628] sm:$0xff]
    %v316 = vld [vmem:[#allocation7 + $0x630] sm:$0xff]
    %v317 = vld [vmem:[#allocation7 + $0x638] sm:$0xff]
    %v318 = vld [vmem:[#allocation7 + $0x640] sm:$0xff]
    %v319 = vld [vmem:[#allocation7 + $0x648] sm:$0xff]
    %v320 = vld [vmem:[#allocation7 + $0x650] sm:$0xff]
    %v321 = vld [vmem:[#allocation7 + $0x658] sm:$0xff]
    %v322 = vld [vmem:[#allocation7 + $0x660] sm:$0xff]
    %v323 = vld [vmem:[#allocation7 + $0x668] sm:$0xff]
    %v324 = vld [vmem:[#allocation7 + $0x670] sm:$0xff]
    %v325 = vld [vmem:[#allocation7 + $0x678] sm:$0xff]
    %v326 = vld [vmem:[#allocation7 + $0x680] sm:$0xff]
    %v327 = vld [vmem:[#allocation7 + $0x688] sm:$0xff]
    %v328 = vld [vmem:[#allocation7 + $0x690] sm:$0xff]
    %v329 = vld [vmem:[#allocation7 + $0x698] sm:$0xff]
    %v330 = vld [vmem:[#allocation7 + $0x6a0] sm:$0xff]
    %v331 = vld [vmem:[#allocation7 + $0x6a8] sm:$0xff]
    %v332 = vld [vmem:[#allocation7 + $0x6b0] sm:$0xff]
    %v333 = vld [vmem:[#allocation7 + $0x6b8] sm:$0xff]
    %v334 = vld [vmem:[#allocation7 + $0x6c0] sm:$0xff]
    %v335 = vld [vmem:[#allocation7 + $0x6c8] sm:$0xff]
    %v336 = vld [vmem:[#allocation7 + $0x6d0] sm:$0xff]
    %v337 = vld [vmem:[#allocation7 + $0x6d8] sm:$0xff]
    %v338 = vld [vmem:[#allocation7 + $0x6e0] sm:$0xff]
    %v339 = vld [vmem:[#allocation7 + $0x6e8] sm:$0xff]
    %v340 = vld [vmem:[#allocation7 + $0x6f0] sm:$0xff]
    %v341 = vld [vmem:[#allocation7 + $0x6f8] sm:$0xff]
    %v342 = vld [vmem:[#allocation7 + $0x700] sm:$0xff]
    %v343 = vld [vmem:[#allocation7 + $0x708] sm:$0xff]
    %v344 = vld [vmem:[#allocation7 + $0x710] sm:$0xff]
    %v345 = vld [vmem:[#allocation7 + $0x718] sm:$0xff]
    %v346 = vld [vmem:[#allocation7 + $0x720] sm:$0xff]
    %v347 = vld [vmem:[#allocation7 + $0x728] sm:$0xff]
    %v348 = vld [vmem:[#allocation7 + $0x730] sm:$0xff]
    %v349 = vld [vmem:[#allocation7 + $0x738] sm:$0xff]
    %v350 = vld [vmem:[#allocation7 + $0x740] sm:$0xff]
    %v351 = vld [vmem:[#allocation7 + $0x748] sm:$0xff]
    %v352 = vld [vmem:[#allocation7 + $0x750] sm:$0xff]
    %v353 = vld [vmem:[#allocation7 + $0x758] sm:$0xff]
    %v354 = vld [vmem:[#allocation7 + $0x760] sm:$0xff]
    %v355 = vld [vmem:[#allocation7 + $0x768] sm:$0xff]
    %v356 = vld [vmem:[#allocation7 + $0x770] sm:$0xff]
    %v357 = vld [vmem:[#allocation7 + $0x778] sm:$0xff]
    %v358 = vld [vmem:[#allocation7 + $0x780] sm:$0xff]
    %v359 = vld [vmem:[#allocation7 + $0x788] sm:$0xff]
    %v360 = vld [vmem:[#allocation7 + $0x790] sm:$0xff]
    %v361 = vld [vmem:[#allocation7 + $0x798] sm:$0xff]
    %v362 = vld [vmem:[#allocation7 + $0x7a0] sm:$0xff]
    %v363 = vld [vmem:[#allocation7 + $0x7a8] sm:$0xff]
    %v364 = vld [vmem:[#allocation7 + $0x7b0] sm:$0xff]
    %v365 = vld [vmem:[#allocation7 + $0x7b8] sm:$0xff]
    %v366 = vld [vmem:[#allocation7 + $0x7c0] sm:$0xff]
    %v367 = vld [vmem:[#allocation7 + $0x7c8] sm:$0xff]
    %v368 = vld [vmem:[#allocation7 + $0x7d0] sm:$0xff]
    %v369 = vld [vmem:[#allocation7 + $0x7d8] sm:$0xff]
    %v370 = vld [vmem:[#allocation7 + $0x7e0] sm:$0xff]
    %v371 = vld [vmem:[#allocation7 + $0x7e8] sm:$0xff]
    %v372 = vld [vmem:[#allocation7 + $0x7f0] sm:$0xff]
    %v373 = vld [vmem:[#allocation7 + $0x7f8] sm:$0xff]
    %v374 = vld [vmem:[#allocation7 + $0x800] sm:$0xff]
    %v375 = vld [vmem:[#allocation7 + $0x808] sm:$0xff]
    %v376 = vld [vmem:[#allocation7 + $0x810] sm:$0xff]
    %v377 = vld [vmem:[#allocation7 + $0x818] sm:$0xff]
    %v378 = vld [vmem:[#allocation7 + $0x820] sm:$0xff]
    %v379 = vld [vmem:[#allocation7 + $0x828] sm:$0xff]
    %v380 = vld [vmem:[#allocation7 + $0x830] sm:$0xff]
    %v381 = vld [vmem:[#allocation7 + $0x838] sm:$0xff]
    %v382 = vld [vmem:[#allocation7 + $0x840] sm:$0xff]
    %v383 = vld [vmem:[#allocation7 + $0x848] sm:$0xff]
    %v384 = vld [vmem:[#allocation7 + $0x850] sm:$0xff]
    %v385 = vld [vmem:[#allocation7 + $0x858] sm:$0xff]
    %v386 = vld [vmem:[#allocation7 + $0x860] sm:$0xff]
    %v387 = vld [vmem:[#allocation7 + $0x868] sm:$0xff]
    %v388 = vld [vmem:[#allocation7 + $0x870] sm:$0xff]
    %v389 = vld [vmem:[#allocation7 + $0x878] sm:$0xff]
    %v390 = vld [vmem:[#allocation7 + $0x880] sm:$0xff]
    %v391 = vld [vmem:[#allocation7 + $0x888] sm:$0xff]
    %v392 = vld [vmem:[#allocation7 + $0x890] sm:$0xff]
    %v393 = vld [vmem:[#allocation7 + $0x898] sm:$0xff]
    %v394 = vld [vmem:[#allocation7 + $0x8a0] sm:$0xff]
    %v395 = vld [vmem:[#allocation7 + $0x8a8] sm:$0xff]
    %v396 = vld [vmem:[#allocation7 + $0x8b0] sm:$0xff]
    %v397 = vld [vmem:[#allocation7 + $0x8b8] sm:$0xff]
    %v398 = vld [vmem:[#allocation7 + $0x8c0] sm:$0xff]
    %v399 = vld [vmem:[#allocation7 + $0x8c8] sm:$0xff]
    %v400 = vld [vmem:[#allocation7 + $0x8d0] sm:$0xff]
    %v401 = vld [vmem:[#allocation7 + $0x8d8] sm:$0xff]
    %v402 = vld [vmem:[#allocation7 + $0x8e0] sm:$0xff]
    %v403 = vld [vmem:[#allocation7 + $0x8e8] sm:$0xff]
    %v404 = vld [vmem:[#allocation7 + $0x8f0] sm:$0xff]
    %v405 = vld [vmem:[#allocation7 + $0x8f8] sm:$0xff]
    %v406 = vld [vmem:[#allocation7 + $0x900] sm:$0xff]
    %v407 = vld [vmem:[#allocation7 + $0x908] sm:$0xff]
    %v408 = vld [vmem:[#allocation7 + $0x910] sm:$0xff]
    %v409 = vld [vmem:[#allocation7 + $0x918] sm:$0xff]
    %v410 = vld [vmem:[#allocation7 + $0x920] sm:$0xff]
    %v411 = vld [vmem:[#allocation7 + $0x928] sm:$0xff]
    %v412 = vld [vmem:[#allocation7 + $0x930] sm:$0xff]
    %v413 = vld [vmem:[#allocation7 + $0x938] sm:$0xff]
    %v414 = vld [vmem:[#allocation7 + $0x940] sm:$0xff]
    %v415 = vld [vmem:[#allocation7 + $0x948] sm:$0xff]
    %v416 = vld [vmem:[#allocation7 + $0x950] sm:$0xff]
    %v417 = vld [vmem:[#allocation7 + $0x958] sm:$0xff]
    %v418 = vld [vmem:[#allocation7 + $0x960] sm:$0xff]
    %v419 = vld [vmem:[#allocation7 + $0x968] sm:$0xff]
    %v420 = vld [vmem:[#allocation7 + $0x970] sm:$0xff]
    %v421 = vld [vmem:[#allocation7 + $0x978] sm:$0xff]
    %v422 = vld [vmem:[#allocation7 + $0x980] sm:$0xff]
    %v423 = vld [vmem:[#allocation7 + $0x988] sm:$0xff]
    %v424 = vld [vmem:[#allocation7 + $0x990] sm:$0xff]
    %v425 = vld [vmem:[#allocation7 + $0x998] sm:$0xff]
    %v426 = vld [vmem:[#allocation7 + $0x9a0] sm:$0xff]
    %v427 = vld [vmem:[#allocation7 + $0x9a8] sm:$0xff]
    %v428 = vld [vmem:[#allocation7 + $0x9b0] sm:$0xff]
    %v429 = vld [vmem:[#allocation7 + $0x9b8] sm:$0xff]
    %v430 = vld [vmem:[#allocation7 + $0x9c0] sm:$0xff]
    %v431 = vld [vmem:[#allocation7 + $0x9c8] sm:$0xff]
    %v432 = vld [vmem:[#allocation7 + $0x9d0] sm:$0xff]
    %v433 = vld [vmem:[#allocation7 + $0x9d8] sm:$0xff]
    %v434 = vld [vmem:[#allocation7 + $0x9e0] sm:$0xff]
    %v435 = vld [vmem:[#allocation7 + $0x9e8] sm:$0xff]
    %v436 = vld [vmem:[#allocation7 + $0x9f0] sm:$0xff]
    %v437 = vld [vmem:[#allocation7 + $0x9f8] sm:$0xff]
    %v438 = vld [vmem:[#allocation7 + $0xa00] sm:$0xff]
    %v439 = vld [vmem:[#allocation7 + $0xa08] sm:$0xff]
    %v440 = vld [vmem:[#allocation7 + $0xa10] sm:$0xff]
    %v441 = vld [vmem:[#allocation7 + $0xa18] sm:$0xff]
    %v442 = vld [vmem:[#allocation7 + $0xa20] sm:$0xff]
    %v443 = vld [vmem:[#allocation7 + $0xa28] sm:$0xff]
    %v444 = vld [vmem:[#allocation7 + $0xa30] sm:$0xff]
    %v445 = vld [vmem:[#allocation7 + $0xa38] sm:$0xff]
    %v446 = vld [vmem:[#allocation7 + $0xa40] sm:$0xff]
    %v447 = vld [vmem:[#allocation7 + $0xa48] sm:$0xff]
    %v448 = vld [vmem:[#allocation7 + $0xa50] sm:$0xff]
    %v449 = vld [vmem:[#allocation7 + $0xa58] sm:$0xff]
    %v450 = vld [vmem:[#allocation7 + $0xa60] sm:$0xff]
    %v451 = vld [vmem:[#allocation7 + $0xa68] sm:$0xff]
    %v452 = vld [vmem:[#allocation7 + $0xa70] sm:$0xff]
    %v453 = vld [vmem:[#allocation7 + $0xa78] sm:$0xff]
    %v454 = vld [vmem:[#allocation7 + $0xa80] sm:$0xff]
    %v455 = vld [vmem:[#allocation7 + $0xa88] sm:$0xff]
    %v456 = vld [vmem:[#allocation7 + $0xa90] sm:$0xff]
    %v457 = vld [vmem:[#allocation7 + $0xa98] sm:$0xff]
    %v458 = vld [vmem:[#allocation7 + $0xaa0] sm:$0xff]
    %v459 = vld [vmem:[#allocation7 + $0xaa8] sm:$0xff]
    %v460 = vld [vmem:[#allocation7 + $0xab0] sm:$0xff]
    %v461 = vld [vmem:[#allocation7 + $0xab8] sm:$0xff]
    %v462 = vld [vmem:[#allocation7 + $0xac0] sm:$0xff]
    %v463 = vld [vmem:[#allocation7 + $0xac8] sm:$0xff]
    %v464 = vld [vmem:[#allocation7 + $0xad0] sm:$0xff]
    %v465 = vld [vmem:[#allocation7 + $0xad8] sm:$0xff]
    %v466 = vld [vmem:[#allocation7 + $0xae0] sm:$0xff]
    %v467 = vld [vmem:[#allocation7 + $0xae8] sm:$0xff]
    %v468 = vld [vmem:[#allocation7 + $0xaf0] sm:$0xff]
    %v469 = vld [vmem:[#allocation7 + $0xaf8] sm:$0xff]
    %v470 = vld [vmem:[#allocation7 + $0xb00] sm:$0xff]
    %v471 = vld [vmem:[#allocation7 + $0xb08] sm:$0xff]
    %v472 = vld [vmem:[#allocation7 + $0xb10] sm:$0xff]
    %v473 = vld [vmem:[#allocation7 + $0xb18] sm:$0xff]
    %v474 = vld [vmem:[#allocation7 + $0xb20] sm:$0xff]
    %v475 = vld [vmem:[#allocation7 + $0xb28] sm:$0xff]
    %v476 = vld [vmem:[#allocation7 + $0xb30] sm:$0xff]
    %v477 = vld [vmem:[#allocation7 + $0xb38] sm:$0xff]
    %v478 = vld [vmem:[#allocation7 + $0xb40] sm:$0xff]
    %v479 = vld [vmem:[#allocation7 + $0xb48] sm:$0xff]
    %v480 = vld [vmem:[#allocation7 + $0xb50] sm:$0xff]
    %v481 = vld [vmem:[#allocation7 + $0xb58] sm:$0xff]
    %v482 = vld [vmem:[#allocation7 + $0xb60] sm:$0xff]
    %v483 = vld [vmem:[#allocation7 + $0xb68] sm:$0xff]
    %v484 = vld [vmem:[#allocation7 + $0xb70] sm:$0xff]
    %v485 = vld [vmem:[#allocation7 + $0xb78] sm:$0xff]
    %v486 = vld [vmem:[#allocation7 + $0xb80] sm:$0xff]
    %v487 = vld [vmem:[#allocation7 + $0xb88] sm:$0xff]
    %v488 = vld [vmem:[#allocation7 + $0xb90] sm:$0xff]
    %v489 = vld [vmem:[#allocation7 + $0xb98] sm:$0xff]
    %v490 = vld [vmem:[#allocation7 + $0xba0] sm:$0xff]
    %v491 = vld [vmem:[#allocation7 + $0xba8] sm:$0xff]
    %v492 = vld [vmem:[#allocation7 + $0xbb0] sm:$0xff]
    %v493 = vld [vmem:[#allocation7 + $0xbb8] sm:$0xff]
    %v494 = vld [vmem:[#allocation7 + $0xbc0] sm:$0xff]
    %v495 = vld [vmem:[#allocation7 + $0xbc8] sm:$0xff]
    %v496 = vld [vmem:[#allocation7 + $0xbd0] sm:$0xff]
    %v497 = vld [vmem:[#allocation7 + $0xbd8] sm:$0xff]
    %v498 = vld [vmem:[#allocation7 + $0xbe0] sm:$0xff]
    %v499 = vld [vmem:[#allocation7 + $0xbe8] sm:$0xff]
    %v500 = vld [vmem:[#allocation7 + $0xbf0] sm:$0xff]
    %v501 = vld [vmem:[#allocation7 + $0xbf8] sm:$0xff]
    %v502 = vld [vmem:[#allocation7 + $0xc00] sm:$0xff]
    %v503 = vld [vmem:[#allocation7 + $0xc08] sm:$0xff]
    %v504 = vld [vmem:[#allocation7 + $0xc10] sm:$0xff]
    %v505 = vld [vmem:[#allocation7 + $0xc18] sm:$0xff]
    %v506 = vld [vmem:[#allocation7 + $0xc20] sm:$0xff]
    %v507 = vld [vmem:[#allocation7 + $0xc28] sm:$0xff]
    %v508 = vld [vmem:[#allocation7 + $0xc30] sm:$0xff]
    %v509 = vld [vmem:[#allocation7 + $0xc38] sm:$0xff]
    %v510 = vld [vmem:[#allocation7 + $0xc40] sm:$0xff]
    %v511 = vld [vmem:[#allocation7 + $0xc48] sm:$0xff]
    %v512 = vld [vmem:[#allocation7 + $0xc50] sm:$0xff]
    %v513 = vld [vmem:[#allocation7 + $0xc58] sm:$0xff]
    %v514 = vld [vmem:[#allocation7 + $0xc60] sm:$0xff]
    %v515 = vld [vmem:[#allocation7 + $0xc68] sm:$0xff]
    %v516 = vld [vmem:[#allocation7 + $0xc70] sm:$0xff]
    %v517 = vld [vmem:[#allocation7 + $0xc78] sm:$0xff]
    %v518 = vld [vmem:[#allocation7 + $0xc80] sm:$0xff]
    %v519 = vld [vmem:[#allocation7 + $0xc88] sm:$0xff]
    %v520 = vld [vmem:[#allocation7 + $0xc90] sm:$0xff]
    %v521 = vld [vmem:[#allocation7 + $0xc98] sm:$0xff]
    %v522 = vld [vmem:[#allocation7 + $0xca0] sm:$0xff]
    %v523 = vld [vmem:[#allocation7 + $0xca8] sm:$0xff]
    %v524 = vld [vmem:[#allocation7 + $0xcb0] sm:$0xff]
    %v525 = vld [vmem:[#allocation7 + $0xcb8] sm:$0xff]
    %v526 = vld [vmem:[#allocation7 + $0xcc0] sm:$0xff]
    %v527 = vld [vmem:[#allocation7 + $0xcc8] sm:$0xff]
    %v528 = vld [vmem:[#allocation7 + $0xcd0] sm:$0xff]
    %v529 = vld [vmem:[#allocation7 + $0xcd8] sm:$0xff]
    %v530 = vld [vmem:[#allocation7 + $0xce0] sm:$0xff]
    %v531 = vld [vmem:[#allocation7 + $0xce8] sm:$0xff]
    %v532 = vld [vmem:[#allocation7 + $0xcf0] sm:$0xff]
    %v533 = vld [vmem:[#allocation7 + $0xcf8] sm:$0xff]
    %v534 = vld [vmem:[#allocation7 + $0xd00] sm:$0xff]
    %v535 = vld [vmem:[#allocation7 + $0xd08] sm:$0xff]
    %v536 = vld [vmem:[#allocation7 + $0xd10] sm:$0xff]
    %v537 = vld [vmem:[#allocation7 + $0xd18] sm:$0xff]
    %v538 = vld [vmem:[#allocation7 + $0xd20] sm:$0xff]
    %v539 = vld [vmem:[#allocation7 + $0xd28] sm:$0xff]
    %v540 = vld [vmem:[#allocation7 + $0xd30] sm:$0xff]
    %v541 = vld [vmem:[#allocation7 + $0xd38] sm:$0xff]
    %v542 = vld [vmem:[#allocation7 + $0xd40] sm:$0xff]
    %v543 = vld [vmem:[#allocation7 + $0xd48] sm:$0xff]
    %v544 = vld [vmem:[#allocation7 + $0xd50] sm:$0xff]
    %v545 = vld [vmem:[#allocation7 + $0xd58] sm:$0xff]
    %v546 = vld [vmem:[#allocation7 + $0xd60] sm:$0xff]
    %v547 = vld [vmem:[#allocation7 + $0xd68] sm:$0xff]
    %v548 = vld [vmem:[#allocation7 + $0xd70] sm:$0xff]
    %v549 = vld [vmem:[#allocation7 + $0xd78] sm:$0xff]
    %v550 = vld [vmem:[#allocation7 + $0xd80] sm:$0xff]
    %v551 = vld [vmem:[#allocation7 + $0xd88] sm:$0xff]
    %v552 = vld [vmem:[#allocation7 + $0xd90] sm:$0xff]
    %v553 = vld [vmem:[#allocation7 + $0xd98] sm:$0xff]
    %v554 = vld [vmem:[#allocation7 + $0xda0] sm:$0xff]
    %v555 = vld [vmem:[#allocation7 + $0xda8] sm:$0xff]
    %v556 = vld [vmem:[#allocation7 + $0xdb0] sm:$0xff]
    %v557 = vld [vmem:[#allocation7 + $0xdb8] sm:$0xff]
    %v558 = vld [vmem:[#allocation7 + $0xdc0] sm:$0xff]
    %v559 = vld [vmem:[#allocation7 + $0xdc8] sm:$0xff]
    %v560 = vld [vmem:[#allocation7 + $0xdd0] sm:$0xff]
    %v561 = vld [vmem:[#allocation7 + $0xdd8] sm:$0xff]
    %v562 = vld [vmem:[#allocation7 + $0xde0] sm:$0xff]
    %v563 = vld [vmem:[#allocation7 + $0xde8] sm:$0xff]
    %v564 = vld [vmem:[#allocation7 + $0xdf0] sm:$0xff]
    %v565 = vld [vmem:[#allocation7 + $0xdf8] sm:$0xff]
    %v566 = vld [vmem:[#allocation7 + $0xe00] sm:$0xff]
    %v567 = vld [vmem:[#allocation7 + $0xe08] sm:$0xff]
    %v568 = vld [vmem:[#allocation7 + $0xe10] sm:$0xff]
    %v569 = vld [vmem:[#allocation7 + $0xe18] sm:$0xff]
    %v570 = vld [vmem:[#allocation7 + $0xe20] sm:$0xff]
    %v571 = vld [vmem:[#allocation7 + $0xe28] sm:$0xff]
    %v572 = vld [vmem:[#allocation7 + $0xe30] sm:$0xff]
    %v573 = vld [vmem:[#allocation7 + $0xe38] sm:$0xff]
    %v574 = vld [vmem:[#allocation7 + $0xe40] sm:$0xff]
    %v575 = vld [vmem:[#allocation7 + $0xe48] sm:$0xff]
    %v576 = vld [vmem:[#allocation7 + $0xe50] sm:$0xff]
    %v577 = vld [vmem:[#allocation7 + $0xe58] sm:$0xff]
    %v578 = vld [vmem:[#allocation7 + $0xe60] sm:$0xff]
    %v579 = vld [vmem:[#allocation7 + $0xe68] sm:$0xff]
    %v580 = vld [vmem:[#allocation7 + $0xe70] sm:$0xff]
    %v581 = vld [vmem:[#allocation7 + $0xe78] sm:$0xff]
    %v582 = vld [vmem:[#allocation7 + $0xe80] sm:$0xff]
    %v583 = vld [vmem:[#allocation7 + $0xe88] sm:$0xff]
    %v584 = vld [vmem:[#allocation7 + $0xe90] sm:$0xff]
    %v585 = vld [vmem:[#allocation7 + $0xe98] sm:$0xff]
    %v586 = vld [vmem:[#allocation7 + $0xea0] sm:$0xff]
    %v587 = vld [vmem:[#allocation7 + $0xea8] sm:$0xff]
    %v588 = vld [vmem:[#allocation7 + $0xeb0] sm:$0xff]
    %v589 = vld [vmem:[#allocation7 + $0xeb8] sm:$0xff]
    %v590 = vld [vmem:[#allocation7 + $0xec0] sm:$0xff]
    %v591 = vld [vmem:[#allocation7 + $0xec8] sm:$0xff]
    %v592 = vld [vmem:[#allocation7 + $0xed0] sm:$0xff]
    %v593 = vld [vmem:[#allocation7 + $0xed8] sm:$0xff]
    %v594 = vld [vmem:[#allocation7 + $0xee0] sm:$0xff]
    %v595 = vld [vmem:[#allocation7 + $0xee8] sm:$0xff]
    %v596 = vld [vmem:[#allocation7 + $0xef0] sm:$0xff]
    %v597 = vld [vmem:[#allocation7 + $0xef8] sm:$0xff]
    %v598 = vld [vmem:[#allocation7 + $0xf00] sm:$0xff]
    %v599 = vld [vmem:[#allocation7 + $0xf08] sm:$0xff]
    %v600 = vld [vmem:[#allocation7 + $0xf10] sm:$0xff]
    %v601 = vld [vmem:[#allocation7 + $0xf18] sm:$0xff]
    %v602 = vld [vmem:[#allocation7 + $0xf20] sm:$0xff]
    %v603 = vld [vmem:[#allocation7 + $0xf28] sm:$0xff]
    %v604 = vld [vmem:[#allocation7 + $0xf30] sm:$0xff]
    %v605 = vld [vmem:[#allocation7 + $0xf38] sm:$0xff]
    %v606 = vld [vmem:[#allocation7 + $0xf40] sm:$0xff]
    %v607 = vld [vmem:[#allocation7 + $0xf48] sm:$0xff]
    %v608 = vld [vmem:[#allocation7 + $0xf50] sm:$0xff]
    %v609 = vld [vmem:[#allocation7 + $0xf58] sm:$0xff]
    %v610 = vld [vmem:[#allocation7 + $0xf60] sm:$0xff]
    %v611 = vld [vmem:[#allocation7 + $0xf68] sm:$0xff]
    %v612 = vld [vmem:[#allocation7 + $0xf70] sm:$0xff]
    %v613 = vld [vmem:[#allocation7 + $0xf78] sm:$0xff]
    %v614 = vld [vmem:[#allocation7 + $0xf80] sm:$0xff]
    %v615 = vld [vmem:[#allocation7 + $0xf88] sm:$0xff]
    %v616 = vld [vmem:[#allocation7 + $0xf90] sm:$0xff]
    %v617 = vld [vmem:[#allocation7 + $0xf98] sm:$0xff]
    %v618 = vld [vmem:[#allocation7 + $0xfa0] sm:$0xff]
    %v619 = vld [vmem:[#allocation7 + $0xfa8] sm:$0xff]
    %v620 = vld [vmem:[#allocation7 + $0xfb0] sm:$0xff]
    %v621 = vld [vmem:[#allocation7 + $0xfb8] sm:$0xff]
    %v622 = vld [vmem:[#allocation7 + $0xfc0] sm:$0xff]
    %v623 = vld [vmem:[#allocation7 + $0xfc8] sm:$0xff]
    %v624 = vld [vmem:[#allocation7 + $0xfd0] sm:$0xff]
    %v625 = vld [vmem:[#allocation7 + $0xfd8] sm:$0xff]
    %v626 = vld [vmem:[#allocation7 + $0xfe0] sm:$0xff]
    %v627 = vld [vmem:[#allocation7 + $0xfe8] sm:$0xff]
    %v628 = vld [vmem:[#allocation7 + $0xff0] sm:$0xff]
    %v629 = vld [vmem:[#allocation7 + $0xff8] sm:$0xff]
    %v630 = vld [vmem:[#allocation7 + $0x1000] sm:$0xff]
    %v631 = vld [vmem:[#allocation7 + $0x1008] sm:$0xff]
    %v632 = vld [vmem:[#allocation7 + $0x1010] sm:$0xff]
    %v633 = vld [vmem:[#allocation7 + $0x1018] sm:$0xff]
    %v634 = vld [vmem:[#allocation7 + $0x1020] sm:$0xff]
    %v635 = vld [vmem:[#allocation7 + $0x1028] sm:$0xff]
    %v636 = vld [vmem:[#allocation7 + $0x1030] sm:$0xff]
    %v637 = vld [vmem:[#allocation7 + $0x1038] sm:$0xff]
    %v638 = vld [vmem:[#allocation7 + $0x1040] sm:$0xff]
    %v639 = vld [vmem:[#allocation7 + $0x1048] sm:$0xff]
    %v640 = vld [vmem:[#allocation7 + $0x1050] sm:$0xff]
    %v641 = vld [vmem:[#allocation7 + $0x1058] sm:$0xff]
    %v642 = vld [vmem:[#allocation7 + $0x1060] sm:$0xff]
    %v643 = vld [vmem:[#allocation7 + $0x1068] sm:$0xff]
    %v644 = vld [vmem:[#allocation7 + $0x1070] sm:$0xff]
    %v645 = vld [vmem:[#allocation7 + $0x1078] sm:$0xff]
    %v646 = vld [vmem:[#allocation7 + $0x1080] sm:$0xff]
    %v647 = vld [vmem:[#allocation7 + $0x1088] sm:$0xff]
    %v648 = vld [vmem:[#allocation7 + $0x1090] sm:$0xff]
    %v649 = vld [vmem:[#allocation7 + $0x1098] sm:$0xff]
    %v650 = vld [vmem:[#allocation7 + $0x10a0] sm:$0xff]
    %v651 = vld [vmem:[#allocation7 + $0x10a8] sm:$0xff]
    %v652 = vld [vmem:[#allocation7 + $0x10b0] sm:$0xff]
    %v653 = vld [vmem:[#allocation7 + $0x10b8] sm:$0xff]
    %v654 = vld [vmem:[#allocation7 + $0x10c0] sm:$0xff]
    %v655 = vld [vmem:[#allocation7 + $0x10c8] sm:$0xff]
    %v656 = vld [vmem:[#allocation7 + $0x10d0] sm:$0xff]
    %v657 = vld [vmem:[#allocation7 + $0x10d8] sm:$0xff]
    %v658 = vld [vmem:[#allocation7 + $0x10e0] sm:$0xff]
    %v659 = vld [vmem:[#allocation7 + $0x10e8] sm:$0xff]
    %v660 = vld [vmem:[#allocation7 + $0x10f0] sm:$0xff]
    %v661 = vld [vmem:[#allocation7 + $0x10f8] sm:$0xff]
    %v662 = vld [vmem:[#allocation7 + $0x1100] sm:$0xff]
    %v663 = vld [vmem:[#allocation7 + $0x1108] sm:$0xff]
    %v664 = vld [vmem:[#allocation7 + $0x1110] sm:$0xff]
    %v665 = vld [vmem:[#allocation7 + $0x1118] sm:$0xff]
    %v666 = vld [vmem:[#allocation7 + $0x1120] sm:$0xff]
    %v667 = vld [vmem:[#allocation7 + $0x1128] sm:$0xff]
    %v668 = vld [vmem:[#allocation7 + $0x1130] sm:$0xff]
    %v669 = vld [vmem:[#allocation7 + $0x1138] sm:$0xff]
    %v670 = vld [vmem:[#allocation7 + $0x1140] sm:$0xff]
    %v671 = vld [vmem:[#allocation7 + $0x1148] sm:$0xff]
    %v672 = vld [vmem:[#allocation7 + $0x1150] sm:$0xff]
    %v673 = vld [vmem:[#allocation7 + $0x1158] sm:$0xff]
    %v674 = vld [vmem:[#allocation7 + $0x1160] sm:$0xff]
    %v675 = vld [vmem:[#allocation7 + $0x1168] sm:$0xff]
    %v676 = vld [vmem:[#allocation7 + $0x1170] sm:$0xff]
    %v677 = vld [vmem:[#allocation7 + $0x1178] sm:$0xff]
    %v678 = vld [vmem:[#allocation7 + $0x1180] sm:$0xff]
    %v679 = vld [vmem:[#allocation7 + $0x1188] sm:$0xff]
    %v680 = vld [vmem:[#allocation7 + $0x1190] sm:$0xff]
    %v681 = vld [vmem:[#allocation7 + $0x1198] sm:$0xff]
    %v682 = vld [vmem:[#allocation7 + $0x11a0] sm:$0xff]
    %v683 = vld [vmem:[#allocation7 + $0x11a8] sm:$0xff]
    %v684 = vld [vmem:[#allocation7 + $0x11b0] sm:$0xff]
    %v685 = vld [vmem:[#allocation7 + $0x11b8] sm:$0xff]
    %v686 = vld [vmem:[#allocation7 + $0x11c0] sm:$0xff]
    %v687 = vld [vmem:[#allocation7 + $0x11c8] sm:$0xff]
    %v688 = vld [vmem:[#allocation7 + $0x11d0] sm:$0xff]
    %v689 = vld [vmem:[#allocation7 + $0x11d8] sm:$0xff]
    %v690 = vld [vmem:[#allocation7 + $0x11e0] sm:$0xff]
    %v691 = vld [vmem:[#allocation7 + $0x11e8] sm:$0xff]
    %v692 = vld [vmem:[#allocation7 + $0x11f0] sm:$0xff]
    %v693 = vld [vmem:[#allocation7 + $0x11f8] sm:$0xff]
    %v694 = vld [vmem:[#allocation5] sm:$0xff]
    %v695 = vld [vmem:[#allocation5 + $0x8] sm:$0xff]
    %v696 = vld [vmem:[#allocation5 + $0x10] sm:$0xff]
    %v697 = vld [vmem:[#allocation5 + $0x18] sm:$0xff]
    %v698 = vld [vmem:[#allocation5 + $0x20] sm:$0xff]
    %v699 = vld [vmem:[#allocation5 + $0x28] sm:$0xff]
    %v700 = vld [vmem:[#allocation8] sm:$0xff]
    %v701 = vld [vmem:[#allocation8 + $0x8] sm:$0xff]
    %v702 = vld [vmem:[#allocation8 + $0x10] sm:$0xff]
    %v703 = vld [vmem:[#allocation8 + $0x18] sm:$0xff]
    %v704 = vld [vmem:[#allocation8 + $0x20] sm:$0xff]
    %v705 = vld [vmem:[#allocation8 + $0x28] sm:$0xff]
    %v706 = vld [vmem:[#allocation8 + $0x30] sm:$0xff]
    %v707 = vld [vmem:[#allocation8 + $0x38] sm:$0xff]
    %v708 = vld [vmem:[#allocation8 + $0x40] sm:$0xff]
    %v709 = vld [vmem:[#allocation8 + $0x48] sm:$0xff]
    %v710 = vld [vmem:[#allocation8 + $0x50] sm:$0xff]
    %v711 = vld [vmem:[#allocation8 + $0x58] sm:$0xff]
    %v712 = vld [vmem:[#allocation8 + $0x60] sm:$0xff]
    %v713 = vld [vmem:[#allocation8 + $0x68] sm:$0xff]
    %v714 = vld [vmem:[#allocation8 + $0x70] sm:$0xff]
    %v715 = vld [vmem:[#allocation8 + $0x78] sm:$0xff]
    %v716 = vld [vmem:[#allocation8 + $0x80] sm:$0xff]
    %v717 = vld [vmem:[#allocation8 + $0x88] sm:$0xff]
    %v718 = vld [vmem:[#allocation8 + $0x90] sm:$0xff]
    %v719 = vld [vmem:[#allocation8 + $0x98] sm:$0xff]
    %v720 = vld [vmem:[#allocation8 + $0xa0] sm:$0xff]
    %v721 = vld [vmem:[#allocation8 + $0xa8] sm:$0xff]
    %v722 = vld [vmem:[#allocation8 + $0xb0] sm:$0xff]
    %v723 = vld [vmem:[#allocation8 + $0xb8] sm:$0xff]
    %v724 = vld [vmem:[#allocation8 + $0xc0] sm:$0xff]
    %v725 = vld [vmem:[#allocation8 + $0xc8] sm:$0xff]
    %v726 = vld [vmem:[#allocation8 + $0xd0] sm:$0xff]
    %v727 = vld [vmem:[#allocation8 + $0xd8] sm:$0xff]
    %v728 = vld [vmem:[#allocation8 + $0xe0] sm:$0xff]
    %v729 = vld [vmem:[#allocation8 + $0xe8] sm:$0xff]
    %v730 = vld [vmem:[#allocation8 + $0xf0] sm:$0xff]
    %v731 = vld [vmem:[#allocation8 + $0xf8] sm:$0xff]
    %v732 = vld [vmem:[#allocation8 + $0x100] sm:$0xff]
    %v733 = vld [vmem:[#allocation8 + $0x108] sm:$0xff]
    %v734 = vld [vmem:[#allocation8 + $0x110] sm:$0xff]
    %v735 = vld [vmem:[#allocation8 + $0x118] sm:$0xff]
    %v736 = vld [vmem:[#allocation8 + $0x120] sm:$0xff]
    %v737 = vld [vmem:[#allocation8 + $0x128] sm:$0xff]
    %v738 = vld [vmem:[#allocation8 + $0x130] sm:$0xff]
    %v739 = vld [vmem:[#allocation8 + $0x138] sm:$0xff]
    %v740 = vld [vmem:[#allocation8 + $0x140] sm:$0xff]
    %v741 = vld [vmem:[#allocation8 + $0x148] sm:$0xff]
    %v742 = vld [vmem:[#allocation8 + $0x150] sm:$0xff]
    %v743 = vld [vmem:[#allocation8 + $0x158] sm:$0xff]
    %v744 = vld [vmem:[#allocation8 + $0x160] sm:$0xff]
    %v745 = vld [vmem:[#allocation8 + $0x168] sm:$0xff]
    %v746 = vld [vmem:[#allocation8 + $0x170] sm:$0xff]
    %v747 = vld [vmem:[#allocation8 + $0x178] sm:$0xff]
    %v748 = vld [vmem:[#allocation8 + $0x180] sm:$0xff]
    %v749 = vld [vmem:[#allocation8 + $0x188] sm:$0xff]
    %v750 = vld [vmem:[#allocation8 + $0x190] sm:$0xff]
    %v751 = vld [vmem:[#allocation8 + $0x198] sm:$0xff]
    %v752 = vld [vmem:[#allocation8 + $0x1a0] sm:$0xff]
    %v753 = vld [vmem:[#allocation8 + $0x1a8] sm:$0xff]
    %v754 = vld [vmem:[#allocation8 + $0x1b0] sm:$0xff]
    %v755 = vld [vmem:[#allocation8 + $0x1b8] sm:$0xff]
    %v756 = vld [vmem:[#allocation8 + $0x1c0] sm:$0xff]
    %v757 = vld [vmem:[#allocation8 + $0x1c8] sm:$0xff]
    %v758 = vld [vmem:[#allocation8 + $0x1d0] sm:$0xff]
    %v759 = vld [vmem:[#allocation8 + $0x1d8] sm:$0xff]
    %v760 = vld [vmem:[#allocation8 + $0x1e0] sm:$0xff]
    %v761 = vld [vmem:[#allocation8 + $0x1e8] sm:$0xff]
    %v762 = vld [vmem:[#allocation8 + $0x1f0] sm:$0xff]
    %v763 = vld [vmem:[#allocation8 + $0x1f8] sm:$0xff]
    %v764 = vld [vmem:[#allocation8 + $0x200] sm:$0xff]
    %v765 = vld [vmem:[#allocation8 + $0x208] sm:$0xff]
    %v766 = vld [vmem:[#allocation8 + $0x210] sm:$0xff]
    %v767 = vld [vmem:[#allocation8 + $0x218] sm:$0xff]
    %v768 = vld [vmem:[#allocation8 + $0x220] sm:$0xff]
    %v769 = vld [vmem:[#allocation8 + $0x228] sm:$0xff]
    %v770 = vld [vmem:[#allocation8 + $0x230] sm:$0xff]
    %v771 = vld [vmem:[#allocation8 + $0x238] sm:$0xff]
    %v772 = vld [vmem:[#allocation8 + $0x240] sm:$0xff]
    %v773 = vld [vmem:[#allocation8 + $0x248] sm:$0xff]
    %v774 = vld [vmem:[#allocation8 + $0x250] sm:$0xff]
    %v775 = vld [vmem:[#allocation8 + $0x258] sm:$0xff]
    %v776 = vld [vmem:[#allocation8 + $0x260] sm:$0xff]
    %v777 = vld [vmem:[#allocation8 + $0x268] sm:$0xff]
    %v778 = vld [vmem:[#allocation8 + $0x270] sm:$0xff]
    %v779 = vld [vmem:[#allocation8 + $0x278] sm:$0xff]
    %v780 = vld [vmem:[#allocation8 + $0x280] sm:$0xff]
    %v781 = vld [vmem:[#allocation8 + $0x288] sm:$0xff]
    %v782 = vld [vmem:[#allocation8 + $0x290] sm:$0xff]
    %v783 = vld [vmem:[#allocation8 + $0x298] sm:$0xff]
    %v784 = vld [vmem:[#allocation8 + $0x2a0] sm:$0xff]
    %v785 = vld [vmem:[#allocation8 + $0x2a8] sm:$0xff]
    %v786 = vld [vmem:[#allocation8 + $0x2b0] sm:$0xff]
    %v787 = vld [vmem:[#allocation8 + $0x2b8] sm:$0xff]
    %v788 = vld [vmem:[#allocation8 + $0x2c0] sm:$0xff]
    %v789 = vld [vmem:[#allocation8 + $0x2c8] sm:$0xff]
    %v790 = vld [vmem:[#allocation8 + $0x2d0] sm:$0xff]
    %v791 = vld [vmem:[#allocation8 + $0x2d8] sm:$0xff]
    %v792 = vld [vmem:[#allocation8 + $0x2e0] sm:$0xff]
    %v793 = vld [vmem:[#allocation8 + $0x2e8] sm:$0xff]
    %v794 = vld [vmem:[#allocation8 + $0x2f0] sm:$0xff]
    %v795 = vld [vmem:[#allocation8 + $0x2f8] sm:$0xff]
    %v796 = vld [vmem:[#allocation8 + $0x300] sm:$0xff]
    %v797 = vld [vmem:[#allocation8 + $0x308] sm:$0xff]
    %v798 = vld [vmem:[#allocation8 + $0x310] sm:$0xff]
    %v799 = vld [vmem:[#allocation8 + $0x318] sm:$0xff]
    %v800 = vld [vmem:[#allocation8 + $0x320] sm:$0xff]
    %v801 = vld [vmem:[#allocation8 + $0x328] sm:$0xff]
    %v802 = vld [vmem:[#allocation8 + $0x330] sm:$0xff]
    %v803 = vld [vmem:[#allocation8 + $0x338] sm:$0xff]
    %v804 = vld [vmem:[#allocation8 + $0x340] sm:$0xff]
    %v805 = vld [vmem:[#allocation8 + $0x348] sm:$0xff]
    %v806 = vld [vmem:[#allocation8 + $0x350] sm:$0xff]
    %v807 = vld [vmem:[#allocation8 + $0x358] sm:$0xff]
    %v808 = vld [vmem:[#allocation8 + $0x360] sm:$0xff]
    %v809 = vld [vmem:[#allocation8 + $0x368] sm:$0xff]
    %v810 = vld [vmem:[#allocation8 + $0x370] sm:$0xff]
    %v811 = vld [vmem:[#allocation8 + $0x378] sm:$0xff]
    %v812 = vld [vmem:[#allocation8 + $0x380] sm:$0xff]
    %v813 = vld [vmem:[#allocation8 + $0x388] sm:$0xff]
    %v814 = vld [vmem:[#allocation8 + $0x390] sm:$0xff]
    %v815 = vld [vmem:[#allocation8 + $0x398] sm:$0xff]
    %v816 = vld [vmem:[#allocation8 + $0x3a0] sm:$0xff]
    %v817 = vld [vmem:[#allocation8 + $0x3a8] sm:$0xff]
    %v818 = vld [vmem:[#allocation8 + $0x3b0] sm:$0xff]
    %v819 = vld [vmem:[#allocation8 + $0x3b8] sm:$0xff]
    %v820 = vld [vmem:[#allocation8 + $0x3c0] sm:$0xff]
    %v821 = vld [vmem:[#allocation8 + $0x3c8] sm:$0xff]
    %v822 = vld [vmem:[#allocation8 + $0x3d0] sm:$0xff]
    %v823 = vld [vmem:[#allocation8 + $0x3d8] sm:$0xff]
    %v824 = vld [vmem:[#allocation8 + $0x3e0] sm:$0xff]
    %v825 = vld [vmem:[#allocation8 + $0x3e8] sm:$0xff]
    %v826 = vld [vmem:[#allocation8 + $0x3f0] sm:$0xff]
    %v827 = vld [vmem:[#allocation8 + $0x3f8] sm:$0xff]
    %v828 = vld [vmem:[#allocation8 + $0x400] sm:$0xff]
    %v829 = vld [vmem:[#allocation8 + $0x408] sm:$0xff]
    %v830 = vld [vmem:[#allocation8 + $0x410] sm:$0xff]
    %v831 = vld [vmem:[#allocation8 + $0x418] sm:$0xff]
    %v832 = vld [vmem:[#allocation8 + $0x420] sm:$0xff]
    %v833 = vld [vmem:[#allocation8 + $0x428] sm:$0xff]
    %v834 = vld [vmem:[#allocation8 + $0x430] sm:$0xff]
    %v835 = vld [vmem:[#allocation8 + $0x438] sm:$0xff]
    %v836 = vld [vmem:[#allocation8 + $0x440] sm:$0xff]
    %v837 = vld [vmem:[#allocation8 + $0x448] sm:$0xff]
    %v838 = vld [vmem:[#allocation8 + $0x450] sm:$0xff]
    %v839 = vld [vmem:[#allocation8 + $0x458] sm:$0xff]
    %v840 = vld [vmem:[#allocation8 + $0x460] sm:$0xff]
    %v841 = vld [vmem:[#allocation8 + $0x468] sm:$0xff]
    %v842 = vld [vmem:[#allocation8 + $0x470] sm:$0xff]
    %v843 = vld [vmem:[#allocation8 + $0x478] sm:$0xff]
    %v844 = vld [vmem:[#allocation8 + $0x480] sm:$0xff]
    %v845 = vld [vmem:[#allocation8 + $0x488] sm:$0xff]
    %v846 = vld [vmem:[#allocation8 + $0x490] sm:$0xff]
    %v847 = vld [vmem:[#allocation8 + $0x498] sm:$0xff]
    %v848 = vld [vmem:[#allocation8 + $0x4a0] sm:$0xff]
    %v849 = vld [vmem:[#allocation8 + $0x4a8] sm:$0xff]
    %v850 = vld [vmem:[#allocation8 + $0x4b0] sm:$0xff]
    %v851 = vld [vmem:[#allocation8 + $0x4b8] sm:$0xff]
    %v852 = vld [vmem:[#allocation8 + $0x4c0] sm:$0xff]
    %v853 = vld [vmem:[#allocation8 + $0x4c8] sm:$0xff]
    %v854 = vld [vmem:[#allocation8 + $0x4d0] sm:$0xff]
    %v855 = vld [vmem:[#allocation8 + $0x4d8] sm:$0xff]
    %v856 = vld [vmem:[#allocation8 + $0x4e0] sm:$0xff]
    %v857 = vld [vmem:[#allocation8 + $0x4e8] sm:$0xff]
    %v858 = vld [vmem:[#allocation8 + $0x4f0] sm:$0xff]
    %v859 = vld [vmem:[#allocation8 + $0x4f8] sm:$0xff]
    %v860 = vld [vmem:[#allocation8 + $0x500] sm:$0xff]
    %v861 = vld [vmem:[#allocation8 + $0x508] sm:$0xff]
    %v862 = vld [vmem:[#allocation8 + $0x510] sm:$0xff]
    %v863 = vld [vmem:[#allocation8 + $0x518] sm:$0xff]
    %v864 = vld [vmem:[#allocation8 + $0x520] sm:$0xff]
    %v865 = vld [vmem:[#allocation8 + $0x528] sm:$0xff]
    %v866 = vld [vmem:[#allocation8 + $0x530] sm:$0xff]
    %v867 = vld [vmem:[#allocation8 + $0x538] sm:$0xff]
    %v868 = vld [vmem:[#allocation8 + $0x540] sm:$0xff]
    %v869 = vld [vmem:[#allocation8 + $0x548] sm:$0xff]
    %v870 = vld [vmem:[#allocation8 + $0x550] sm:$0xff]
    %v871 = vld [vmem:[#allocation8 + $0x558] sm:$0xff]
    %v872 = vld [vmem:[#allocation8 + $0x560] sm:$0xff]
    %v873 = vld [vmem:[#allocation8 + $0x568] sm:$0xff]
    %v874 = vld [vmem:[#allocation8 + $0x570] sm:$0xff]
    %v875 = vld [vmem:[#allocation8 + $0x578] sm:$0xff]
    %v876 = vld [vmem:[#allocation8 + $0x580] sm:$0xff]
    %v877 = vld [vmem:[#allocation8 + $0x588] sm:$0xff]
    %v878 = vld [vmem:[#allocation8 + $0x590] sm:$0xff]
    %v879 = vld [vmem:[#allocation8 + $0x598] sm:$0xff]
    %v880 = vld [vmem:[#allocation8 + $0x5a0] sm:$0xff]
    %v881 = vld [vmem:[#allocation8 + $0x5a8] sm:$0xff]
    %v882 = vld [vmem:[#allocation8 + $0x5b0] sm:$0xff]
    %v883 = vld [vmem:[#allocation8 + $0x5b8] sm:$0xff]
    %v884 = vld [vmem:[#allocation8 + $0x5c0] sm:$0xff]
    %v885 = vld [vmem:[#allocation8 + $0x5c8] sm:$0xff]
    %v886 = vld [vmem:[#allocation8 + $0x5d0] sm:$0xff]
    %v887 = vld [vmem:[#allocation8 + $0x5d8] sm:$0xff]
    %v888 = vld [vmem:[#allocation8 + $0x5e0] sm:$0xff]
    %v889 = vld [vmem:[#allocation8 + $0x5e8] sm:$0xff]
    %v890 = vld [vmem:[#allocation8 + $0x5f0] sm:$0xff]
    %v891 = vld [vmem:[#allocation8 + $0x5f8] sm:$0xff]
    %v892 = vld [vmem:[#allocation8 + $0x600] sm:$0xff]
    %v893 = vld [vmem:[#allocation8 + $0x608] sm:$0xff]
    %v894 = vld [vmem:[#allocation8 + $0x610] sm:$0xff]
    %v895 = vld [vmem:[#allocation8 + $0x618] sm:$0xff]
    %v896 = vld [vmem:[#allocation8 + $0x620] sm:$0xff]
    %v897 = vld [vmem:[#allocation8 + $0x628] sm:$0xff]
    %v898 = vld [vmem:[#allocation8 + $0x630] sm:$0xff]
    %v899 = vld [vmem:[#allocation8 + $0x638] sm:$0xff]
    %v900 = vld [vmem:[#allocation8 + $0x640] sm:$0xff]
    %v901 = vld [vmem:[#allocation8 + $0x648] sm:$0xff]
    %v902 = vld [vmem:[#allocation8 + $0x650] sm:$0xff]
    %v903 = vld [vmem:[#allocation8 + $0x658] sm:$0xff]
    %v904 = vld [vmem:[#allocation8 + $0x660] sm:$0xff]
    %v905 = vld [vmem:[#allocation8 + $0x668] sm:$0xff]
    %v906 = vld [vmem:[#allocation8 + $0x670] sm:$0xff]
    %v907 = vld [vmem:[#allocation8 + $0x678] sm:$0xff]
    %v908 = vld [vmem:[#allocation8 + $0x680] sm:$0xff]
    %v909 = vld [vmem:[#allocation8 + $0x688] sm:$0xff]
    %v910 = vld [vmem:[#allocation8 + $0x690] sm:$0xff]
    %v911 = vld [vmem:[#allocation8 + $0x698] sm:$0xff]
    %v912 = vld [vmem:[#allocation8 + $0x6a0] sm:$0xff]
    %v913 = vld [vmem:[#allocation8 + $0x6a8] sm:$0xff]
    %v914 = vld [vmem:[#allocation8 + $0x6b0] sm:$0xff]
    %v915 = vld [vmem:[#allocation8 + $0x6b8] sm:$0xff]
    %v916 = vld [vmem:[#allocation8 + $0x6c0] sm:$0xff]
    %v917 = vld [vmem:[#allocation8 + $0x6c8] sm:$0xff]
    %v918 = vld [vmem:[#allocation8 + $0x6d0] sm:$0xff]
    %v919 = vld [vmem:[#allocation8 + $0x6d8] sm:$0xff]
    %v920 = vld [vmem:[#allocation8 + $0x6e0] sm:$0xff]
    %v921 = vld [vmem:[#allocation8 + $0x6e8] sm:$0xff]
    %v922 = vld [vmem:[#allocation8 + $0x6f0] sm:$0xff]
    %v923 = vld [vmem:[#allocation8 + $0x6f8] sm:$0xff]
    %v924 = vld [vmem:[#allocation8 + $0x700] sm:$0xff]
    %v925 = vld [vmem:[#allocation8 + $0x708] sm:$0xff]
    %v926 = vld [vmem:[#allocation8 + $0x710] sm:$0xff]
    %v927 = vld [vmem:[#allocation8 + $0x718] sm:$0xff]
    %v928 = vld [vmem:[#allocation8 + $0x720] sm:$0xff]
    %v929 = vld [vmem:[#allocation8 + $0x728] sm:$0xff]
    %v930 = vld [vmem:[#allocation8 + $0x730] sm:$0xff]
    %v931 = vld [vmem:[#allocation8 + $0x738] sm:$0xff]
    %v932 = vld [vmem:[#allocation8 + $0x740] sm:$0xff]
    %v933 = vld [vmem:[#allocation8 + $0x748] sm:$0xff]
    %v934 = vld [vmem:[#allocation8 + $0x750] sm:$0xff]
    %v935 = vld [vmem:[#allocation8 + $0x758] sm:$0xff]
    %v936 = vld [vmem:[#allocation8 + $0x760] sm:$0xff]
    %v937 = vld [vmem:[#allocation8 + $0x768] sm:$0xff]
    %v938 = vld [vmem:[#allocation8 + $0x770] sm:$0xff]
    %v939 = vld [vmem:[#allocation8 + $0x778] sm:$0xff]
    %v940 = vld [vmem:[#allocation8 + $0x780] sm:$0xff]
    %v941 = vld [vmem:[#allocation8 + $0x788] sm:$0xff]
    %v942 = vld [vmem:[#allocation8 + $0x790] sm:$0xff]
    %v943 = vld [vmem:[#allocation8 + $0x798] sm:$0xff]
    %v944 = vld [vmem:[#allocation8 + $0x7a0] sm:$0xff]
    %v945 = vld [vmem:[#allocation8 + $0x7a8] sm:$0xff]
    %v946 = vld [vmem:[#allocation8 + $0x7b0] sm:$0xff]
    %v947 = vld [vmem:[#allocation8 + $0x7b8] sm:$0xff]
    %v948 = vld [vmem:[#allocation8 + $0x7c0] sm:$0xff]
    %v949 = vld [vmem:[#allocation8 + $0x7c8] sm:$0xff]
    %v950 = vld [vmem:[#allocation8 + $0x7d0] sm:$0xff]
    %v951 = vld [vmem:[#allocation8 + $0x7d8] sm:$0xff]
    %v952 = vld [vmem:[#allocation8 + $0x7e0] sm:$0xff]
    %v953 = vld [vmem:[#allocation8 + $0x7e8] sm:$0xff]
    %v954 = vld [vmem:[#allocation8 + $0x7f0] sm:$0xff]
    %v955 = vld [vmem:[#allocation8 + $0x7f8] sm:$0xff]
    %v956 = vld [vmem:[#allocation8 + $0x800] sm:$0xff]
    %v957 = vld [vmem:[#allocation8 + $0x808] sm:$0xff]
    %v958 = vld [vmem:[#allocation8 + $0x810] sm:$0xff]
    %v959 = vld [vmem:[#allocation8 + $0x818] sm:$0xff]
    %v960 = vld [vmem:[#allocation8 + $0x820] sm:$0xff]
    %v961 = vld [vmem:[#allocation8 + $0x828] sm:$0xff]
    %v962 = vld [vmem:[#allocation8 + $0x830] sm:$0xff]
    %v963 = vld [vmem:[#allocation8 + $0x838] sm:$0xff]
    %v964 = vld [vmem:[#allocation8 + $0x840] sm:$0xff]
    %v965 = vld [vmem:[#allocation8 + $0x848] sm:$0xff]
    %v966 = vld [vmem:[#allocation8 + $0x850] sm:$0xff]
    %v967 = vld [vmem:[#allocation8 + $0x858] sm:$0xff]
    %v968 = vld [vmem:[#allocation8 + $0x860] sm:$0xff]
    %v969 = vld [vmem:[#allocation8 + $0x868] sm:$0xff]
    %v970 = vld [vmem:[#allocation8 + $0x870] sm:$0xff]
    %v971 = vld [vmem:[#allocation8 + $0x878] sm:$0xff]
    %v972 = vld [vmem:[#allocation8 + $0x880] sm:$0xff]
    %v973 = vld [vmem:[#allocation8 + $0x888] sm:$0xff]
    %v974 = vld [vmem:[#allocation8 + $0x890] sm:$0xff]
    %v975 = vld [vmem:[#allocation8 + $0x898] sm:$0xff]
    %v976 = vld [vmem:[#allocation8 + $0x8a0] sm:$0xff]
    %v977 = vld [vmem:[#allocation8 + $0x8a8] sm:$0xff]
    %v978 = vld [vmem:[#allocation8 + $0x8b0] sm:$0xff]
    %v979 = vld [vmem:[#allocation8 + $0x8b8] sm:$0xff]
    %v980 = vld [vmem:[#allocation8 + $0x8c0] sm:$0xff]
    %v981 = vld [vmem:[#allocation8 + $0x8c8] sm:$0xff]
    %v982 = vld [vmem:[#allocation8 + $0x8d0] sm:$0xff]
    %v983 = vld [vmem:[#allocation8 + $0x8d8] sm:$0xff]
    %v984 = vld [vmem:[#allocation8 + $0x8e0] sm:$0xff]
    %v985 = vld [vmem:[#allocation8 + $0x8e8] sm:$0xff]
    %v986 = vld [vmem:[#allocation8 + $0x8f0] sm:$0xff]
    %v987 = vld [vmem:[#allocation8 + $0x8f8] sm:$0xff]
    %v988 = vld [vmem:[#allocation8 + $0x900] sm:$0xff]
    %v989 = vld [vmem:[#allocation8 + $0x908] sm:$0xff]
    %v990 = vld [vmem:[#allocation8 + $0x910] sm:$0xff]
    %v991 = vld [vmem:[#allocation8 + $0x918] sm:$0xff]
    %v992 = vld [vmem:[#allocation8 + $0x920] sm:$0xff]
    %v993 = vld [vmem:[#allocation8 + $0x928] sm:$0xff]
    %v994 = vld [vmem:[#allocation8 + $0x930] sm:$0xff]
    %v995 = vld [vmem:[#allocation8 + $0x938] sm:$0xff]
    %v996 = vld [vmem:[#allocation8 + $0x940] sm:$0xff]
    %v997 = vld [vmem:[#allocation8 + $0x948] sm:$0xff]
    %v998 = vld [vmem:[#allocation8 + $0x950] sm:$0xff]
    %v999 = vld [vmem:[#allocation8 + $0x958] sm:$0xff]
    %v1000 = vld [vmem:[#allocation8 + $0x960] sm:$0xff]
    %v1001 = vld [vmem:[#allocation8 + $0x968] sm:$0xff]
    %v1002 = vld [vmem:[#allocation8 + $0x970] sm:$0xff]
    %v1003 = vld [vmem:[#allocation8 + $0x978] sm:$0xff]
    %v1004 = vld [vmem:[#allocation8 + $0x980] sm:$0xff]
    %v1005 = vld [vmem:[#allocation8 + $0x988] sm:$0xff]
    %v1006 = vld [vmem:[#allocation8 + $0x990] sm:$0xff]
    %v1007 = vld [vmem:[#allocation8 + $0x998] sm:$0xff]
    %v1008 = vld [vmem:[#allocation8 + $0x9a0] sm:$0xff]
    %v1009 = vld [vmem:[#allocation8 + $0x9a8] sm:$0xff]
    %v1010 = vld [vmem:[#allocation8 + $0x9b0] sm:$0xff]
    %v1011 = vld [vmem:[#allocation8 + $0x9b8] sm:$0xff]
    %v1012 = vld [vmem:[#allocation8 + $0x9c0] sm:$0xff]
    %v1013 = vld [vmem:[#allocation8 + $0x9c8] sm:$0xff]
    %v1014 = vld [vmem:[#allocation8 + $0x9d0] sm:$0xff]
    %v1015 = vld [vmem:[#allocation8 + $0x9d8] sm:$0xff]
    %v1016 = vld [vmem:[#allocation8 + $0x9e0] sm:$0xff]
    %v1017 = vld [vmem:[#allocation8 + $0x9e8] sm:$0xff]
    %v1018 = vld [vmem:[#allocation8 + $0x9f0] sm:$0xff]
    %v1019 = vld [vmem:[#allocation8 + $0x9f8] sm:$0xff]
    %v1020 = vld [vmem:[#allocation8 + $0xa00] sm:$0xff]
    %v1021 = vld [vmem:[#allocation8 + $0xa08] sm:$0xff]
    %v1022 = vld [vmem:[#allocation8 + $0xa10] sm:$0xff]
    %v1023 = vld [vmem:[#allocation8 + $0xa18] sm:$0xff]
    %v1024 = vld [vmem:[#allocation8 + $0xa20] sm:$0xff]
    %v1025 = vld [vmem:[#allocation8 + $0xa28] sm:$0xff]
    %v1026 = vld [vmem:[#allocation8 + $0xa30] sm:$0xff]
    %v1027 = vld [vmem:[#allocation8 + $0xa38] sm:$0xff]
    %v1028 = vld [vmem:[#allocation8 + $0xa40] sm:$0xff]
    %v1029 = vld [vmem:[#allocation8 + $0xa48] sm:$0xff]
    %v1030 = vld [vmem:[#allocation8 + $0xa50] sm:$0xff]
    %v1031 = vld [vmem:[#allocation8 + $0xa58] sm:$0xff]
    %v1032 = vld [vmem:[#allocation8 + $0xa60] sm:$0xff]
    %v1033 = vld [vmem:[#allocation8 + $0xa68] sm:$0xff]
    %v1034 = vld [vmem:[#allocation8 + $0xa70] sm:$0xff]
    %v1035 = vld [vmem:[#allocation8 + $0xa78] sm:$0xff]
    %v1036 = vld [vmem:[#allocation8 + $0xa80] sm:$0xff]
    %v1037 = vld [vmem:[#allocation8 + $0xa88] sm:$0xff]
    %v1038 = vld [vmem:[#allocation8 + $0xa90] sm:$0xff]
    %v1039 = vld [vmem:[#allocation8 + $0xa98] sm:$0xff]
    %v1040 = vld [vmem:[#allocation8 + $0xaa0] sm:$0xff]
    %v1041 = vld [vmem:[#allocation8 + $0xaa8] sm:$0xff]
    %v1042 = vld [vmem:[#allocation8 + $0xab0] sm:$0xff]
    %v1043 = vld [vmem:[#allocation8 + $0xab8] sm:$0xff]
    %v1044 = vld [vmem:[#allocation8 + $0xac0] sm:$0xff]
    %v1045 = vld [vmem:[#allocation8 + $0xac8] sm:$0xff]
    %v1046 = vld [vmem:[#allocation8 + $0xad0] sm:$0xff]
    %v1047 = vld [vmem:[#allocation8 + $0xad8] sm:$0xff]
    %v1048 = vld [vmem:[#allocation8 + $0xae0] sm:$0xff]
    %v1049 = vld [vmem:[#allocation8 + $0xae8] sm:$0xff]
    %v1050 = vld [vmem:[#allocation8 + $0xaf0] sm:$0xff]
    %v1051 = vld [vmem:[#allocation8 + $0xaf8] sm:$0xff]
    %v1052 = vld [vmem:[#allocation8 + $0xb00] sm:$0xff]
    %v1053 = vld [vmem:[#allocation8 + $0xb08] sm:$0xff]
    %v1054 = vld [vmem:[#allocation8 + $0xb10] sm:$0xff]
    %v1055 = vld [vmem:[#allocation8 + $0xb18] sm:$0xff]
    %v1056 = vld [vmem:[#allocation8 + $0xb20] sm:$0xff]
    %v1057 = vld [vmem:[#allocation8 + $0xb28] sm:$0xff]
    %v1058 = vld [vmem:[#allocation8 + $0xb30] sm:$0xff]
    %v1059 = vld [vmem:[#allocation8 + $0xb38] sm:$0xff]
    %v1060 = vld [vmem:[#allocation8 + $0xb40] sm:$0xff]
    %v1061 = vld [vmem:[#allocation8 + $0xb48] sm:$0xff]
    %v1062 = vld [vmem:[#allocation8 + $0xb50] sm:$0xff]
    %v1063 = vld [vmem:[#allocation8 + $0xb58] sm:$0xff]
    %v1064 = vld [vmem:[#allocation8 + $0xb60] sm:$0xff]
    %v1065 = vld [vmem:[#allocation8 + $0xb68] sm:$0xff]
    %v1066 = vld [vmem:[#allocation8 + $0xb70] sm:$0xff]
    %v1067 = vld [vmem:[#allocation8 + $0xb78] sm:$0xff]
    %v1068 = vld [vmem:[#allocation8 + $0xb80] sm:$0xff]
    %v1069 = vld [vmem:[#allocation8 + $0xb88] sm:$0xff]
    %v1070 = vld [vmem:[#allocation8 + $0xb90] sm:$0xff]
    %v1071 = vld [vmem:[#allocation8 + $0xb98] sm:$0xff]
    %v1072 = vld [vmem:[#allocation8 + $0xba0] sm:$0xff]
    %v1073 = vld [vmem:[#allocation8 + $0xba8] sm:$0xff]
    %v1074 = vld [vmem:[#allocation8 + $0xbb0] sm:$0xff]
    %v1075 = vld [vmem:[#allocation8 + $0xbb8] sm:$0xff]
    %v1076 = vld [vmem:[#allocation8 + $0xbc0] sm:$0xff]
    %v1077 = vld [vmem:[#allocation8 + $0xbc8] sm:$0xff]
    %v1078 = vld [vmem:[#allocation8 + $0xbd0] sm:$0xff]
    %v1079 = vld [vmem:[#allocation8 + $0xbd8] sm:$0xff]
    %v1080 = vld [vmem:[#allocation8 + $0xbe0] sm:$0xff]
    %v1081 = vld [vmem:[#allocation8 + $0xbe8] sm:$0xff]
    %v1082 = vld [vmem:[#allocation8 + $0xbf0] sm:$0xff]
    %v1083 = vld [vmem:[#allocation8 + $0xbf8] sm:$0xff]
    %v1084 = vld [vmem:[#allocation8 + $0xc00] sm:$0xff]
    %v1085 = vld [vmem:[#allocation8 + $0xc08] sm:$0xff]
    %v1086 = vld [vmem:[#allocation8 + $0xc10] sm:$0xff]
    %v1087 = vld [vmem:[#allocation8 + $0xc18] sm:$0xff]
    %v1088 = vld [vmem:[#allocation8 + $0xc20] sm:$0xff]
    %v1089 = vld [vmem:[#allocation8 + $0xc28] sm:$0xff]
    %v1090 = vld [vmem:[#allocation8 + $0xc30] sm:$0xff]
    %v1091 = vld [vmem:[#allocation8 + $0xc38] sm:$0xff]
    %v1092 = vld [vmem:[#allocation8 + $0xc40] sm:$0xff]
    %v1093 = vld [vmem:[#allocation8 + $0xc48] sm:$0xff]
    %v1094 = vld [vmem:[#allocation8 + $0xc50] sm:$0xff]
    %v1095 = vld [vmem:[#allocation8 + $0xc58] sm:$0xff]
    %v1096 = vld [vmem:[#allocation8 + $0xc60] sm:$0xff]
    %v1097 = vld [vmem:[#allocation8 + $0xc68] sm:$0xff]
    %v1098 = vld [vmem:[#allocation8 + $0xc70] sm:$0xff]
    %v1099 = vld [vmem:[#allocation8 + $0xc78] sm:$0xff]
    %v1100 = vld [vmem:[#allocation8 + $0xc80] sm:$0xff]
    %v1101 = vld [vmem:[#allocation8 + $0xc88] sm:$0xff]
    %v1102 = vld [vmem:[#allocation8 + $0xc90] sm:$0xff]
    %v1103 = vld [vmem:[#allocation8 + $0xc98] sm:$0xff]
    %v1104 = vld [vmem:[#allocation8 + $0xca0] sm:$0xff]
    %v1105 = vld [vmem:[#allocation8 + $0xca8] sm:$0xff]
    %v1106 = vld [vmem:[#allocation8 + $0xcb0] sm:$0xff]
    %v1107 = vld [vmem:[#allocation8 + $0xcb8] sm:$0xff]
    %v1108 = vld [vmem:[#allocation8 + $0xcc0] sm:$0xff]
    %v1109 = vld [vmem:[#allocation8 + $0xcc8] sm:$0xff]
    %v1110 = vld [vmem:[#allocation8 + $0xcd0] sm:$0xff]
    %v1111 = vld [vmem:[#allocation8 + $0xcd8] sm:$0xff]
    %v1112 = vld [vmem:[#allocation8 + $0xce0] sm:$0xff]
    %v1113 = vld [vmem:[#allocation8 + $0xce8] sm:$0xff]
    %v1114 = vld [vmem:[#allocation8 + $0xcf0] sm:$0xff]
    %v1115 = vld [vmem:[#allocation8 + $0xcf8] sm:$0xff]
    %v1116 = vld [vmem:[#allocation8 + $0xd00] sm:$0xff]
    %v1117 = vld [vmem:[#allocation8 + $0xd08] sm:$0xff]
    %v1118 = vld [vmem:[#allocation8 + $0xd10] sm:$0xff]
    %v1119 = vld [vmem:[#allocation8 + $0xd18] sm:$0xff]
    %v1120 = vld [vmem:[#allocation8 + $0xd20] sm:$0xff]
    %v1121 = vld [vmem:[#allocation8 + $0xd28] sm:$0xff]
    %v1122 = vld [vmem:[#allocation8 + $0xd30] sm:$0xff]
    %v1123 = vld [vmem:[#allocation8 + $0xd38] sm:$0xff]
    %v1124 = vld [vmem:[#allocation8 + $0xd40] sm:$0xff]
    %v1125 = vld [vmem:[#allocation8 + $0xd48] sm:$0xff]
    %v1126 = vld [vmem:[#allocation8 + $0xd50] sm:$0xff]
    %v1127 = vld [vmem:[#allocation8 + $0xd58] sm:$0xff]
    %v1128 = vld [vmem:[#allocation8 + $0xd60] sm:$0xff]
    %v1129 = vld [vmem:[#allocation8 + $0xd68] sm:$0xff]
    %v1130 = vld [vmem:[#allocation8 + $0xd70] sm:$0xff]
    %v1131 = vld [vmem:[#allocation8 + $0xd78] sm:$0xff]
    %v1132 = vld [vmem:[#allocation8 + $0xd80] sm:$0xff]
    %v1133 = vld [vmem:[#allocation8 + $0xd88] sm:$0xff]
    %v1134 = vld [vmem:[#allocation8 + $0xd90] sm:$0xff]
    %v1135 = vld [vmem:[#allocation8 + $0xd98] sm:$0xff]
    %v1136 = vld [vmem:[#allocation8 + $0xda0] sm:$0xff]
    %v1137 = vld [vmem:[#allocation8 + $0xda8] sm:$0xff]
    %v1138 = vld [vmem:[#allocation8 + $0xdb0] sm:$0xff]
    %v1139 = vld [vmem:[#allocation8 + $0xdb8] sm:$0xff]
    %v1140 = vld [vmem:[#allocation8 + $0xdc0] sm:$0xff]
    %v1141 = vld [vmem:[#allocation8 + $0xdc8] sm:$0xff]
    %v1142 = vld [vmem:[#allocation8 + $0xdd0] sm:$0xff]
    %v1143 = vld [vmem:[#allocation8 + $0xdd8] sm:$0xff]
    %v1144 = vld [vmem:[#allocation8 + $0xde0] sm:$0xff]
    %v1145 = vld [vmem:[#allocation8 + $0xde8] sm:$0xff]
    %v1146 = vld [vmem:[#allocation8 + $0xdf0] sm:$0xff]
    %v1147 = vld [vmem:[#allocation8 + $0xdf8] sm:$0xff]
    %v1148 = vld [vmem:[#allocation8 + $0xe00] sm:$0xff]
    %v1149 = vld [vmem:[#allocation8 + $0xe08] sm:$0xff]
    %v1150 = vld [vmem:[#allocation8 + $0xe10] sm:$0xff]
    %v1151 = vld [vmem:[#allocation8 + $0xe18] sm:$0xff]
    %v1152 = vld [vmem:[#allocation8 + $0xe20] sm:$0xff]
    %v1153 = vld [vmem:[#allocation8 + $0xe28] sm:$0xff]
    %v1154 = vld [vmem:[#allocation8 + $0xe30] sm:$0xff]
    %v1155 = vld [vmem:[#allocation8 + $0xe38] sm:$0xff]
    %v1156 = vld [vmem:[#allocation8 + $0xe40] sm:$0xff]
    %v1157 = vld [vmem:[#allocation8 + $0xe48] sm:$0xff]
    %v1158 = vld [vmem:[#allocation8 + $0xe50] sm:$0xff]
    %v1159 = vld [vmem:[#allocation8 + $0xe58] sm:$0xff]
    %v1160 = vld [vmem:[#allocation8 + $0xe60] sm:$0xff]
    %v1161 = vld [vmem:[#allocation8 + $0xe68] sm:$0xff]
    %v1162 = vld [vmem:[#allocation8 + $0xe70] sm:$0xff]
    %v1163 = vld [vmem:[#allocation8 + $0xe78] sm:$0xff]
    %v1164 = vld [vmem:[#allocation8 + $0xe80] sm:$0xff]
    %v1165 = vld [vmem:[#allocation8 + $0xe88] sm:$0xff]
    %v1166 = vld [vmem:[#allocation8 + $0xe90] sm:$0xff]
    %v1167 = vld [vmem:[#allocation8 + $0xe98] sm:$0xff]
    %v1168 = vld [vmem:[#allocation8 + $0xea0] sm:$0xff]
    %v1169 = vld [vmem:[#allocation8 + $0xea8] sm:$0xff]
    %v1170 = vld [vmem:[#allocation8 + $0xeb0] sm:$0xff]
    %v1171 = vld [vmem:[#allocation8 + $0xeb8] sm:$0xff]
    %v1172 = vld [vmem:[#allocation8 + $0xec0] sm:$0xff]
    %v1173 = vld [vmem:[#allocation8 + $0xec8] sm:$0xff]
    %v1174 = vld [vmem:[#allocation8 + $0xed0] sm:$0xff]
    %v1175 = vld [vmem:[#allocation8 + $0xed8] sm:$0xff]
    %v1176 = vld [vmem:[#allocation8 + $0xee0] sm:$0xff]
    %v1177 = vld [vmem:[#allocation8 + $0xee8] sm:$0xff]
    %v1178 = vld [vmem:[#allocation8 + $0xef0] sm:$0xff]
    %v1179 = vld [vmem:[#allocation8 + $0xef8] sm:$0xff]
    %v1180 = vld [vmem:[#allocation8 + $0xf00] sm:$0xff]
    %v1181 = vld [vmem:[#allocation8 + $0xf08] sm:$0xff]
    %v1182 = vld [vmem:[#allocation8 + $0xf10] sm:$0xff]
    %v1183 = vld [vmem:[#allocation8 + $0xf18] sm:$0xff]
    %v1184 = vld [vmem:[#allocation8 + $0xf20] sm:$0xff]
    %v1185 = vld [vmem:[#allocation8 + $0xf28] sm:$0xff]
    %v1186 = vld [vmem:[#allocation8 + $0xf30] sm:$0xff]
    %v1187 = vld [vmem:[#allocation8 + $0xf38] sm:$0xff]
    %v1188 = vld [vmem:[#allocation8 + $0xf40] sm:$0xff]
    %v1189 = vld [vmem:[#allocation8 + $0xf48] sm:$0xff]
    %v1190 = vld [vmem:[#allocation8 + $0xf50] sm:$0xff]
    %v1191 = vld [vmem:[#allocation8 + $0xf58] sm:$0xff]
    %v1192 = vld [vmem:[#allocation8 + $0xf60] sm:$0xff]
    %v1193 = vld [vmem:[#allocation8 + $0xf68] sm:$0xff]
    %v1194 = vld [vmem:[#allocation8 + $0xf70] sm:$0xff]
    %v1195 = vld [vmem:[#allocation8 + $0xf78] sm:$0xff]
    %v1196 = vld [vmem:[#allocation8 + $0xf80] sm:$0xff]
    %v1197 = vld [vmem:[#allocation8 + $0xf88] sm:$0xff]
    %v1198 = vld [vmem:[#allocation8 + $0xf90] sm:$0xff]
    %v1199 = vld [vmem:[#allocation8 + $0xf98] sm:$0xff]
    %v1200 = vld [vmem:[#allocation8 + $0xfa0] sm:$0xff]
    %v1201 = vld [vmem:[#allocation8 + $0xfa8] sm:$0xff]
    %v1202 = vld [vmem:[#allocation8 + $0xfb0] sm:$0xff]
    %v1203 = vld [vmem:[#allocation8 + $0xfb8] sm:$0xff]
    %v1204 = vld [vmem:[#allocation8 + $0xfc0] sm:$0xff]
    %v1205 = vld [vmem:[#allocation8 + $0xfc8] sm:$0xff]
    %v1206 = vld [vmem:[#allocation8 + $0xfd0] sm:$0xff]
    %v1207 = vld [vmem:[#allocation8 + $0xfd8] sm:$0xff]
    %v1208 = vld [vmem:[#allocation8 + $0xfe0] sm:$0xff]
    %v1209 = vld [vmem:[#allocation8 + $0xfe8] sm:$0xff]
    %v1210 = vld [vmem:[#allocation8 + $0xff0] sm:$0xff]
    %v1211 = vld [vmem:[#allocation8 + $0xff8] sm:$0xff]
    %v1212 = vld [vmem:[#allocation8 + $0x1000] sm:$0xff]
    %v1213 = vld [vmem:[#allocation8 + $0x1008] sm:$0xff]
    %v1214 = vld [vmem:[#allocation8 + $0x1010] sm:$0xff]
    %v1215 = vld [vmem:[#allocation8 + $0x1018] sm:$0xff]
    %v1216 = vld [vmem:[#allocation8 + $0x1020] sm:$0xff]
    %v1217 = vld [vmem:[#allocation8 + $0x1028] sm:$0xff]
    %v1218 = vld [vmem:[#allocation8 + $0x1030] sm:$0xff]
    %v1219 = vld [vmem:[#allocation8 + $0x1038] sm:$0xff]
    %v1220 = vld [vmem:[#allocation8 + $0x1040] sm:$0xff]
    %v1221 = vld [vmem:[#allocation8 + $0x1048] sm:$0xff]
    %v1222 = vld [vmem:[#allocation8 + $0x1050] sm:$0xff]
    %v1223 = vld [vmem:[#allocation8 + $0x1058] sm:$0xff]
    %v1224 = vld [vmem:[#allocation8 + $0x1060] sm:$0xff]
    %v1225 = vld [vmem:[#allocation8 + $0x1068] sm:$0xff]
    %v1226 = vld [vmem:[#allocation8 + $0x1070] sm:$0xff]
    %v1227 = vld [vmem:[#allocation8 + $0x1078] sm:$0xff]
    %v1228 = vld [vmem:[#allocation8 + $0x1080] sm:$0xff]
    %v1229 = vld [vmem:[#allocation8 + $0x1088] sm:$0xff]
    %v1230 = vld [vmem:[#allocation8 + $0x1090] sm:$0xff]
    %v1231 = vld [vmem:[#allocation8 + $0x1098] sm:$0xff]
    %v1232 = vld [vmem:[#allocation8 + $0x10a0] sm:$0xff]
    %v1233 = vld [vmem:[#allocation8 + $0x10a8] sm:$0xff]
    %v1234 = vld [vmem:[#allocation8 + $0x10b0] sm:$0xff]
    %v1235 = vld [vmem:[#allocation8 + $0x10b8] sm:$0xff]
    %v1236 = vld [vmem:[#allocation8 + $0x10c0] sm:$0xff]
    %v1237 = vld [vmem:[#allocation8 + $0x10c8] sm:$0xff]
    %v1238 = vld [vmem:[#allocation8 + $0x10d0] sm:$0xff]
    %v1239 = vld [vmem:[#allocation8 + $0x10d8] sm:$0xff]
    %v1240 = vld [vmem:[#allocation8 + $0x10e0] sm:$0xff]
    %v1241 = vld [vmem:[#allocation8 + $0x10e8] sm:$0xff]
    %v1242 = vld [vmem:[#allocation8 + $0x10f0] sm:$0xff]
    %v1243 = vld [vmem:[#allocation8 + $0x10f8] sm:$0xff]
    %v1244 = vld [vmem:[#allocation8 + $0x1100] sm:$0xff]
    %v1245 = vld [vmem:[#allocation8 + $0x1108] sm:$0xff]
    %v1246 = vld [vmem:[#allocation8 + $0x1110] sm:$0xff]
    %v1247 = vld [vmem:[#allocation8 + $0x1118] sm:$0xff]
    %v1248 = vld [vmem:[#allocation8 + $0x1120] sm:$0xff]
    %v1249 = vld [vmem:[#allocation8 + $0x1128] sm:$0xff]
    %v1250 = vld [vmem:[#allocation8 + $0x1130] sm:$0xff]
    %v1251 = vld [vmem:[#allocation8 + $0x1138] sm:$0xff]
    %v1252 = vld [vmem:[#allocation8 + $0x1140] sm:$0xff]
    %v1253 = vld [vmem:[#allocation8 + $0x1148] sm:$0xff]
    %v1254 = vld [vmem:[#allocation8 + $0x1150] sm:$0xff]
    %v1255 = vld [vmem:[#allocation8 + $0x1158] sm:$0xff]
    %v1256 = vld [vmem:[#allocation8 + $0x1160] sm:$0xff]
    %v1257 = vld [vmem:[#allocation8 + $0x1168] sm:$0xff]
    %v1258 = vld [vmem:[#allocation8 + $0x1170] sm:$0xff]
    %v1259 = vld [vmem:[#allocation8 + $0x1178] sm:$0xff]
    %v1260 = vld [vmem:[#allocation8 + $0x1180] sm:$0xff]
    %v1261 = vld [vmem:[#allocation8 + $0x1188] sm:$0xff]
    %v1262 = vld [vmem:[#allocation8 + $0x1190] sm:$0xff]
    %v1263 = vld [vmem:[#allocation8 + $0x1198] sm:$0xff]
    %v1264 = vld [vmem:[#allocation8 + $0x11a0] sm:$0xff]
    %v1265 = vld [vmem:[#allocation8 + $0x11a8] sm:$0xff]
    %v1266 = vld [vmem:[#allocation8 + $0x11b0] sm:$0xff]
    %v1267 = vld [vmem:[#allocation8 + $0x11b8] sm:$0xff]
    %v1268 = vld [vmem:[#allocation8 + $0x11c0] sm:$0xff]
    %v1269 = vld [vmem:[#allocation8 + $0x11c8] sm:$0xff]
    %v1270 = vld [vmem:[#allocation8 + $0x11d0] sm:$0xff]
    %v1271 = vld [vmem:[#allocation8 + $0x11d8] sm:$0xff]
    %v1272 = vld [vmem:[#allocation8 + $0x11e0] sm:$0xff]
    %v1273 = vld [vmem:[#allocation8 + $0x11e8] sm:$0xff]
    %v1274 = vld [vmem:[#allocation8 + $0x11f0] sm:$0xff]
    %v1275 = vld [vmem:[#allocation8 + $0x11f8] sm:$0xff]
    %1276 = vmatprep.subr.mxu0 %v701
    %1277 = vmatpush1.msra.mxu0 %v700
    %1278 = vmatprep.subr.mxu0 %v707
    %1279 = vmatpush1.msra.mxu0 %v706
    %1280 = vmatprep.subr.mxu0 %v713
    %1281 = vmatpush1.msra.mxu0 %v712
    %1282 = vmatprep.subr.mxu0 %v719
    %1283 = vmatpush1.msra.mxu0 %v718
    %1284 = vmatprep.subr.mxu0 %v725
    %1285 = vmatpush1.msra.mxu0 %v724
    %1286 = vmatprep.subr.mxu0 %v731
    %1287 = vmatpush1.msra.mxu0 %v730
    %1288 = vmatprep.subr.mxu0 %v737
    %1289 = vmatpush1.msra.mxu0 %v736
    %1290 = vmatprep.subr.mxu0 %v743
    %1291 = vmatpush1.msra.mxu0 %v742
    %1292 = vmatprep.subr.mxu0 %v749
    %1293 = vmatpush1.msra.mxu0 %v748
    %1294 = vmatprep.subr.mxu0 %v755
    %1295 = vmatpush1.msra.mxu0 %v754
    %1296 = vmatprep.subr.mxu0 %v761
    %1297 = vmatpush1.msra.mxu0 %v760
    %1298 = vmatprep.subr.mxu0 %v767
    %1299 = vmatpush1.msra.mxu0 %v766
    %1300 = vmatprep.subr.mxu0 %v773
    %1301 = vmatpush1.msra.mxu0 %v772
    %1302 = vmatprep.subr.mxu0 %v779
    %1303 = vmatpush1.msra.mxu0 %v778
    %1304 = vmatprep.subr.mxu0 %v785
    %1305 = vmatpush1.msra.mxu0 %v784
    %1306 = vmatprep.subr.mxu0 %v791
    %1307 = vmatpush1.msra.mxu0 %v790
    %1308 = vmatprep.subr.mxu0 %v797
    %1309 = vmatpush1.msra.mxu0 %v796
    %1310 = vmatprep.subr.mxu0 %v803
    %1311 = vmatpush1.msra.mxu0 %v802
    %1312 = vmatprep.subr.mxu0 %v809
    %1313 = vmatpush1.msra.mxu0 %v808
    %1314 = vmatprep.subr.mxu0 %v815
    %1315 = vmatpush1.msra.mxu0 %v814
    %1316 = vmatprep.subr.mxu0 %v821
    %1317 = vmatpush1.msra.mxu0 %v820
    %1318 = vmatprep.subr.mxu0 %v827
    %1319 = vmatpush1.msra.mxu0 %v826
    %1320 = vmatprep.subr.mxu0 %v833
    %1321 = vmatpush1.msra.mxu0 %v832
    %1322 = vmatprep.subr.mxu0 %v839
    %1323 = vmatpush1.msra.mxu0 %v838
    %1324 = vmatprep.subr.mxu0 %v845
    %1325 = vmatpush1.msra.mxu0 %v844
    %1326 = vmatprep.subr.mxu0 %v851
    %1327 = vmatpush1.msra.mxu0 %v850
    %1328 = vmatprep.subr.mxu0 %v857
    %1329 = vmatpush1.msra.mxu0 %v856
    %1330 = vmatprep.subr.mxu0 %v863
    %1331 = vmatpush1.msra.mxu0 %v862
    %1332 = vmatprep.subr.mxu0 %v869
    %1333 = vmatpush1.msra.mxu0 %v868
    %1334 = vmatprep.subr.mxu0 %v875
    %1335 = vmatpush1.msra.mxu0 %v874
    %1336 = vmatprep.subr.mxu0 %v881
    %1337 = vmatpush1.msra.mxu0 %v880
    %1338 = vmatprep.subr.mxu0 %v887
    %1339 = vmatpush1.msra.mxu0 %v886
    %1340 = vmatprep.mubr.f32.mxu0 %v695
    %1341 = vmatmul.mubr.f32.gmra.mrb[0].mxu0 %v694
    %v1342 = vpop.f32.mrb[0].mxu0
    %v1343 = vadd.f32 0.0, %v1342
    %v1344 = vpop.f32.mrb[0].mxu0
    %v1345 = vadd.f32 0.0, %v1344
    %1346 = vdwg.mxu0
    %1347 = vmatprep.subr.mxu0 %v893
    %1348 = vmatpush1.msra.mxu0 %v892
    %1349 = vmatprep.subr.mxu0 %v899
    %1350 = vmatpush1.msra.mxu0 %v898
    %1351 = vmatprep.subr.mxu0 %v905
    %1352 = vmatpush1.msra.mxu0 %v904
    %1353 = vmatprep.subr.mxu0 %v911
    %1354 = vmatpush1.msra.mxu0 %v910
    %1355 = vmatprep.subr.mxu0 %v917
    %1356 = vmatpush1.msra.mxu0 %v916
    %1357 = vmatprep.subr.mxu0 %v923
    %1358 = vmatpush1.msra.mxu0 %v922
    %1359 = vmatprep.subr.mxu0 %v929
    %1360 = vmatpush1.msra.mxu0 %v928
    %1361 = vmatprep.subr.mxu0 %v935
    %1362 = vmatpush1.msra.mxu0 %v934
    %1363 = vmatprep.subr.mxu0 %v941
    %1364 = vmatpush1.msra.mxu0 %v940
    %1365 = vmatprep.subr.mxu0 %v947
    %1366 = vmatpush1.msra.mxu0 %v946
    %1367 = vmatprep.subr.mxu0 %v953
    %1368 = vmatpush1.msra.mxu0 %v952
    %1369 = vmatprep.subr.mxu0 %v959
    %1370 = vmatpush1.msra.mxu0 %v958
    %1371 = vmatprep.subr.mxu0 %v965
    %1372 = vmatpush1.msra.mxu0 %v964
    %1373 = vmatprep.subr.mxu0 %v971
    %1374 = vmatpush1.msra.mxu0 %v970
    %1375 = vmatprep.subr.mxu0 %v977
    %1376 = vmatpush1.msra.mxu0 %v976
    %1377 = vmatprep.subr.mxu0 %v983
    %1378 = vmatpush1.msra.mxu0 %v982
    %1379 = vmatprep.subr.mxu0 %v989
    %1380 = vmatpush1.msra.mxu0 %v988
    %1381 = vmatprep.subr.mxu0 %v995
    %1382 = vmatpush1.msra.mxu0 %v994
    %1383 = vmatprep.subr.mxu0 %v1001
    %1384 = vmatpush1.msra.mxu0 %v1000
    %1385 = vmatprep.subr.mxu0 %v1007
    %1386 = vmatpush1.msra.mxu0 %v1006
    %1387 = vmatprep.subr.mxu0 %v1013
    %1388 = vmatpush1.msra.mxu0 %v1012
    %1389 = vmatprep.subr.mxu0 %v1019
    %1390 = vmatpush1.msra.mxu0 %v1018
    %1391 = vmatprep.subr.mxu0 %v1025
    %1392 = vmatpush1.msra.mxu0 %v1024
    %1393 = vmatprep.subr.mxu0 %v1031
    %1394 = vmatpush1.msra.mxu0 %v1030
    %1395 = vmatprep.subr.mxu0 %v1037
    %1396 = vmatpush1.msra.mxu0 %v1036
    %1397 = vmatprep.subr.mxu0 %v1043
    %1398 = vmatpush1.msra.mxu0 %v1042
    %1399 = vmatprep.subr.mxu0 %v1049
    %1400 = vmatpush1.msra.mxu0 %v1048
    %1401 = vmatprep.subr.mxu0 %v1055
    %1402 = vmatpush1.msra.mxu0 %v1054
    %1403 = vmatprep.subr.mxu0 %v1061
    %1404 = vmatpush1.msra.mxu0 %v1060
    %1405 = vmatprep.subr.mxu0 %v1067
    %1406 = vmatpush1.msra.mxu0 %v1066
    %1407 = vmatprep.subr.mxu0 %v1073
    %1408 = vmatpush1.msra.mxu0 %v1072
    %1409 = vmatprep.subr.mxu0 %v1079
    %1410 = vmatpush1.msra.mxu0 %v1078
    %1411 = vmatprep.mubr.f32.mxu0 %v697
    %1412 = vmatmul.mubr.f32.gmra.mrb[0].mxu0 %v696
    %v1413 = vpop.f32.mrb[0].mxu0
    %v1414 = vadd.f32 %v1343, %v1413
    %v1415 = vpop.f32.mrb[0].mxu0
    %v1416 = vadd.f32 %v1345, %v1415
    %1417 = vdwg.mxu0
    %1418 = vmatprep.subr.mxu0 %v1085
    %1419 = vmatpush1.msra.mxu0 %v1084
    %1420 = vmatprep.subr.mxu0 %v1091
    %1421 = vmatpush1.msra.mxu0 %v1090
    %1422 = vmatprep.subr.mxu0 %v1097
    %1423 = vmatpush1.msra.mxu0 %v1096
    %1424 = vmatprep.subr.mxu0 %v1103
    %1425 = vmatpush1.msra.mxu0 %v1102
    %1426 = vmatprep.subr.mxu0 %v1109
    %1427 = vmatpush1.msra.mxu0 %v1108
    %1428 = vmatprep.subr.mxu0 %v1115
    %1429 = vmatpush1.msra.mxu0 %v1114
    %1430 = vmatprep.subr.mxu0 %v1121
    %1431 = vmatpush1.msra.mxu0 %v1120
    %1432 = vmatprep.subr.mxu0 %v1127
    %1433 = vmatpush1.msra.mxu0 %v1126
    %1434 = vmatprep.subr.mxu0 %v1133
    %1435 = vmatpush1.msra.mxu0 %v1132
    %1436 = vmatprep.subr.mxu0 %v1139
    %1437 = vmatpush1.msra.mxu0 %v1138
    %1438 = vmatprep.subr.mxu0 %v1145
    %1439 = vmatpush1.msra.mxu0 %v1144
    %1440 = vmatprep.subr.mxu0 %v1151
    %1441 = vmatpush1.msra.mxu0 %v1150
    %1442 = vmatprep.subr.mxu0 %v1157
    %1443 = vmatpush1.msra.mxu0 %v1156
    %1444 = vmatprep.subr.mxu0 %v1163
    %1445 = vmatpush1.msra.mxu0 %v1162
    %1446 = vmatprep.subr.mxu0 %v1169
    %1447 = vmatpush1.msra.mxu0 %v1168
    %1448 = vmatprep.subr.mxu0 %v1175
    %1449 = vmatpush1.msra.mxu0 %v1174
    %1450 = vmatprep.subr.mxu0 %v1181
    %1451 = vmatpush1.msra.mxu0 %v1180
    %1452 = vmatprep.subr.mxu0 %v1187
    %1453 = vmatpush1.msra.mxu0 %v1186
    %1454 = vmatprep.subr.mxu0 %v1193
    %1455 = vmatpush1.msra.mxu0 %v1192
    %1456 = vmatprep.subr.mxu0 %v1199
    %1457 = vmatpush1.msra.mxu0 %v1198
    %1458 = vmatprep.subr.mxu0 %v1205
    %1459 = vmatpush1.msra.mxu0 %v1204
    %1460 = vmatprep.subr.mxu0 %v1211
    %1461 = vmatpush1.msra.mxu0 %v1210
    %1462 = vmatprep.subr.mxu0 %v1217
    %1463 = vmatpush1.msra.mxu0 %v1216
    %1464 = vmatprep.subr.mxu0 %v1223
    %1465 = vmatpush1.msra.mxu0 %v1222
    %1466 = vmatprep.subr.mxu0 %v1229
    %1467 = vmatpush1.msra.mxu0 %v1228
    %1468 = vmatprep.subr.mxu0 %v1235
    %1469 = vmatpush1.msra.mxu0 %v1234
    %1470 = vmatprep.subr.mxu0 %v1241
    %1471 = vmatpush1.msra.mxu0 %v1240
    %1472 = vmatprep.subr.mxu0 %v1247
    %1473 = vmatpush1.msra.mxu0 %v1246
    %1474 = vmatprep.subr.mxu0 %v1253
    %1475 = vmatpush1.msra.mxu0 %v1252
    %1476 = vmatprep.subr.mxu0 %v1259
    %1477 = vmatpush1.msra.mxu0 %v1258
    %1478 = vmatprep.subr.mxu0 %v1265
    %1479 = vmatpush1.msra.mxu0 %v1264
    %1480 = vmatprep.subr.mxu0 %v1271
    %1481 = vmatpush1.msra.mxu0 %v1270
    %1482 = vmatprep.mubr.f32.mxu0 %v699
    %1483 = vmatmul.mubr.f32.gmra.mrb[0].mxu0 %v698
    %v1484 = vpop.f32.mrb[0].mxu0
    %v1485 = vadd.f32 %v1414, %v1484
    %v1486 = vpop.f32.mrb[0].mxu0
    %v1487 = vadd.f32 %v1416, %v1486
    %1488 = vdwg.mxu0
    %1489 = vmatprep.subr.mxu0 %v703
    %1490 = vmatpush1.msra.mxu0 %v702
    %1491 = vmatprep.subr.mxu0 %v709
    %1492 = vmatpush1.msra.mxu0 %v708
    %1493 = vmatprep.subr.mxu0 %v715
    %1494 = vmatpush1.msra.mxu0 %v714
    %1495 = vmatprep.subr.mxu0 %v721
    %1496 = vmatpush1.msra.mxu0 %v720
    %1497 = vmatprep.subr.mxu0 %v727
    %1498 = vmatpush1.msra.mxu0 %v726
    %1499 = vmatprep.subr.mxu0 %v733
    %1500 = vmatpush1.msra.mxu0 %v732
    %1501 = vmatprep.subr.mxu0 %v739
    %1502 = vmatpush1.msra.mxu0 %v738
    %1503 = vmatprep.subr.mxu0 %v745
    %1504 = vmatpush1.msra.mxu0 %v744
    %1505 = vmatprep.subr.mxu0 %v751
    %1506 = vmatpush1.msra.mxu0 %v750
    %1507 = vmatprep.subr.mxu0 %v757
    %1508 = vmatpush1.msra.mxu0 %v756
    %1509 = vmatprep.subr.mxu0 %v763
    %1510 = vmatpush1.msra.mxu0 %v762
    %1511 = vmatprep.subr.mxu0 %v769
    %1512 = vmatpush1.msra.mxu0 %v768
    %1513 = vmatprep.subr.mxu0 %v775
    %1514 = vmatpush1.msra.mxu0 %v774
    %1515 = vmatprep.subr.mxu0 %v781
    %1516 = vmatpush1.msra.mxu0 %v780
    %1517 = vmatprep.subr.mxu0 %v787
    %1518 = vmatpush1.msra.mxu0 %v786
    %1519 = vmatprep.subr.mxu0 %v793
    %1520 = vmatpush1.msra.mxu0 %v792
    %1521 = vmatprep.subr.mxu0 %v799
    %1522 = vmatpush1.msra.mxu0 %v798
    %1523 = vmatprep.subr.mxu0 %v805
    %1524 = vmatpush1.msra.mxu0 %v804
    %1525 = vmatprep.subr.mxu0 %v811
    %1526 = vmatpush1.msra.mxu0 %v810
    %1527 = vmatprep.subr.mxu0 %v817
    %1528 = vmatpush1.msra.mxu0 %v816
    %1529 = vmatprep.subr.mxu0 %v823
    %1530 = vmatpush1.msra.mxu0 %v822
    %1531 = vmatprep.subr.mxu0 %v829
    %1532 = vmatpush1.msra.mxu0 %v828
    %1533 = vmatprep.subr.mxu0 %v835
    %1534 = vmatpush1.msra.mxu0 %v834
    %1535 = vmatprep.subr.mxu0 %v841
    %1536 = vmatpush1.msra.mxu0 %v840
    %1537 = vmatprep.subr.mxu0 %v847
    %1538 = vmatpush1.msra.mxu0 %v846
    %1539 = vmatprep.subr.mxu0 %v853
    %1540 = vmatpush1.msra.mxu0 %v852
    %1541 = vmatprep.subr.mxu0 %v859
    %1542 = vmatpush1.msra.mxu0 %v858
    %1543 = vmatprep.subr.mxu0 %v865
    %1544 = vmatpush1.msra.mxu0 %v864
    %1545 = vmatprep.subr.mxu0 %v871
    %1546 = vmatpush1.msra.mxu0 %v870
    %1547 = vmatprep.subr.mxu0 %v877
    %1548 = vmatpush1.msra.mxu0 %v876
    %1549 = vmatprep.subr.mxu0 %v883
    %1550 = vmatpush1.msra.mxu0 %v882
    %1551 = vmatprep.subr.mxu0 %v889
    %1552 = vmatpush1.msra.mxu0 %v888
    %1553 = vmatprep.mubr.f32.mxu0 %v695
    %1554 = vmatmul.mubr.f32.gmra.mrb[0].mxu0 %v694
    %v1555 = vpop.f32.mrb[0].mxu0
    %v1556 = vadd.f32 0.0, %v1555
    %v1557 = vpop.f32.mrb[0].mxu0
    %v1558 = vadd.f32 0.0, %v1557
    %1559 = vdwg.mxu0
    %1560 = vmatprep.subr.mxu0 %v895
    %1561 = vmatpush1.msra.mxu0 %v894
    %1562 = vmatprep.subr.mxu0 %v901
    %1563 = vmatpush1.msra.mxu0 %v900
    %1564 = vmatprep.subr.mxu0 %v907
    %1565 = vmatpush1.msra.mxu0 %v906
    %1566 = vmatprep.subr.mxu0 %v913
    %1567 = vmatpush1.msra.mxu0 %v912
    %1568 = vmatprep.subr.mxu0 %v919
    %1569 = vmatpush1.msra.mxu0 %v918
    %1570 = vmatprep.subr.mxu0 %v925
    %1571 = vmatpush1.msra.mxu0 %v924
    %1572 = vmatprep.subr.mxu0 %v931
    %1573 = vmatpush1.msra.mxu0 %v930
    %1574 = vmatprep.subr.mxu0 %v937
    %1575 = vmatpush1.msra.mxu0 %v936
    %1576 = vmatprep.subr.mxu0 %v943
    %1577 = vmatpush1.msra.mxu0 %v942
    %1578 = vmatprep.subr.mxu0 %v949
    %1579 = vmatpush1.msra.mxu0 %v948
    %1580 = vmatprep.subr.mxu0 %v955
    %1581 = vmatpush1.msra.mxu0 %v954
    %1582 = vmatprep.subr.mxu0 %v961
    %1583 = vmatpush1.msra.mxu0 %v960
    %1584 = vmatprep.subr.mxu0 %v967
    %1585 = vmatpush1.msra.mxu0 %v966
    %1586 = vmatprep.subr.mxu0 %v973
    %1587 = vmatpush1.msra.mxu0 %v972
    %1588 = vmatprep.subr.mxu0 %v979
    %1589 = vmatpush1.msra.mxu0 %v978
    %1590 = vmatprep.subr.mxu0 %v985
    %1591 = vmatpush1.msra.mxu0 %v984
    %1592 = vmatprep.subr.mxu0 %v991
    %1593 = vmatpush1.msra.mxu0 %v990
    %1594 = vmatprep.subr.mxu0 %v997
    %1595 = vmatpush1.msra.mxu0 %v996
    %1596 = vmatprep.subr.mxu0 %v1003
    %1597 = vmatpush1.msra.mxu0 %v1002
    %1598 = vmatprep.subr.mxu0 %v1009
    %1599 = vmatpush1.msra.mxu0 %v1008
    %1600 = vmatprep.subr.mxu0 %v1015
    %1601 = vmatpush1.msra.mxu0 %v1014
    %1602 = vmatprep.subr.mxu0 %v1021
    %1603 = vmatpush1.msra.mxu0 %v1020
    %1604 = vmatprep.subr.mxu0 %v1027
    %1605 = vmatpush1.msra.mxu0 %v1026
    %1606 = vmatprep.subr.mxu0 %v1033
    %1607 = vmatpush1.msra.mxu0 %v1032
    %1608 = vmatprep.subr.mxu0 %v1039
    %1609 = vmatpush1.msra.mxu0 %v1038
    %1610 = vmatprep.subr.mxu0 %v1045
    %1611 = vmatpush1.msra.mxu0 %v1044
    %1612 = vmatprep.subr.mxu0 %v1051
    %1613 = vmatpush1.msra.mxu0 %v1050
    %1614 = vmatprep.subr.mxu0 %v1057
    %1615 = vmatpush1.msra.mxu0 %v1056
    %1616 = vmatprep.subr.mxu0 %v1063
    %1617 = vmatpush1.msra.mxu0 %v1062
    %1618 = vmatprep.subr.mxu0 %v1069
    %1619 = vmatpush1.msra.mxu0 %v1068
    %1620 = vmatprep.subr.mxu0 %v1075
    %1621 = vmatpush1.msra.mxu0 %v1074
    %1622 = vmatprep.subr.mxu0 %v1081
    %1623 = vmatpush1.msra.mxu0 %v1080
    %1624 = vmatprep.mubr.f32.mxu0 %v697
    %1625 = vmatmul.mubr.f32.gmra.mrb[0].mxu0 %v696
    %v1626 = vpop.f32.mrb[0].mxu0
    %v1627 = vadd.f32 %v1556, %v1626
    %v1628 = vpop.f32.mrb[0].mxu0
    %v1629 = vadd.f32 %v1558, %v1628
    %1630 = vdwg.mxu0
    %1631 = vmatprep.subr.mxu0 %v1087
    %1632 = vmatpush1.msra.mxu0 %v1086
    %1633 = vmatprep.subr.mxu0 %v1093
    %1634 = vmatpush1.msra.mxu0 %v1092
    %1635 = vmatprep.subr.mxu0 %v1099
    %1636 = vmatpush1.msra.mxu0 %v1098
    %1637 = vmatprep.subr.mxu0 %v1105
    %1638 = vmatpush1.msra.mxu0 %v1104
    %1639 = vmatprep.subr.mxu0 %v1111
    %1640 = vmatpush1.msra.mxu0 %v1110
    %1641 = vmatprep.subr.mxu0 %v1117
    %1642 = vmatpush1.msra.mxu0 %v1116
    %1643 = vmatprep.subr.mxu0 %v1123
    %1644 = vmatpush1.msra.mxu0 %v1122
    %1645 = vmatprep.subr.mxu0 %v1129
    %1646 = vmatpush1.msra.mxu0 %v1128
    %1647 = vmatprep.subr.mxu0 %v1135
    %1648 = vmatpush1.msra.mxu0 %v1134
    %1649 = vmatprep.subr.mxu0 %v1141
    %1650 = vmatpush1.msra.mxu0 %v1140
    %1651 = vmatprep.subr.mxu0 %v1147
    %1652 = vmatpush1.msra.mxu0 %v1146
    %1653 = vmatprep.subr.mxu0 %v1153
    %1654 = vmatpush1.msra.mxu0 %v1152
    %1655 = vmatprep.subr.mxu0 %v1159
    %1656 = vmatpush1.msra.mxu0 %v1158
    %1657 = vmatprep.subr.mxu0 %v1165
    %1658 = vmatpush1.msra.mxu0 %v1164
    %1659 = vmatprep.subr.mxu0 %v1171
    %1660 = vmatpush1.msra.mxu0 %v1170
    %1661 = vmatprep.subr.mxu0 %v1177
    %1662 = vmatpush1.msra.mxu0 %v1176
    %1663 = vmatprep.subr.mxu0 %v1183
    %1664 = vmatpush1.msra.mxu0 %v1182
    %1665 = vmatprep.subr.mxu0 %v1189
    %1666 = vmatpush1.msra.mxu0 %v1188
    %1667 = vmatprep.subr.mxu0 %v1195
    %1668 = vmatpush1.msra.mxu0 %v1194
    %1669 = vmatprep.subr.mxu0 %v1201
    %1670 = vmatpush1.msra.mxu0 %v1200
    %1671 = vmatprep.subr.mxu0 %v1207
    %1672 = vmatpush1.msra.mxu0 %v1206
    %1673 = vmatprep.subr.mxu0 %v1213
    %1674 = vmatpush1.msra.mxu0 %v1212
    %1675 = vmatprep.subr.mxu0 %v1219
    %1676 = vmatpush1.msra.mxu0 %v1218
    %1677 = vmatprep.subr.mxu0 %v1225
    %1678 = vmatpush1.msra.mxu0 %v1224
    %1679 = vmatprep.subr.mxu0 %v1231
    %1680 = vmatpush1.msra.mxu0 %v1230
    %1681 = vmatprep.subr.mxu0 %v1237
    %1682 = vmatpush1.msra.mxu0 %v1236
    %1683 = vmatprep.subr.mxu0 %v1243
    %1684 = vmatpush1.msra.mxu0 %v1242
    %1685 = vmatprep.subr.mxu0 %v1249
    %1686 = vmatpush1.msra.mxu0 %v1248
    %1687 = vmatprep.subr.mxu0 %v1255
    %1688 = vmatpush1.msra.mxu0 %v1254
    %1689 = vmatprep.subr.mxu0 %v1261
    %1690 = vmatpush1.msra.mxu0 %v1260
    %1691 = vmatprep.subr.mxu0 %v1267
    %1692 = vmatpush1.msra.mxu0 %v1266
    %1693 = vmatprep.subr.mxu0 %v1273
    %1694 = vmatpush1.msra.mxu0 %v1272
    %1695 = vmatprep.mubr.f32.mxu0 %v699
    %1696 = vmatmul.mubr.f32.gmra.mrb[0].mxu0 %v698
    %v1697 = vpop.f32.mrb[0].mxu0
    %v1698 = vadd.f32 %v1627, %v1697
    %v1699 = vpop.f32.mrb[0].mxu0
    %v1700 = vadd.f32 %v1629, %v1699
    %1701 = vdwg.mxu0
    %1702 = vmatprep.subr.mxu0 %v705
    %1703 = vmatpush1.msra.mxu0 %v704
    %1704 = vmatprep.subr.mxu0 %v711
    %1705 = vmatpush1.msra.mxu0 %v710
    %1706 = vmatprep.subr.mxu0 %v717
    %1707 = vmatpush1.msra.mxu0 %v716
    %1708 = vmatprep.subr.mxu0 %v723
    %1709 = vmatpush1.msra.mxu0 %v722
    %1710 = vmatprep.subr.mxu0 %v729
    %1711 = vmatpush1.msra.mxu0 %v728
    %1712 = vmatprep.subr.mxu0 %v735
    %1713 = vmatpush1.msra.mxu0 %v734
    %1714 = vmatprep.subr.mxu0 %v741
    %1715 = vmatpush1.msra.mxu0 %v740
    %1716 = vmatprep.subr.mxu0 %v747
    %1717 = vmatpush1.msra.mxu0 %v746
    %1718 = vmatprep.subr.mxu0 %v753
    %1719 = vmatpush1.msra.mxu0 %v752
    %1720 = vmatprep.subr.mxu0 %v759
    %1721 = vmatpush1.msra.mxu0 %v758
    %1722 = vmatprep.subr.mxu0 %v765
    %1723 = vmatpush1.msra.mxu0 %v764
    %1724 = vmatprep.subr.mxu0 %v771
    %1725 = vmatpush1.msra.mxu0 %v770
    %1726 = vmatprep.subr.mxu0 %v777
    %1727 = vmatpush1.msra.mxu0 %v776
    %1728 = vmatprep.subr.mxu0 %v783
    %1729 = vmatpush1.msra.mxu0 %v782
    %1730 = vmatprep.subr.mxu0 %v789
    %1731 = vmatpush1.msra.mxu0 %v788
    %1732 = vmatprep.subr.mxu0 %v795
    %1733 = vmatpush1.msra.mxu0 %v794
    %1734 = vmatprep.subr.mxu0 %v801
    %1735 = vmatpush1.msra.mxu0 %v800
    %1736 = vmatprep.subr.mxu0 %v807
    %1737 = vmatpush1.msra.mxu0 %v806
    %1738 = vmatprep.subr.mxu0 %v813
    %1739 = vmatpush1.msra.mxu0 %v812
    %1740 = vmatprep.subr.mxu0 %v819
    %1741 = vmatpush1.msra.mxu0 %v818
    %1742 = vmatprep.subr.mxu0 %v825
    %1743 = vmatpush1.msra.mxu0 %v824
    %1744 = vmatprep.subr.mxu0 %v831
    %1745 = vmatpush1.msra.mxu0 %v830
    %1746 = vmatprep.subr.mxu0 %v837
    %1747 = vmatpush1.msra.mxu0 %v836
    %1748 = vmatprep.subr.mxu0 %v843
    %1749 = vmatpush1.msra.mxu0 %v842
    %1750 = vmatprep.subr.mxu0 %v849
    %1751 = vmatpush1.msra.mxu0 %v848
    %1752 = vmatprep.subr.mxu0 %v855
    %1753 = vmatpush1.msra.mxu0 %v854
    %1754 = vmatprep.subr.mxu0 %v861
    %1755 = vmatpush1.msra.mxu0 %v860
    %1756 = vmatprep.subr.mxu0 %v867
    %1757 = vmatpush1.msra.mxu0 %v866
    %1758 = vmatprep.subr.mxu0 %v873
    %1759 = vmatpush1.msra.mxu0 %v872
    %1760 = vmatprep.subr.mxu0 %v879
    %1761 = vmatpush1.msra.mxu0 %v878
    %1762 = vmatprep.subr.mxu0 %v885
    %1763 = vmatpush1.msra.mxu0 %v884
    %1764 = vmatprep.subr.mxu0 %v891
    %1765 = vmatpush1.msra.mxu0 %v890
    %1766 = vmatprep.mubr.f32.mxu0 %v695
    %1767 = vmatmul.mubr.f32.gmra.mrb[0].mxu0 %v694
    %v1768 = vpop.f32.mrb[0].mxu0
    %v1769 = vadd.f32 0.0, %v1768
    %v1770 = vpop.f32.mrb[0].mxu0
    %v1771 = vadd.f32 0.0, %v1770
    %1772 = vdwg.mxu0
    %1773 = vmatprep.subr.mxu0 %v897
    %1774 = vmatpush1.msra.mxu0 %v896
    %1775 = vmatprep.subr.mxu0 %v903
    %1776 = vmatpush1.msra.mxu0 %v902
    %1777 = vmatprep.subr.mxu0 %v909
    %1778 = vmatpush1.msra.mxu0 %v908
    %1779 = vmatprep.subr.mxu0 %v915
    %1780 = vmatpush1.msra.mxu0 %v914
    %1781 = vmatprep.subr.mxu0 %v921
    %1782 = vmatpush1.msra.mxu0 %v920
    %1783 = vmatprep.subr.mxu0 %v927
    %1784 = vmatpush1.msra.mxu0 %v926
    %1785 = vmatprep.subr.mxu0 %v933
    %1786 = vmatpush1.msra.mxu0 %v932
    %1787 = vmatprep.subr.mxu0 %v939
    %1788 = vmatpush1.msra.mxu0 %v938
    %1789 = vmatprep.subr.mxu0 %v945
    %1790 = vmatpush1.msra.mxu0 %v944
    %1791 = vmatprep.subr.mxu0 %v951
    %1792 = vmatpush1.msra.mxu0 %v950
    %1793 = vmatprep.subr.mxu0 %v957
    %1794 = vmatpush1.msra.mxu0 %v956
    %1795 = vmatprep.subr.mxu0 %v963
    %1796 = vmatpush1.msra.mxu0 %v962
    %1797 = vmatprep.subr.mxu0 %v969
    %1798 = vmatpush1.msra.mxu0 %v968
    %1799 = vmatprep.subr.mxu0 %v975
    %1800 = vmatpush1.msra.mxu0 %v974
    %1801 = vmatprep.subr.mxu0 %v981
    %1802 = vmatpush1.msra.mxu0 %v980
    %1803 = vmatprep.subr.mxu0 %v987
    %1804 = vmatpush1.msra.mxu0 %v986
    %1805 = vmatprep.subr.mxu0 %v993
    %1806 = vmatpush1.msra.mxu0 %v992
    %1807 = vmatprep.subr.mxu0 %v999
    %1808 = vmatpush1.msra.mxu0 %v998
    %1809 = vmatprep.subr.mxu0 %v1005
    %1810 = vmatpush1.msra.mxu0 %v1004
    %1811 = vmatprep.subr.mxu0 %v1011
    %1812 = vmatpush1.msra.mxu0 %v1010
    %1813 = vmatprep.subr.mxu0 %v1017
    %1814 = vmatpush1.msra.mxu0 %v1016
    %1815 = vmatprep.subr.mxu0 %v1023
    %1816 = vmatpush1.msra.mxu0 %v1022
    %1817 = vmatprep.subr.mxu0 %v1029
    %1818 = vmatpush1.msra.mxu0 %v1028
    %1819 = vmatprep.subr.mxu0 %v1035
    %1820 = vmatpush1.msra.mxu0 %v1034
    %1821 = vmatprep.subr.mxu0 %v1041
    %1822 = vmatpush1.msra.mxu0 %v1040
    %1823 = vmatprep.subr.mxu0 %v1047
    %1824 = vmatpush1.msra.mxu0 %v1046
    %1825 = vmatprep.subr.mxu0 %v1053
    %1826 = vmatpush1.msra.mxu0 %v1052
    %1827 = vmatprep.subr.mxu0 %v1059
    %1828 = vmatpush1.msra.mxu0 %v1058
    %1829 = vmatprep.subr.mxu0 %v1065
    %1830 = vmatpush1.msra.mxu0 %v1064
    %1831 = vmatprep.subr.mxu0 %v1071
    %1832 = vmatpush1.msra.mxu0 %v1070
    %1833 = vmatprep.subr.mxu0 %v1077
    %1834 = vmatpush1.msra.mxu0 %v1076
    %1835 = vmatprep.subr.mxu0 %v1083
    %1836 = vmatpush1.msra.mxu0 %v1082
    %1837 = vmatprep.mubr.f32.mxu0 %v697
    %1838 = vmatmul.mubr.f32.gmra.mrb[0].mxu0 %v696
    %v1839 = vpop.f32.mrb[0].mxu0
    %v1840 = vadd.f32 %v1769, %v1839
    %v1841 = vpop.f32.mrb[0].mxu0
    %v1842 = vadd.f32 %v1771, %v1841
    %1843 = vdwg.mxu0
    %1844 = vmatprep.subr.mxu0 %v1089
    %1845 = vmatpush1.msra.mxu0 %v1088
    %1846 = vmatprep.subr.mxu0 %v1095
    %1847 = vmatpush1.msra.mxu0 %v1094
    %1848 = vmatprep.subr.mxu0 %v1101
    %1849 = vmatpush1.msra.mxu0 %v1100
    %1850 = vmatprep.subr.mxu0 %v1107
    %1851 = vmatpush1.msra.mxu0 %v1106
    %1852 = vmatprep.subr.mxu0 %v1113
    %1853 = vmatpush1.msra.mxu0 %v1112
    %1854 = vmatprep.subr.mxu0 %v1119
    %1855 = vmatpush1.msra.mxu0 %v1118
    %1856 = vmatprep.subr.mxu0 %v1125
    %1857 = vmatpush1.msra.mxu0 %v1124
    %1858 = vmatprep.subr.mxu0 %v1131
    %1859 = vmatpush1.msra.mxu0 %v1130
    %1860 = vmatprep.subr.mxu0 %v1137
    %1861 = vmatpush1.msra.mxu0 %v1136
    %1862 = vmatprep.subr.mxu0 %v1143
    %1863 = vmatpush1.msra.mxu0 %v1142
    %1864 = vmatprep.subr.mxu0 %v1149
    %1865 = vmatpush1.msra.mxu0 %v1148
    %1866 = vmatprep.subr.mxu0 %v1155
    %1867 = vmatpush1.msra.mxu0 %v1154
    %1868 = vmatprep.subr.mxu0 %v1161
    %1869 = vmatpush1.msra.mxu0 %v1160
    %1870 = vmatprep.subr.mxu0 %v1167
    %1871 = vmatpush1.msra.mxu0 %v1166
    %1872 = vmatprep.subr.mxu0 %v1173
    %1873 = vmatpush1.msra.mxu0 %v1172
    %1874 = vmatprep.subr.mxu0 %v1179
    %1875 = vmatpush1.msra.mxu0 %v1178
    %1876 = vmatprep.subr.mxu0 %v1185
    %1877 = vmatpush1.msra.mxu0 %v1184
    %1878 = vmatprep.subr.mxu0 %v1191
    %1879 = vmatpush1.msra.mxu0 %v1190
    %1880 = vmatprep.subr.mxu0 %v1197
    %1881 = vmatpush1.msra.mxu0 %v1196
    %1882 = vmatprep.subr.mxu0 %v1203
    %1883 = vmatpush1.msra.mxu0 %v1202
    %1884 = vmatprep.subr.mxu0 %v1209
    %1885 = vmatpush1.msra.mxu0 %v1208
    %1886 = vmatprep.subr.mxu0 %v1215
    %1887 = vmatpush1.msra.mxu0 %v1214
    %1888 = vmatprep.subr.mxu0 %v1221
    %1889 = vmatpush1.msra.mxu0 %v1220
    %1890 = vmatprep.subr.mxu0 %v1227
    %1891 = vmatpush1.msra.mxu0 %v1226
    %1892 = vmatprep.subr.mxu0 %v1233
    %1893 = vmatpush1.msra.mxu0 %v1232
    %1894 = vmatprep.subr.mxu0 %v1239
    %1895 = vmatpush1.msra.mxu0 %v1238
    %1896 = vmatprep.subr.mxu0 %v1245
    %1897 = vmatpush1.msra.mxu0 %v1244
    %1898 = vmatprep.subr.mxu0 %v1251
    %1899 = vmatpush1.msra.mxu0 %v1250
    %1900 = vmatprep.subr.mxu0 %v1257
    %1901 = vmatpush1.msra.mxu0 %v1256
    %1902 = vmatprep.subr.mxu0 %v1263
    %1903 = vmatpush1.msra.mxu0 %v1262
    %1904 = vmatprep.subr.mxu0 %v1269
    %1905 = vmatpush1.msra.mxu0 %v1268
    %1906 = vmatprep.subr.mxu0 %v1275
    %1907 = vmatpush1.msra.mxu0 %v1274
    %1908 = vmatprep.mubr.f32.mxu0 %v699
    %1909 = vmatmul.mubr.f32.gmra.mrb[0].mxu0 %v698
    %v1910 = vpop.f32.mrb[0].mxu0
    %v1911 = vadd.f32 %v1840, %v1910
    %v1912 = vpop.f32.mrb[0].mxu0
    %v1913 = vadd.f32 %v1842, %v1912
    %1914 = vdwg.mxu0
    %1915 = vmatprep.subr.mxu0 %v119
    %1916 = vmatpush1.msra.mxu0 %v118
    %1917 = vmatprep.subr.mxu0 %v125
    %1918 = vmatpush1.msra.mxu0 %v124
    %1919 = vmatprep.subr.mxu0 %v131
    %1920 = vmatpush1.msra.mxu0 %v130
    %1921 = vmatprep.subr.mxu0 %v137
    %1922 = vmatpush1.msra.mxu0 %v136
    %1923 = vmatprep.subr.mxu0 %v143
    %1924 = vmatpush1.msra.mxu0 %v142
    %1925 = vmatprep.subr.mxu0 %v149
    %1926 = vmatpush1.msra.mxu0 %v148
    %1927 = vmatprep.subr.mxu0 %v155
    %1928 = vmatpush1.msra.mxu0 %v154
    %1929 = vmatprep.subr.mxu0 %v161
    %1930 = vmatpush1.msra.mxu0 %v160
    %1931 = vmatprep.subr.mxu0 %v167
    %1932 = vmatpush1.msra.mxu0 %v166
    %1933 = vmatprep.subr.mxu0 %v173
    %1934 = vmatpush1.msra.mxu0 %v172
    %1935 = vmatprep.subr.mxu0 %v179
    %1936 = vmatpush1.msra.mxu0 %v178
    %1937 = vmatprep.subr.mxu0 %v185
    %1938 = vmatpush1.msra.mxu0 %v184
    %1939 = vmatprep.subr.mxu0 %v191
    %1940 = vmatpush1.msra.mxu0 %v190
    %1941 = vmatprep.subr.mxu0 %v197
    %1942 = vmatpush1.msra.mxu0 %v196
    %1943 = vmatprep.subr.mxu0 %v203
    %1944 = vmatpush1.msra.mxu0 %v202
    %1945 = vmatprep.subr.mxu0 %v209
    %1946 = vmatpush1.msra.mxu0 %v208
    %1947 = vmatprep.subr.mxu0 %v215
    %1948 = vmatpush1.msra.mxu0 %v214
    %1949 = vmatprep.subr.mxu0 %v221
    %1950 = vmatpush1.msra.mxu0 %v220
    %1951 = vmatprep.subr.mxu0 %v227
    %1952 = vmatpush1.msra.mxu0 %v226
    %1953 = vmatprep.subr.mxu0 %v233
    %1954 = vmatpush1.msra.mxu0 %v232
    %1955 = vmatprep.subr.mxu0 %v239
    %1956 = vmatpush1.msra.mxu0 %v238
    %1957 = vmatprep.subr.mxu0 %v245
    %1958 = vmatpush1.msra.mxu0 %v244
    %1959 = vmatprep.subr.mxu0 %v251
    %1960 = vmatpush1.msra.mxu0 %v250
    %1961 = vmatprep.subr.mxu0 %v257
    %1962 = vmatpush1.msra.mxu0 %v256
    %1963 = vmatprep.subr.mxu0 %v263
    %1964 = vmatpush1.msra.mxu0 %v262
    %1965 = vmatprep.subr.mxu0 %v269
    %1966 = vmatpush1.msra.mxu0 %v268
    %1967 = vmatprep.subr.mxu0 %v275
    %1968 = vmatpush1.msra.mxu0 %v274
    %1969 = vmatprep.subr.mxu0 %v281
    %1970 = vmatpush1.msra.mxu0 %v280
    %1971 = vmatprep.subr.mxu0 %v287
    %1972 = vmatpush1.msra.mxu0 %v286
    %1973 = vmatprep.subr.mxu0 %v293
    %1974 = vmatpush1.msra.mxu0 %v292
    %1975 = vmatprep.subr.mxu0 %v299
    %1976 = vmatpush1.msra.mxu0 %v298
    %1977 = vmatprep.subr.mxu0 %v305
    %1978 = vmatpush1.msra.mxu0 %v304
    %1979 = vmatprep.mubr.f32.mxu0 %v113
    %1980 = vmatmul.mubr.f32.gmra.mrb[0].mxu0 %v112
    %v1981 = vpop.f32.mrb[0].mxu0
    %v1982 = vadd.f32 %v1485, %v1981
    %v1983 = vpop.f32.mrb[0].mxu0
    %v1984 = vadd.f32 %v1487, %v1983
    %1985 = vdwg.mxu0
    %1986 = vmatprep.subr.mxu0 %v311
    %1987 = vmatpush1.msra.mxu0 %v310
    %1988 = vmatprep.subr.mxu0 %v317
    %1989 = vmatpush1.msra.mxu0 %v316
    %1990 = vmatprep.subr.mxu0 %v323
    %1991 = vmatpush1.msra.mxu0 %v322
    %1992 = vmatprep.subr.mxu0 %v329
    %1993 = vmatpush1.msra.mxu0 %v328
    %1994 = vmatprep.subr.mxu0 %v335
    %1995 = vmatpush1.msra.mxu0 %v334
    %1996 = vmatprep.subr.mxu0 %v341
    %1997 = vmatpush1.msra.mxu0 %v340
    %1998 = vmatprep.subr.mxu0 %v347
    %1999 = vmatpush1.msra.mxu0 %v346
    %2000 = vmatprep.subr.mxu0 %v353
    %2001 = vmatpush1.msra.mxu0 %v352
    %2002 = vmatprep.subr.mxu0 %v359
    %2003 = vmatpush1.msra.mxu0 %v358
    %2004 = vmatprep.subr.mxu0 %v365
    %2005 = vmatpush1.msra.mxu0 %v364
    %2006 = vmatprep.subr.mxu0 %v371
    %2007 = vmatpush1.msra.mxu0 %v370
    %2008 = vmatprep.subr.mxu0 %v377
    %2009 = vmatpush1.msra.mxu0 %v376
    %2010 = vmatprep.subr.mxu0 %v383
    %2011 = vmatpush1.msra.mxu0 %v382
    %2012 = vmatprep.subr.mxu0 %v389
    %2013 = vmatpush1.msra.mxu0 %v388
    %2014 = vmatprep.subr.mxu0 %v395
    %2015 = vmatpush1.msra.mxu0 %v394
    %2016 = vmatprep.subr.mxu0 %v401
    %2017 = vmatpush1.msra.mxu0 %v400
    %2018 = vmatprep.subr.mxu0 %v407
    %2019 = vmatpush1.msra.mxu0 %v406
    %2020 = vmatprep.subr.mxu0 %v413
    %2021 = vmatpush1.msra.mxu0 %v412
    %2022 = vmatprep.subr.mxu0 %v419
    %2023 = vmatpush1.msra.mxu0 %v418
    %2024 = vmatprep.subr.mxu0 %v425
    %2025 = vmatpush1.msra.mxu0 %v424
    %2026 = vmatprep.subr.mxu0 %v431
    %2027 = vmatpush1.msra.mxu0 %v430
    %2028 = vmatprep.subr.mxu0 %v437
    %2029 = vmatpush1.msra.mxu0 %v436
    %2030 = vmatprep.subr.mxu0 %v443
    %2031 = vmatpush1.msra.mxu0 %v442
    %2032 = vmatprep.subr.mxu0 %v449
    %2033 = vmatpush1.msra.mxu0 %v448
    %2034 = vmatprep.subr.mxu0 %v455
    %2035 = vmatpush1.msra.mxu0 %v454
    %2036 = vmatprep.subr.mxu0 %v461
    %2037 = vmatpush1.msra.mxu0 %v460
    %2038 = vmatprep.subr.mxu0 %v467
    %2039 = vmatpush1.msra.mxu0 %v466
    %2040 = vmatprep.subr.mxu0 %v473
    %2041 = vmatpush1.msra.mxu0 %v472
    %2042 = vmatprep.subr.mxu0 %v479
    %2043 = vmatpush1.msra.mxu0 %v478
    %2044 = vmatprep.subr.mxu0 %v485
    %2045 = vmatpush1.msra.mxu0 %v484
    %2046 = vmatprep.subr.mxu0 %v491
    %2047 = vmatpush1.msra.mxu0 %v490
    %2048 = vmatprep.subr.mxu0 %v497
    %2049 = vmatpush1.msra.mxu0 %v496
    %2050 = vmatprep.mubr.f32.mxu0 %v115
    %2051 = vmatmul.mubr.f32.gmra.mrb[0].mxu0 %v114
    %v2052 = vpop.f32.mrb[0].mxu0
    %v2053 = vadd.f32 %v1982, %v2052
    %v2054 = vpop.f32.mrb[0].mxu0
    %v2055 = vadd.f32 %v1984, %v2054
    %2056 = vdwg.mxu0
    %2057 = vmatprep.subr.mxu0 %v503
    %2058 = vmatpush1.msra.mxu0 %v502
    %2059 = vmatprep.subr.mxu0 %v509
    %2060 = vmatpush1.msra.mxu0 %v508
    %2061 = vmatprep.subr.mxu0 %v515
    %2062 = vmatpush1.msra.mxu0 %v514
    %2063 = vmatprep.subr.mxu0 %v521
    %2064 = vmatpush1.msra.mxu0 %v520
    %2065 = vmatprep.subr.mxu0 %v527
    %2066 = vmatpush1.msra.mxu0 %v526
    %2067 = vmatprep.subr.mxu0 %v533
    %2068 = vmatpush1.msra.mxu0 %v532
    %2069 = vmatprep.subr.mxu0 %v539
    %2070 = vmatpush1.msra.mxu0 %v538
    %2071 = vmatprep.subr.mxu0 %v545
    %2072 = vmatpush1.msra.mxu0 %v544
    %2073 = vmatprep.subr.mxu0 %v551
    %2074 = vmatpush1.msra.mxu0 %v550
    %2075 = vmatprep.subr.mxu0 %v557
    %2076 = vmatpush1.msra.mxu0 %v556
    %2077 = vmatprep.subr.mxu0 %v563
    %2078 = vmatpush1.msra.mxu0 %v562
    %2079 = vmatprep.subr.mxu0 %v569
    %2080 = vmatpush1.msra.mxu0 %v568
    %2081 = vmatprep.subr.mxu0 %v575
    %2082 = vmatpush1.msra.mxu0 %v574
    %2083 = vmatprep.subr.mxu0 %v581
    %2084 = vmatpush1.msra.mxu0 %v580
    %2085 = vmatprep.subr.mxu0 %v587
    %2086 = vmatpush1.msra.mxu0 %v586
    %2087 = vmatprep.subr.mxu0 %v593
    %2088 = vmatpush1.msra.mxu0 %v592
    %2089 = vmatprep.subr.mxu0 %v599
    %2090 = vmatpush1.msra.mxu0 %v598
    %2091 = vmatprep.subr.mxu0 %v605
    %2092 = vmatpush1.msra.mxu0 %v604
    %2093 = vmatprep.subr.mxu0 %v611
    %2094 = vmatpush1.msra.mxu0 %v610
    %2095 = vmatprep.subr.mxu0 %v617
    %2096 = vmatpush1.msra.mxu0 %v616
    %2097 = vmatprep.subr.mxu0 %v623
    %2098 = vmatpush1.msra.mxu0 %v622
    %2099 = vmatprep.subr.mxu0 %v629
    %2100 = vmatpush1.msra.mxu0 %v628
    %2101 = vmatprep.subr.mxu0 %v635
    %2102 = vmatpush1.msra.mxu0 %v634
    %2103 = vmatprep.subr.mxu0 %v641
    %2104 = vmatpush1.msra.mxu0 %v640
    %2105 = vmatprep.subr.mxu0 %v647
    %2106 = vmatpush1.msra.mxu0 %v646
    %2107 = vmatprep.subr.mxu0 %v653
    %2108 = vmatpush1.msra.mxu0 %v652
    %2109 = vmatprep.subr.mxu0 %v659
    %2110 = vmatpush1.msra.mxu0 %v658
    %2111 = vmatprep.subr.mxu0 %v665
    %2112 = vmatpush1.msra.mxu0 %v664
    %2113 = vmatprep.subr.mxu0 %v671
    %2114 = vmatpush1.msra.mxu0 %v670
    %2115 = vmatprep.subr.mxu0 %v677
    %2116 = vmatpush1.msra.mxu0 %v676
    %2117 = vmatprep.subr.mxu0 %v683
    %2118 = vmatpush1.msra.mxu0 %v682
    %2119 = vmatprep.subr.mxu0 %v689
    %2120 = vmatpush1.msra.mxu0 %v688
    %2121 = vmatprep.mubr.f32.mxu0 %v117
    %2122 = vmatmul.mubr.f32.gmra.mrb[0].mxu0 %v116
    %v2123 = vpop.f32.mrb[0].mxu0
    %v2124 = vadd.f32 %v2053, %v2123
    %v2125 = vpop.f32.mrb[0].mxu0
    %v2126 = vadd.f32 %v2055, %v2125
    %2127 = vdwg.mxu0
    %2128 = vmatprep.subr.mxu0 %v121
    %2129 = vmatpush1.msra.mxu0 %v120
    %2130 = vmatprep.subr.mxu0 %v127
    %2131 = vmatpush1.msra.mxu0 %v126
    %2132 = vmatprep.subr.mxu0 %v133
    %2133 = vmatpush1.msra.mxu0 %v132
    %2134 = vmatprep.subr.mxu0 %v139
    %2135 = vmatpush1.msra.mxu0 %v138
    %2136 = vmatprep.subr.mxu0 %v145
    %2137 = vmatpush1.msra.mxu0 %v144
    %2138 = vmatprep.subr.mxu0 %v151
    %2139 = vmatpush1.msra.mxu0 %v150
    %2140 = vmatprep.subr.mxu0 %v157
    %2141 = vmatpush1.msra.mxu0 %v156
    %2142 = vmatprep.subr.mxu0 %v163
    %2143 = vmatpush1.msra.mxu0 %v162
    %2144 = vmatprep.subr.mxu0 %v169
    %2145 = vmatpush1.msra.mxu0 %v168
    %2146 = vmatprep.subr.mxu0 %v175
    %2147 = vmatpush1.msra.mxu0 %v174
    %2148 = vmatprep.subr.mxu0 %v181
    %2149 = vmatpush1.msra.mxu0 %v180
    %2150 = vmatprep.subr.mxu0 %v187
    %2151 = vmatpush1.msra.mxu0 %v186
    %2152 = vmatprep.subr.mxu0 %v193
    %2153 = vmatpush1.msra.mxu0 %v192
    %2154 = vmatprep.subr.mxu0 %v199
    %2155 = vmatpush1.msra.mxu0 %v198
    %2156 = vmatprep.subr.mxu0 %v205
    %2157 = vmatpush1.msra.mxu0 %v204
    %2158 = vmatprep.subr.mxu0 %v211
    %2159 = vmatpush1.msra.mxu0 %v210
    %2160 = vmatprep.subr.mxu0 %v217
    %2161 = vmatpush1.msra.mxu0 %v216
    %2162 = vmatprep.subr.mxu0 %v223
    %2163 = vmatpush1.msra.mxu0 %v222
    %2164 = vmatprep.subr.mxu0 %v229
    %2165 = vmatpush1.msra.mxu0 %v228
    %2166 = vmatprep.subr.mxu0 %v235
    %2167 = vmatpush1.msra.mxu0 %v234
    %2168 = vmatprep.subr.mxu0 %v241
    %2169 = vmatpush1.msra.mxu0 %v240
    %2170 = vmatprep.subr.mxu0 %v247
    %2171 = vmatpush1.msra.mxu0 %v246
    %2172 = vmatprep.subr.mxu0 %v253
    %2173 = vmatpush1.msra.mxu0 %v252
    %2174 = vmatprep.subr.mxu0 %v259
    %2175 = vmatpush1.msra.mxu0 %v258
    %2176 = vmatprep.subr.mxu0 %v265
    %2177 = vmatpush1.msra.mxu0 %v264
    %2178 = vmatprep.subr.mxu0 %v271
    %2179 = vmatpush1.msra.mxu0 %v270
    %2180 = vmatprep.subr.mxu0 %v277
    %2181 = vmatpush1.msra.mxu0 %v276
    %2182 = vmatprep.subr.mxu0 %v283
    %2183 = vmatpush1.msra.mxu0 %v282
    %2184 = vmatprep.subr.mxu0 %v289
    %2185 = vmatpush1.msra.mxu0 %v288
    %2186 = vmatprep.subr.mxu0 %v295
    %2187 = vmatpush1.msra.mxu0 %v294
    %2188 = vmatprep.subr.mxu0 %v301
    %2189 = vmatpush1.msra.mxu0 %v300
    %2190 = vmatprep.subr.mxu0 %v307
    %2191 = vmatpush1.msra.mxu0 %v306
    %2192 = vmatprep.mubr.f32.mxu0 %v113
    %2193 = vmatmul.mubr.f32.gmra.mrb[0].mxu0 %v112
    %v2194 = vpop.f32.mrb[0].mxu0
    %v2195 = vadd.f32 %v1698, %v2194
    %v2196 = vpop.f32.mrb[0].mxu0
    %v2197 = vadd.f32 %v1700, %v2196
    %2198 = vdwg.mxu0
    %2199 = vmatprep.subr.mxu0 %v313
    %2200 = vmatpush1.msra.mxu0 %v312
    %2201 = vmatprep.subr.mxu0 %v319
    %2202 = vmatpush1.msra.mxu0 %v318
    %2203 = vmatprep.subr.mxu0 %v325
    %2204 = vmatpush1.msra.mxu0 %v324
    %2205 = vmatprep.subr.mxu0 %v331
    %2206 = vmatpush1.msra.mxu0 %v330
    %2207 = vmatprep.subr.mxu0 %v337
    %2208 = vmatpush1.msra.mxu0 %v336
    %2209 = vmatprep.subr.mxu0 %v343
    %2210 = vmatpush1.msra.mxu0 %v342
    %2211 = vmatprep.subr.mxu0 %v349
    %2212 = vmatpush1.msra.mxu0 %v348
    %2213 = vmatprep.subr.mxu0 %v355
    %2214 = vmatpush1.msra.mxu0 %v354
    %2215 = vmatprep.subr.mxu0 %v361
    %2216 = vmatpush1.msra.mxu0 %v360
    %2217 = vmatprep.subr.mxu0 %v367
    %2218 = vmatpush1.msra.mxu0 %v366
    %2219 = vmatprep.subr.mxu0 %v373
    %2220 = vmatpush1.msra.mxu0 %v372
    %2221 = vmatprep.subr.mxu0 %v379
    %2222 = vmatpush1.msra.mxu0 %v378
    %2223 = vmatprep.subr.mxu0 %v385
    %2224 = vmatpush1.msra.mxu0 %v384
    %2225 = vmatprep.subr.mxu0 %v391
    %2226 = vmatpush1.msra.mxu0 %v390
    %2227 = vmatprep.subr.mxu0 %v397
    %2228 = vmatpush1.msra.mxu0 %v396
    %2229 = vmatprep.subr.mxu0 %v403
    %2230 = vmatpush1.msra.mxu0 %v402
    %2231 = vmatprep.subr.mxu0 %v409
    %2232 = vmatpush1.msra.mxu0 %v408
    %2233 = vmatprep.subr.mxu0 %v415
    %2234 = vmatpush1.msra.mxu0 %v414
    %2235 = vmatprep.subr.mxu0 %v421
    %2236 = vmatpush1.msra.mxu0 %v420
    %2237 = vmatprep.subr.mxu0 %v427
    %2238 = vmatpush1.msra.mxu0 %v426
    %2239 = vmatprep.subr.mxu0 %v433
    %2240 = vmatpush1.msra.mxu0 %v432
    %2241 = vmatprep.subr.mxu0 %v439
    %2242 = vmatpush1.msra.mxu0 %v438
    %2243 = vmatprep.subr.mxu0 %v445
    %2244 = vmatpush1.msra.mxu0 %v444
    %2245 = vmatprep.subr.mxu0 %v451
    %2246 = vmatpush1.msra.mxu0 %v450
    %2247 = vmatprep.subr.mxu0 %v457
    %2248 = vmatpush1.msra.mxu0 %v456
    %2249 = vmatprep.subr.mxu0 %v463
    %2250 = vmatpush1.msra.mxu0 %v462
    %2251 = vmatprep.subr.mxu0 %v469
    %2252 = vmatpush1.msra.mxu0 %v468
    %2253 = vmatprep.subr.mxu0 %v475
    %2254 = vmatpush1.msra.mxu0 %v474
    %2255 = vmatprep.subr.mxu0 %v481
    %2256 = vmatpush1.msra.mxu0 %v480
    %2257 = vmatprep.subr.mxu0 %v487
    %2258 = vmatpush1.msra.mxu0 %v486
    %2259 = vmatprep.subr.mxu0 %v493
    %2260 = vmatpush1.msra.mxu0 %v492
    %2261 = vmatprep.subr.mxu0 %v499
    %2262 = vmatpush1.msra.mxu0 %v498
    %2263 = vmatprep.mubr.f32.mxu0 %v115
    %2264 = vmatmul.mubr.f32.gmra.mrb[0].mxu0 %v114
    %v2265 = vpop.f32.mrb[0].mxu0
    %v2266 = vadd.f32 %v2195, %v2265
    %v2267 = vpop.f32.mrb[0].mxu0
    %v2268 = vadd.f32 %v2197, %v2267
    %2269 = vdwg.mxu0
    %2270 = vmatprep.subr.mxu0 %v505
    %2271 = vmatpush1.msra.mxu0 %v504
    %2272 = vmatprep.subr.mxu0 %v511
    %2273 = vmatpush1.msra.mxu0 %v510
    %2274 = vmatprep.subr.mxu0 %v517
    %2275 = vmatpush1.msra.mxu0 %v516
    %2276 = vmatprep.subr.mxu0 %v523
    %2277 = vmatpush1.msra.mxu0 %v522
    %2278 = vmatprep.subr.mxu0 %v529
    %2279 = vmatpush1.msra.mxu0 %v528
    %2280 = vmatprep.subr.mxu0 %v535
    %2281 = vmatpush1.msra.mxu0 %v534
    %2282 = vmatprep.subr.mxu0 %v541
    %2283 = vmatpush1.msra.mxu0 %v540
    %2284 = vmatprep.subr.mxu0 %v547
    %2285 = vmatpush1.msra.mxu0 %v546
    %2286 = vmatprep.subr.mxu0 %v553
    %2287 = vmatpush1.msra.mxu0 %v552
    %2288 = vmatprep.subr.mxu0 %v559
    %2289 = vmatpush1.msra.mxu0 %v558
    %2290 = vmatprep.subr.mxu0 %v565
    %2291 = vmatpush1.msra.mxu0 %v564
    %2292 = vmatprep.subr.mxu0 %v571
    %2293 = vmatpush1.msra.mxu0 %v570
    %2294 = vmatprep.subr.mxu0 %v577
    %2295 = vmatpush1.msra.mxu0 %v576
    %2296 = vmatprep.subr.mxu0 %v583
    %2297 = vmatpush1.msra.mxu0 %v582
    %2298 = vmatprep.subr.mxu0 %v589
    %2299 = vmatpush1.msra.mxu0 %v588
    %2300 = vmatprep.subr.mxu0 %v595
    %2301 = vmatpush1.msra.mxu0 %v594
    %2302 = vmatprep.subr.mxu0 %v601
    %2303 = vmatpush1.msra.mxu0 %v600
    %2304 = vmatprep.subr.mxu0 %v607
    %2305 = vmatpush1.msra.mxu0 %v606
    %2306 = vmatprep.subr.mxu0 %v613
    %2307 = vmatpush1.msra.mxu0 %v612
    %2308 = vmatprep.subr.mxu0 %v619
    %2309 = vmatpush1.msra.mxu0 %v618
    %2310 = vmatprep.subr.mxu0 %v625
    %2311 = vmatpush1.msra.mxu0 %v624
    %2312 = vmatprep.subr.mxu0 %v631
    %2313 = vmatpush1.msra.mxu0 %v630
    %2314 = vmatprep.subr.mxu0 %v637
    %2315 = vmatpush1.msra.mxu0 %v636
    %2316 = vmatprep.subr.mxu0 %v643
    %2317 = vmatpush1.msra.mxu0 %v642
    %2318 = vmatprep.subr.mxu0 %v649
    %2319 = vmatpush1.msra.mxu0 %v648
    %2320 = vmatprep.subr.mxu0 %v655
    %2321 = vmatpush1.msra.mxu0 %v654
    %2322 = vmatprep.subr.mxu0 %v661
    %2323 = vmatpush1.msra.mxu0 %v660
    %2324 = vmatprep.subr.mxu0 %v667
    %2325 = vmatpush1.msra.mxu0 %v666
    %2326 = vmatprep.subr.mxu0 %v673
    %2327 = vmatpush1.msra.mxu0 %v672
    %2328 = vmatprep.subr.mxu0 %v679
    %2329 = vmatpush1.msra.mxu0 %v678
    %2330 = vmatprep.subr.mxu0 %v685
    %2331 = vmatpush1.msra.mxu0 %v684
    %2332 = vmatprep.subr.mxu0 %v691
    %2333 = vmatpush1.msra.mxu0 %v690
    %2334 = vmatprep.mubr.f32.mxu0 %v117
    %2335 = vmatmul.mubr.f32.gmra.mrb[0].mxu0 %v116
    %v2336 = vpop.f32.mrb[0].mxu0
    %v2337 = vadd.f32 %v2266, %v2336
    %v2338 = vpop.f32.mrb[0].mxu0
    %v2339 = vadd.f32 %v2268, %v2338
    %2340 = vdwg.mxu0
    %2341 = vmatprep.subr.mxu0 %v123
    %2342 = vmatpush1.msra.mxu0 %v122
    %2343 = vmatprep.subr.mxu0 %v129
    %2344 = vmatpush1.msra.mxu0 %v128
    %2345 = vmatprep.subr.mxu0 %v135
    %2346 = vmatpush1.msra.mxu0 %v134
    %2347 = vmatprep.subr.mxu0 %v141
    %2348 = vmatpush1.msra.mxu0 %v140
    %2349 = vmatprep.subr.mxu0 %v147
    %2350 = vmatpush1.msra.mxu0 %v146
    %2351 = vmatprep.subr.mxu0 %v153
    %2352 = vmatpush1.msra.mxu0 %v152
    %2353 = vmatprep.subr.mxu0 %v159
    %2354 = vmatpush1.msra.mxu0 %v158
    %2355 = vmatprep.subr.mxu0 %v165
    %2356 = vmatpush1.msra.mxu0 %v164
    %2357 = vmatprep.subr.mxu0 %v171
    %2358 = vmatpush1.msra.mxu0 %v170
    %2359 = vmatprep.subr.mxu0 %v177
    %2360 = vmatpush1.msra.mxu0 %v176
    %2361 = vmatprep.subr.mxu0 %v183
    %2362 = vmatpush1.msra.mxu0 %v182
    %2363 = vmatprep.subr.mxu0 %v189
    %2364 = vmatpush1.msra.mxu0 %v188
    %2365 = vmatprep.subr.mxu0 %v195
    %2366 = vmatpush1.msra.mxu0 %v194
    %2367 = vmatprep.subr.mxu0 %v201
    %2368 = vmatpush1.msra.mxu0 %v200
    %2369 = vmatprep.subr.mxu0 %v207
    %2370 = vmatpush1.msra.mxu0 %v206
    %2371 = vmatprep.subr.mxu0 %v213
    %2372 = vmatpush1.msra.mxu0 %v212
    %2373 = vmatprep.subr.mxu0 %v219
    %2374 = vmatpush1.msra.mxu0 %v218
    %2375 = vmatprep.subr.mxu0 %v225
    %2376 = vmatpush1.msra.mxu0 %v224
    %2377 = vmatprep.subr.mxu0 %v231
    %2378 = vmatpush1.msra.mxu0 %v230
    %2379 = vmatprep.subr.mxu0 %v237
    %2380 = vmatpush1.msra.mxu0 %v236
    %2381 = vmatprep.subr.mxu0 %v243
    %2382 = vmatpush1.msra.mxu0 %v242
    %2383 = vmatprep.subr.mxu0 %v249
    %2384 = vmatpush1.msra.mxu0 %v248
    %2385 = vmatprep.subr.mxu0 %v255
    %2386 = vmatpush1.msra.mxu0 %v254
    %2387 = vmatprep.subr.mxu0 %v261
    %2388 = vmatpush1.msra.mxu0 %v260
    %2389 = vmatprep.subr.mxu0 %v267
    %2390 = vmatpush1.msra.mxu0 %v266
    %2391 = vmatprep.subr.mxu0 %v273
    %2392 = vmatpush1.msra.mxu0 %v272
    %2393 = vmatprep.subr.mxu0 %v279
    %2394 = vmatpush1.msra.mxu0 %v278
    %2395 = vmatprep.subr.mxu0 %v285
    %2396 = vmatpush1.msra.mxu0 %v284
    %2397 = vmatprep.subr.mxu0 %v291
    %2398 = vmatpush1.msra.mxu0 %v290
    %2399 = vmatprep.subr.mxu0 %v297
    %2400 = vmatpush1.msra.mxu0 %v296
    %2401 = vmatprep.subr.mxu0 %v303
    %2402 = vmatpush1.msra.mxu0 %v302
    %2403 = vmatprep.subr.mxu0 %v309
    %2404 = vmatpush1.msra.mxu0 %v308
    %2405 = vmatprep.mubr.f32.mxu0 %v113
    %2406 = vmatmul.mubr.f32.gmra.mrb[0].mxu0 %v112
    %v2407 = vpop.f32.mrb[0].mxu0
    %v2408 = vadd.f32 %v1911, %v2407
    %v2409 = vpop.f32.mrb[0].mxu0
    %v2410 = vadd.f32 %v1913, %v2409
    %2411 = vdwg.mxu0
    %2412 = vmatprep.subr.mxu0 %v315
    %2413 = vmatpush1.msra.mxu0 %v314
    %2414 = vmatprep.subr.mxu0 %v321
    %2415 = vmatpush1.msra.mxu0 %v320
    %2416 = vmatprep.subr.mxu0 %v327
    %2417 = vmatpush1.msra.mxu0 %v326
    %2418 = vmatprep.subr.mxu0 %v333
    %2419 = vmatpush1.msra.mxu0 %v332
    %2420 = vmatprep.subr.mxu0 %v339
    %2421 = vmatpush1.msra.mxu0 %v338
    %2422 = vmatprep.subr.mxu0 %v345
    %2423 = vmatpush1.msra.mxu0 %v344
    %2424 = vmatprep.subr.mxu0 %v351
    %2425 = vmatpush1.msra.mxu0 %v350
    %2426 = vmatprep.subr.mxu0 %v357
    %2427 = vmatpush1.msra.mxu0 %v356
    %2428 = vmatprep.subr.mxu0 %v363
    %2429 = vmatpush1.msra.mxu0 %v362
    %2430 = vmatprep.subr.mxu0 %v369
    %2431 = vmatpush1.msra.mxu0 %v368
    %2432 = vmatprep.subr.mxu0 %v375
    %2433 = vmatpush1.msra.mxu0 %v374
    %2434 = vmatprep.subr.mxu0 %v381
    %2435 = vmatpush1.msra.mxu0 %v380
    %2436 = vmatprep.subr.mxu0 %v387
    %2437 = vmatpush1.msra.mxu0 %v386
    %2438 = vmatprep.subr.mxu0 %v393
    %2439 = vmatpush1.msra.mxu0 %v392
    %2440 = vmatprep.subr.mxu0 %v399
    %2441 = vmatpush1.msra.mxu0 %v398
    %2442 = vmatprep.subr.mxu0 %v405
    %2443 = vmatpush1.msra.mxu0 %v404
    %2444 = vmatprep.subr.mxu0 %v411
    %2445 = vmatpush1.msra.mxu0 %v410
    %2446 = vmatprep.subr.mxu0 %v417
    %2447 = vmatpush1.msra.mxu0 %v416
    %2448 = vmatprep.subr.mxu0 %v423
    %2449 = vmatpush1.msra.mxu0 %v422
    %2450 = vmatprep.subr.mxu0 %v429
    %2451 = vmatpush1.msra.mxu0 %v428
    %2452 = vmatprep.subr.mxu0 %v435
    %2453 = vmatpush1.msra.mxu0 %v434
    %2454 = vmatprep.subr.mxu0 %v441
    %2455 = vmatpush1.msra.mxu0 %v440
    %2456 = vmatprep.subr.mxu0 %v447
    %2457 = vmatpush1.msra.mxu0 %v446
    %2458 = vmatprep.subr.mxu0 %v453
    %2459 = vmatpush1.msra.mxu0 %v452
    %2460 = vmatprep.subr.mxu0 %v459
    %2461 = vmatpush1.msra.mxu0 %v458
    %2462 = vmatprep.subr.mxu0 %v465
    %2463 = vmatpush1.msra.mxu0 %v464
    %2464 = vmatprep.subr.mxu0 %v471
    %2465 = vmatpush1.msra.mxu0 %v470
    %2466 = vmatprep.subr.mxu0 %v477
    %2467 = vmatpush1.msra.mxu0 %v476
    %2468 = vmatprep.subr.mxu0 %v483
    %2469 = vmatpush1.msra.mxu0 %v482
    %2470 = vmatprep.subr.mxu0 %v489
    %2471 = vmatpush1.msra.mxu0 %v488
    %2472 = vmatprep.subr.mxu0 %v495
    %2473 = vmatpush1.msra.mxu0 %v494
    %2474 = vmatprep.subr.mxu0 %v501
    %2475 = vmatpush1.msra.mxu0 %v500
    %2476 = vmatprep.mubr.f32.mxu0 %v115
    %2477 = vmatmul.mubr.f32.gmra.mrb[0].mxu0 %v114
    %v2478 = vpop.f32.mrb[0].mxu0
    %v2479 = vadd.f32 %v2408, %v2478
    %v2480 = vpop.f32.mrb[0].mxu0
    %v2481 = vadd.f32 %v2410, %v2480
    %2482 = vdwg.mxu0
    %2483 = vmatprep.subr.mxu0 %v507
    %2484 = vmatpush1.msra.mxu0 %v506
    %2485 = vmatprep.subr.mxu0 %v513
    %2486 = vmatpush1.msra.mxu0 %v512
    %2487 = vmatprep.subr.mxu0 %v519
    %2488 = vmatpush1.msra.mxu0 %v518
    %2489 = vmatprep.subr.mxu0 %v525
    %2490 = vmatpush1.msra.mxu0 %v524
    %2491 = vmatprep.subr.mxu0 %v531
    %2492 = vmatpush1.msra.mxu0 %v530
    %2493 = vmatprep.subr.mxu0 %v537
    %2494 = vmatpush1.msra.mxu0 %v536
    %2495 = vmatprep.subr.mxu0 %v543
    %2496 = vmatpush1.msra.mxu0 %v542
    %2497 = vmatprep.subr.mxu0 %v549
    %2498 = vmatpush1.msra.mxu0 %v548
    %2499 = vmatprep.subr.mxu0 %v555
    %2500 = vmatpush1.msra.mxu0 %v554
    %2501 = vmatprep.subr.mxu0 %v561
    %2502 = vmatpush1.msra.mxu0 %v560
    %2503 = vmatprep.subr.mxu0 %v567
    %2504 = vmatpush1.msra.mxu0 %v566
    %2505 = vmatprep.subr.mxu0 %v573
    %2506 = vmatpush1.msra.mxu0 %v572
    %2507 = vmatprep.subr.mxu0 %v579
    %2508 = vmatpush1.msra.mxu0 %v578
    %2509 = vmatprep.subr.mxu0 %v585
    %2510 = vmatpush1.msra.mxu0 %v584
    %2511 = vmatprep.subr.mxu0 %v591
    %2512 = vmatpush1.msra.mxu0 %v590
    %2513 = vmatprep.subr.mxu0 %v597
    %2514 = vmatpush1.msra.mxu0 %v596
    %2515 = vmatprep.subr.mxu0 %v603
    %2516 = vmatpush1.msra.mxu0 %v602
    %2517 = vmatprep.subr.mxu0 %v609
    %2518 = vmatpush1.msra.mxu0 %v608
    %2519 = vmatprep.subr.mxu0 %v615
    %2520 = vmatpush1.msra.mxu0 %v614
    %2521 = vmatprep.subr.mxu0 %v621
    %2522 = vmatpush1.msra.mxu0 %v620
    %2523 = vmatprep.subr.mxu0 %v627
    %2524 = vmatpush1.msra.mxu0 %v626
    %2525 = vmatprep.subr.mxu0 %v633
    %2526 = vmatpush1.msra.mxu0 %v632
    %2527 = vmatprep.subr.mxu0 %v639
    %2528 = vmatpush1.msra.mxu0 %v638
    %2529 = vmatprep.subr.mxu0 %v645
    %2530 = vmatpush1.msra.mxu0 %v644
    %2531 = vmatprep.subr.mxu0 %v651
    %2532 = vmatpush1.msra.mxu0 %v650
    %2533 = vmatprep.subr.mxu0 %v657
    %2534 = vmatpush1.msra.mxu0 %v656
    %2535 = vmatprep.subr.mxu0 %v663
    %2536 = vmatpush1.msra.mxu0 %v662
    %2537 = vmatprep.subr.mxu0 %v669
    %2538 = vmatpush1.msra.mxu0 %v668
    %2539 = vmatprep.subr.mxu0 %v675
    %2540 = vmatpush1.msra.mxu0 %v674
    %2541 = vmatprep.subr.mxu0 %v681
    %2542 = vmatpush1.msra.mxu0 %v680
    %2543 = vmatprep.subr.mxu0 %v687
    %2544 = vmatpush1.msra.mxu0 %v686
    %2545 = vmatprep.subr.mxu0 %v693
    %2546 = vmatpush1.msra.mxu0 %v692
    %2547 = vmatprep.mubr.f32.mxu0 %v117
    %2548 = vmatmul.mubr.f32.gmra.mrb[0].mxu0 %v116
    %v2549 = vpop.f32.mrb[0].mxu0
    %v2550 = vadd.f32 %v2479, %v2549
    %v2551 = vpop.f32.mrb[0].mxu0
    %v2552 = vadd.f32 %v2481, %v2551
    %2553 = vdwg.mxu0
    %v2554 = vld [vmem:[#allocation10] sm:$0x3f]
    %v2556 = vlaneseq
    %v2557 = vshrl.u32 %v2556, 7
    %v2558 = vsub.s32 0, %v2557
    %v2559 = vrot.slane %v2554, %v2558
    %v2560 = vlaneseq
    %v2561 = vshrl.u32 %v2560, 7
    %v2562 = vsub.s32 1, %v2561
    %v2563 = vrot.slane %v2554, %v2562
    %v2564 = vlaneseq
    %v2565 = vshrl.u32 %v2564, 7
    %v2566 = vsub.s32 2, %v2565
    %v2567 = vrot.slane %v2554, %v2566
    %v2568 = vlaneseq
    %v2569 = vshrl.u32 %v2568, 7
    %v2570 = vsub.s32 3, %v2569
    %v2571 = vrot.slane %v2554, %v2570
    %v2572 = vlaneseq
    %v2573 = vshrl.u32 %v2572, 7
    %v2574 = vsub.s32 4, %v2573
    %v2575 = vrot.slane %v2554, %v2574
    %v2576 = vlaneseq
    %v2577 = vshrl.u32 %v2576, 7
    %v2578 = vsub.s32 5, %v2577
    %v2579 = vrot.slane %v2554, %v2578
    %v2586 = vadd.f32 %v2124, %v2559
    %v2587 = vadd.f32 %v2126, %v2563
    %v2588 = vadd.f32 %v2337, %v2567
    %v2589 = vadd.f32 %v2339, %v2571
    %v2590 = vadd.f32 %v2550, %v2575
    %v2591 = vadd.f32 %v2552, %v2579
    %v2592 = vadd.f32 %v2586, %v2587
    %v2593 = vadd.f32 %v2592, %v2588
    %v2594 = vadd.f32 %v2593, %v2589
    %v2595 = vadd.f32 %v2594, %v2590
    %v2596 = vadd.f32 %v2595, %v2591
    %2597 = vadd.xlane.f32.xlu0 %v2596
    %v2598 = vpop.xlane.xlu0 %2597
    %v2599 = vrcp.pop 768.0
    %v2600 = vmul.f32 %v2598, %v2599
    %v2601 = vsub.f32 %v2586, %v2600
    %v2602 = vsub.f32 %v2587, %v2600
    %v2603 = vsub.f32 %v2588, %v2600
    %v2604 = vsub.f32 %v2589, %v2600
    %v2605 = vsub.f32 %v2590, %v2600
    %v2606 = vsub.f32 %v2591, %v2600
    %v2607 = vmul.f32 %v2601, %v2601
    %v2608 = vmul.f32 %v2602, %v2602
    %v2609 = vmul.f32 %v2603, %v2603
    %v2610 = vmul.f32 %v2604, %v2604
    %v2611 = vmul.f32 %v2605, %v2605
    %v2612 = vmul.f32 %v2606, %v2606
    %v2613 = vadd.f32 %v2607, %v2608
    %v2614 = vadd.f32 %v2613, %v2609
    %v2615 = vadd.f32 %v2614, %v2610
    %v2616 = vadd.f32 %v2615, %v2611
    %v2617 = vadd.f32 %v2616, %v2612
    %2618 = vadd.xlane.f32.xlu0 %v2617
    %v2619 = vpop.xlane.xlu0 %2618
    %v2620 = vmul.f32 %v2619, %v2599
    %v2621 = vadd.f32 %v2620, 1e-05
    %v2622 = vrsqrt.pop %v2621
    %v2623 = vmul.f32 %v2601, %v2622
    %v2624 = vmul.f32 %v2602, %v2622
    %v2625 = vmul.f32 %v2603, %v2622
    %v2626 = vmul.f32 %v2604, %v2622
    %v2627 = vmul.f32 %v2605, %v2622
    %v2628 = vmul.f32 %v2606, %v2622
    %v2629 = vld [vmem:[#allocation13] sm:$0x3f]
    %v2631 = vlaneseq
    %v2632 = vshrl.u32 %v2631, 7
    %v2633 = vsub.s32 0, %v2632
    %v2634 = vrot.slane %v2629, %v2633
    %v2635 = vlaneseq
    %v2636 = vshrl.u32 %v2635, 7
    %v2637 = vsub.s32 1, %v2636
    %v2638 = vrot.slane %v2629, %v2637
    %v2639 = vlaneseq
    %v2640 = vshrl.u32 %v2639, 7
    %v2641 = vsub.s32 2, %v2640
    %v2642 = vrot.slane %v2629, %v2641
    %v2643 = vlaneseq
    %v2644 = vshrl.u32 %v2643, 7
    %v2645 = vsub.s32 3, %v2644
    %v2646 = vrot.slane %v2629, %v2645
    %v2647 = vlaneseq
    %v2648 = vshrl.u32 %v2647, 7
    %v2649 = vsub.s32 4, %v2648
    %v2650 = vrot.slane %v2629, %v2649
    %v2651 = vlaneseq
    %v2652 = vshrl.u32 %v2651, 7
    %v2653 = vsub.s32 5, %v2652
    %v2654 = vrot.slane %v2629, %v2653
    %v2661 = vadd.f32 %v694, %v2634
    %v2662 = vadd.f32 %v695, %v2638
    %v2663 = vadd.f32 %v696, %v2642
    %v2664 = vadd.f32 %v697, %v2646
    %v2665 = vadd.f32 %v698, %v2650
    %v2666 = vadd.f32 %v699, %v2654
    %v2667 = vld [vmem:[#allocation11] sm:$0x3f]
    %v2669 = vlaneseq
    %v2670 = vshrl.u32 %v2669, 7
    %v2671 = vsub.s32 0, %v2670
    %v2672 = vrot.slane %v2667, %v2671
    %v2673 = vlaneseq
    %v2674 = vshrl.u32 %v2673, 7
    %v2675 = vsub.s32 1, %v2674
    %v2676 = vrot.slane %v2667, %v2675
    %v2677 = vlaneseq
    %v2678 = vshrl.u32 %v2677, 7
    %v2679 = vsub.s32 2, %v2678
    %v2680 = vrot.slane %v2667, %v2679
    %v2681 = vlaneseq
    %v2682 = vshrl.u32 %v2681, 7
    %v2683 = vsub.s32 3, %v2682
    %v2684 = vrot.slane %v2667, %v2683
    %v2685 = vlaneseq
    %v2686 = vshrl.u32 %v2685, 7
    %v2687 = vsub.s32 4, %v2686
    %v2688 = vrot.slane %v2667, %v2687
    %v2689 = vlaneseq
    %v2690 = vshrl.u32 %v2689, 7
    %v2691 = vsub.s32 5, %v2690
    %v2692 = vrot.slane %v2667, %v2691
    %v2699 = vmul.f32 %v2623, %v2672
    %v2700 = vmul.f32 %v2624, %v2676
    %v2701 = vmul.f32 %v2625, %v2680
    %v2702 = vmul.f32 %v2626, %v2684
    %v2703 = vmul.f32 %v2627, %v2688
    %v2704 = vmul.f32 %v2628, %v2692
    %v2705 = vadd.f32 %v2699, %v2661
    %v2706 = vadd.f32 %v2700, %v2662
    %v2707 = vadd.f32 %v2701, %v2663
    %v2708 = vadd.f32 %v2702, %v2664
    %v2709 = vadd.f32 %v2703, %v2665
    %v2710 = vadd.f32 %v2704, %v2666
    %2711 = vst [vmem:[#allocation14] sm:$0xff] %v2705
    %2712 = vst [vmem:[#allocation14 + $0x8] sm:$0xff] %v2706
    %2713 = vst [vmem:[#allocation14 + $0x10] sm:$0xff] %v2707
    %2714 = vst [vmem:[#allocation14 + $0x18] sm:$0xff] %v2708
    %2715 = vst [vmem:[#allocation14 + $0x20] sm:$0xff] %v2709
    %2716 = vst [vmem:[#allocation14 + $0x28] sm:$0xff] %v2710
    // Predicated region
    $region58: #{tpu_custom_call.1} parent=1 // pred_check
      _
    $region59: #{tpu_custom_call.1} parent=1 // pred_check_branch
      %2718 = sbr.rel (0) target = $region61
    $region60: #{tpu_custom_call.1} parent=1 // pred_region
      %s2720 = ssub.s32 768, 768
      %2721 = vsyncadd [#allocation4], %s2720
      %s2723 = sshll.u32 [#allocation14], 4
      %s2724 = int_to_ptr.vmem [resolvable:$true] %s2723
      %2726 = dma.vmem_to_hbm [thread:$0]  %s2724, 768, %s7, [#allocation4]
    $region61: #{tpu_custom_call.1} parent=1 // pred_fallthru
      _
    // Predicated region
    $region62: #{tpu_custom_call.1} parent=1 // pred_check
      _
    $region63: #{tpu_custom_call.1} parent=1 // pred_check_branch
      %2728 = sbr.rel (0) target = $region65
    $region64: #{tpu_custom_call.1} parent=1 // pred_region
      %2729 = dma.done [#allocation4], 768
    $region65: #{tpu_custom_call.1} parent=1 // pred_fallthru
      _
    %2730 = vsyncpa [#allocation3], 1
    %2731 = vsyncpa [#allocation6], 1
    %2732 = vsyncpa [#allocation9], 1
    %2733 = vsyncpa [#allocation12], 1
    %2734 = vsyncpa [#allocation4], 1

</llo_original>
